<compile_context>
chip_gen: v7x
topology: tpu7x:2x2x1
jax: 0.10.0
libtpu: 0.0.40
codegen_flags: <defaults>
</compile_context>

<pallas_src>
import functools

import jax
import jax.numpy as jnp
from jax.experimental import pallas as pl
from jax.experimental.pallas import tpu as pltpu


def _vmem_budget_bytes():
    """Per-generation scoped-VMEM budget (v5e/v6e: 128 MiB phys, v7x: 64 MiB phys)."""
    phys = 64 * 1024 * 1024
    try:
        info = pltpu.get_tpu_info()
        phys = int(getattr(info, "vmem_capacity_bytes", phys))
    except Exception:
        pass
    # ~60% of physical, leaving headroom for double buffers / compiler scratch.
    return max(32 * 1024 * 1024, min(int(phys * 0.6), 96 * 1024 * 1024))


VMEM_BUDGET = _vmem_budget_bytes()


def _ceil_mult(x, m):
    return ((x + m - 1) // m) * m


def _pick_tile(dim, pref, align):
    """Largest multiple of `align` that divides `dim` and is <= pref (falls back to dim)."""
    if dim <= pref:
        return dim
    t = (pref // align) * align
    while t >= align:
        if dim % t == 0:
            return t
        t -= align
    return dim


# --------------------- Kernel 1: tiled matmul + bias (x @ W_ih^T + b) ------------------ #
def matmul_bias_kernel(x_ref, w_ref, b_ref, o_ref, acc_ref):
    k = pl.program_id(2)

    @pl.when(k == 0)
    def _():
        acc_ref[...] = jnp.zeros_like(acc_ref)

    acc_ref[...] += jnp.dot(x_ref[...], w_ref[...],
                            preferred_element_type=jnp.float32)

    @pl.when(k == pl.num_programs(2) - 1)
    def _():
        o_ref[...] = (acc_ref[...] + b_ref[...]).astype(o_ref.dtype)


def matmul_bias_pallas(x, w, b, *, out_dtype, row_align=8, tm_pref=256, tk_pref=512):
    M, K = x.shape
    _, N = w.shape
    # Larger N tiles when the per-generation budget allows: fewer j tiles => the x
    # K-stripe is re-read fewer times from HBM and fewer grid-step overheads.
    tn_pref = 2048 if VMEM_BUDGET >= 60 * 1024 * 1024 else 1024
    tm = _pick_tile(M, tm_pref, row_align)
    tn = _pick_tile(N, tn_pref, 128)
    tk = _pick_tile(K, tk_pref, 128)
    grid = (M // tm, N // tn, K // tk)
    return pl.pallas_call(
        matmul_bias_kernel,
        out_shape=jax.ShapeDtypeStruct((M, N), out_dtype),
        grid_spec=pltpu.PrefetchScalarGridSpec(
            num_scalar_prefetch=0,
            grid=grid,
            in_specs=[
                pl.BlockSpec((tm, tk), lambda i, j, k: (i, k)),
                pl.BlockSpec((tk, tn), lambda i, j, k: (k, j)),
                pl.BlockSpec((1, tn), lambda i, j, k: (0, j)),
            ],
            out_specs=pl.BlockSpec((tm, tn), lambda i, j, k: (i, j)),
            scratch_shapes=[pltpu.VMEM((tm, tn), jnp.float32)],
        ),
        compiler_params=pltpu.CompilerParams(
            dimension_semantics=("parallel", "parallel", "arbitrary"),
            vmem_limit_bytes=VMEM_BUDGET),
    )(x, w, b)


# ----------- Kernel 2: LSTM recurrence, streamed over (batch tiles, T chunks) ----------- #
def lstm_recurrence_kernel(gx_ref, w_hh_ref, h0_ref, c0_ref,
                           hseq_ref, hN_ref, cN_ref, h_sc, c_sc):
    t_blk = pl.program_id(1)
    Tc = gx_ref.shape[0]
    Hp = h0_ref.shape[1]

    # (Re)initialize the carry at the first T-chunk of every batch tile.
    @pl.when(t_blk == 0)
    def _():
        h_sc[...] = h0_ref[...]
        c_sc[...] = c0_ref[...]

    def step(i, carry):
        h, c = carry
        # Only the small recurrent matmul remains per step; x-projection is precomputed.
        gates = gx_ref[i].astype(jnp.float32) + jnp.dot(
            h.astype(w_hh_ref.dtype), w_hh_ref[...],
            preferred_element_type=jnp.float32)
        # Gate layout pre-ordered (i, f, o, g) in the wrapper: one wide sigmoid slab
        # + one tanh (fewer EUP dispatches in the serial loop).
        sig = jax.nn.sigmoid(gates[:, :3 * Hp])
        g_g = jnp.tanh(gates[:, 3 * Hp:])
        i_g = sig[:, 0 * Hp:1 * Hp]
        f_g = sig[:, 1 * Hp:2 * Hp]
        o_g = sig[:, 2 * Hp:3 * Hp]
        c_new = f_g * c + i_g * g_g
        h_new = o_g * jnp.tanh(c_new)
        hseq_ref[i] = h_new.astype(hseq_ref.dtype)   # lane-dense (Bb, Hp) store
        return h_new, c_new

    # TODO(synk): for very large Hp (>512) process gates in Hp-column chunks to avoid
    # register spills inside the serial loop.
    h_fin, c_fin = jax.lax.fori_loop(0, Tc, step, (h_sc[...], c_sc[...]),
                                     unroll=min(4, Tc))
    h_sc[...] = h_fin
    c_sc[...] = c_fin
    hN_ref[...] = h_fin.astype(hN_ref.dtype)
    cN_ref[...] = c_fin.astype(cN_ref.dtype)


def lstm_recurrence_pallas(gates_x, w_hh_t, h0, c0, *, hseq_dtype, row_align=8):
    T, Bp, Gp = gates_x.shape
    Hp = h0.shape[1]
    Tc = _pick_tile(T, 8, 1)                                  # stream T in small chunks
    Bb = _pick_tile(Bp, max(row_align, Bp // 2), row_align)   # >=2 tiles feeds both v7x TCs
    out_shape = (
        jax.ShapeDtypeStruct((T, Bp, Hp), hseq_dtype),
        jax.ShapeDtypeStruct((Bp, Hp), jnp.float32),
        jax.ShapeDtypeStruct((Bp, Hp), jnp.float32),
    )
    return pl.pallas_call(
        lstm_recurrence_kernel,
        out_shape=out_shape,
        grid_spec=pltpu.PrefetchScalarGridSpec(
            num_scalar_prefetch=0,
            grid=(Bp // Bb, T // Tc),
            in_specs=[
                pl.BlockSpec((Tc, Bb, Gp), lambda b, t: (t, b, 0)),
                pl.BlockSpec((Hp, Gp), lambda b, t: (0, 0)),     # resident
                pl.BlockSpec((Bb, Hp), lambda b, t: (b, 0)),
                pl.BlockSpec((Bb, Hp), lambda b, t: (b, 0)),
            ],
            out_specs=[
                pl.BlockSpec((Tc, Bb, Hp), lambda b, t: (t, b, 0)),
                pl.BlockSpec((Bb, Hp), lambda b, t: (b, 0)),     # resident across t
                pl.BlockSpec((Bb, Hp), lambda b, t: (b, 0)),
            ],
            scratch_shapes=[pltpu.VMEM((Bb, Hp), jnp.float32),
                            pltpu.VMEM((Bb, Hp), jnp.float32)],
        ),
        compiler_params=pltpu.CompilerParams(
            dimension_semantics=("parallel", "arbitrary"),
            vmem_limit_bytes=VMEM_BUDGET),
    )(gates_x, w_hh_t, h0, c0)


# --------- Kernel 3: FC + channel softmax, C streamed in chunks into VMEM scratch -------- #
def fc_softmax_kernel(h_ref, w_ref, b_ref, o_ref, logits_ref, *, n_c_chunks):
    # h_ref: (tile_n, Hp); w_ref: (1,1,Hp,Cc*thw); b_ref: (1,1,1,Cc*thw)
    # o_ref: (tile_n, Cp, thw); logits_ref (scratch): (tile_n, Cp, thw) f32
    tile_n, Cp, thw = o_ref.shape
    Cc = b_ref.shape[-1] // thw

    logits = jnp.dot(h_ref[...], w_ref[0, 0],
                     preferred_element_type=jnp.float32) + b_ref[0, 0]
    logits3 = logits.reshape(tile_n, Cc, thw)

    def _softmax_store(lg):
        m = jnp.max(lg, axis=1, keepdims=True)
        e = jnp.exp(lg - m)
        s = jnp.sum(e, axis=1, keepdims=True)
        o_ref[...] = (e / s).astype(o_ref.dtype)

    if n_c_chunks == 1:
        # Single chunk covers all channels: no scratch round-trip needed.
        _softmax_store(logits3)
    else:
        c = pl.program_id(2)
        c_off = pl.multiple_of(c * Cc, Cc)
        logits_ref[:, pl.ds(c_off, Cc), :] = logits3

        @pl.when(c == pl.num_programs(2) - 1)
        def _():
            _softmax_store(logits_ref[...])


def fc_softmax_pallas(h_flat, wb, bb, *, Cp, HWp, thw, Cc, tile_n):
    Ntot, Hp = h_flat.shape
    J = HWp // thw
    NCc = Cp // Cc
    kernel = functools.partial(fc_softmax_kernel, n_c_chunks=NCc)
    return pl.pallas_call(
        kernel,
        out_shape=jax.ShapeDtypeStruct((Ntot, Cp, HWp), jnp.float32),
        grid_spec=pltpu.PrefetchScalarGridSpec(
            num_scalar_prefetch=0,
            grid=(Ntot // tile_n, J, NCc),
            in_specs=[
                pl.BlockSpec((tile_n, Hp), lambda n, j, c: (n, 0)),          # resident over j,c
                pl.BlockSpec((1, 1, Hp, Cc * thw), lambda n, j, c: (j, c, 0, 0)),
                pl.BlockSpec((1, 1, 1, Cc * thw), lambda n, j, c: (j, c, 0, 0)),
            ],
            out_specs=pl.BlockSpec((tile_n, Cp, thw), lambda n, j, c: (n, 0, j)),
            scratch_shapes=[pltpu.VMEM((tile_n, Cp, thw), jnp.float32)],
        ),
        compiler_params=pltpu.CompilerParams(
            dimension_semantics=("parallel", "parallel", "arbitrary"),
            vmem_limit_bytes=VMEM_BUDGET),
    )(h_flat, wb, bb)


# ------------------------------------ RNN forward --------------------------------------- #
@functools.partial(jax.jit, static_argnames=("C", "Hs", "Ws", "matmul_dtype"))
def rnn_forward(x, hidden, params, *, C, Hs, Ws, matmul_dtype=jnp.bfloat16):
    """Pallas equivalent of RNN.forward(x, hidden)."""
    h0, c0 = hidden                     # (1, B, H) each (num_layers = 1)
    w_ih, w_hh, b_ih, b_hh, w_fc, b_fc = params
    T, B, IN = x.shape
    H = h0.shape[-1]
    HW = Hs * Ws
    mm = jnp.dtype(matmul_dtype)
    row_align = 16 if mm.itemsize == 2 else 8   # bf16 packs 2 rows per sublane

    # Pad to dtype-native vreg tiles: batch rows -> 8/16, hidden/input -> 128.
    Bp = _ceil_mult(B, row_align)
    Hp = _ceil_mult(H, 128)
    INp = _ceil_mult(IN, 128)
    Gp = 4 * Hp

    # --- one-time weight prep (plain XLA: gate reorder i,f,g,o -> i,f,o,g, pad,
    #     pre-transpose; no in-kernel .T) ---
    perm = jnp.array([0, 1, 3, 2])

    w_ih4 = jnp.pad(w_ih.reshape(4, H, IN)[perm], ((0, 0), (0, Hp - H), (0, INp - IN)))
    w_ih_t = jnp.transpose(w_ih4, (2, 0, 1)).reshape(INp, Gp).astype(mm)      # (INp, 4*Hp)

    w_hh4 = jnp.pad(w_hh.reshape(4, H, H)[perm], ((0, 0), (0, Hp - H), (0, Hp - H)))
    w_hh_t = jnp.transpose(w_hh4, (2, 0, 1)).reshape(Hp, Gp).astype(mm)       # (Hp, 4*Hp)

    b_comb = jnp.pad((b_ih + b_hh).reshape(4, H)[perm], ((0, 0), (0, Hp - H)))
    b_comb = b_comb.reshape(1, Gp).astype(jnp.float32)

    # --- FC layout: pad C to multiple of 8 (pad channels get -1e30 bias so they carry
    #     ~0 probability), pad HW to multiple of 128 so all stores are lane-dense.
    Cp = _ceil_mult(C, 8)
    thw = 128
    HWp = _ceil_mult(HW, thw)
    J = HWp // thw
    # C-chunk sized so the double-buffered (Hp, Cc*thw) weight tile fits ~1/3 of budget.
    cc_cap = (VMEM_BUDGET // 3) // (2 * Hp * thw * mm.itemsize)
    cc_cap = max(8, (cc_cap // 8) * 8)
    Cc = _pick_tile(Cp, min(64, cc_cap), 8)
    NCc = Cp // Cc
    # Row tile sized so the logits scratch + output double-buffer fit ~1/2 of budget.
    tn_cap = (VMEM_BUDGET // 2) // (3 * Cp * thw * 4)
    tn_cap = max(row_align, (tn_cap // row_align) * row_align)
    tile_n = _pick_tile(T * Bp, min(128, tn_cap), row_align)

    w_fc3 = jnp.pad(w_fc.reshape(C, HW, H), ((0, Cp - C), (0, HWp - HW), (0, Hp - H)))
    # (Cp,HWp,Hp) -> (NCc,Cc,J,thw,Hp) -> (J,NCc,Hp,Cc,thw) -> (J,NCc,Hp,Cc*thw)
    wb = w_fc3.reshape(NCc, Cc, J, thw, Hp).transpose(2, 0, 4, 1, 3) \
              .reshape(J, NCc, Hp, Cc * thw).astype(mm)

    b_full = jnp.full((Cp, HWp), -1e30, jnp.float32)
    b_full = b_full.at[:C, :HW].set(b_fc.reshape(C, HW).astype(jnp.float32))
    bb = b_full.reshape(NCc, Cc, J, thw).transpose(2, 0, 1, 3) \
               .reshape(J, NCc, 1, Cc * thw)

    # --- inputs: pad batch / feature dims (zero padding is exact: padded units stay 0) ---
    xp = jnp.pad(x, ((0, 0), (0, Bp - B), (0, INp - IN))).reshape(T * Bp, INp).astype(mm)
    h0p = jnp.pad(h0[0], ((0, Bp - B), (0, Hp - H))).astype(jnp.float32)
    c0p = jnp.pad(c0[0], ((0, Bp - B), (0, Hp - H))).astype(jnp.float32)

    # 1) hoisted input projection (the dominant matmul at real scale); gates_x stored
    #    in the matmul dtype (bf16 halves the HBM round-trip to kernel 2).
    gates_x = matmul_bias_pallas(xp, w_ih_t, b_comb, out_dtype=mm,
                                 row_align=row_align).reshape(T, Bp, Gp)

    # 2) sequential recurrence streamed over (batch tiles, T chunks); h/c carried in VMEM.
    h_seq, hNp, cNp = lstm_recurrence_pallas(gates_x, w_hh_t, h0p, c0p,
                                             hseq_dtype=mm, row_align=row_align)

    # 3) fused Linear + channel softmax with C-chunk weight streaming.
    h_flat = h_seq.reshape(T * Bp, Hp)
    probs = fc_softmax_pallas(h_flat, wb, bb, Cp=Cp, HWp=HWp, thw=thw, Cc=Cc,
                              tile_n=tile_n)

    out = probs.reshape(T, Bp, Cp, HWp)[:, :B, :C, :HW].reshape(T * B, C, Hs, Ws)
    hN = hNp[:B, :H][None]
    cN = cNp[:B, :H][None]
    return out, (hN, cN)


# ------------------------------------ pure-JAX ref --------------------------------------- #
def ref_forward(x, hidden, params, *, C, Hs, Ws):
    h0, c0 = hidden
    w_ih, w_hh, b_ih, b_hh, w_fc, b_fc = params
    T, B, _ = x.shape
    H = h0.shape[-1]

    def step(carry, x_t):
        h, c = carry
        gates = x_t @ w_ih.T + b_ih + h @ w_hh.T + b_hh
        i, f, g, o = jnp.split(gates, 4, axis=1)
        i = jax.nn.sigmoid(i); f = jax.nn.sigmoid(f)
        g = jnp.tanh(g); o = jax.nn.sigmoid(o)
        c = f * c + i * g
        h = o * jnp.tanh(c)
        return (h, c), h

    (hN, cN), hs = jax.lax.scan(step, (h0[0], c0[0]), x)
    logits = hs.reshape(T * B, H) @ w_fc.T + b_fc
    logits = logits.reshape(T * B, C, Hs, Ws)
    return jax.nn.softmax(logits, axis=1), (hN[None], cN[None])


# -------------------------------------- main --------------------------------------------- #
if __name__ == "__main__":
    # Scaled-down config (original: Hs=Ws=56, C=313, input_size=56*56*128).
    seq, batch = 4, 2
    Hs, Ws, C = 4, 4, 8
    input_size = Hs * Ws * 16      # 256
    hidden_size = 32
    output_size = C * Hs * Ws      # 128

    key = jax.random.PRNGKey(0)
    ks = jax.random.split(key, 7)
    scale = 0.1
    w_ih = jax.random.uniform(ks[0], (4 * hidden_size, input_size), jnp.float32, -scale, scale)
    w_hh = jax.random.uniform(ks[1], (4 * hidden_size, hidden_size), jnp.float32, -scale, scale)
    b_ih = jax.random.uniform(ks[2], (4 * hidden_size,), jnp.float32, -scale, scale)
    b_hh = jax.random.uniform(ks[3], (4 * hidden_size,), jnp.float32, -scale, scale)
    w_fc = jax.random.uniform(ks[4], (output_size, hidden_size), jnp.float32, -scale, scale)
    b_fc = jax.random.uniform(ks[5], (output_size,), jnp.float32, -scale, scale)
    params = (w_ih, w_hh, b_ih, b_hh, w_fc, b_fc)

    x = jax.random.normal(ks[6], (seq, batch, input_size), jnp.float32)
    # zero_state(device, batch_size=batch)
    hidden = (jnp.zeros((1, batch, hidden_size), jnp.float32),
              jnp.zeros((1, batch, hidden_size), jnp.float32))

    ref_out, (ref_hN, ref_cN) = ref_forward(x, hidden, params, C=C, Hs=Hs, Ws=Ws)

    # f32 path (exact parity with the reference).
    out, (hN, cN) = rnn_forward(x, hidden, params, C=C, Hs=Hs, Ws=Ws,
                                matmul_dtype=jnp.float32)
    jax.block_until_ready(out)
    assert out.shape == (seq * batch, C, Hs, Ws)
    assert jnp.allclose(out, ref_out, atol=1e-4, rtol=1e-4)
    assert jnp.allclose(hN, ref_hN, atol=1e-4, rtol=1e-4)
    assert jnp.allclose(cN, ref_cN, atol=1e-4, rtol=1e-4)

    # Default bf16 MXU-operand path (v5e/v6e/v7x peak), f32 accumulation; looser tolerance.
    out_bf, (hN_bf, cN_bf) = rnn_forward(x, hidden, params, C=C, Hs=Hs, Ws=Ws)
    jax.block_until_ready(out_bf)
    assert jnp.allclose(out_bf, ref_out, atol=2e-2, rtol=2e-2)
    assert jnp.allclose(hN_bf, ref_hN, atol=2e-2, rtol=2e-2)
    assert jnp.allclose(cN_bf, ref_cN, atol=2e-2, rtol=2e-2)

    print("KERNEL_OK")
</pallas_src>

<mosaic_0001>
module attributes {stable_mosaic.version = 11 : i64} {
  func.func @matmul_bias_kernel(%arg0: i32, %arg1: i32, %arg2: i32, %arg3: memref<32x256xf32, #tpu.memory_space<vmem>>, %arg4: memref<256x512xf32, #tpu.memory_space<vmem>>, %arg5: memref<1x512xf32, #tpu.memory_space<vmem>>, %arg6: memref<32x512xf32, #tpu.memory_space<vmem>>, %arg7: memref<32x512xf32, #tpu.memory_space<vmem>>) attributes {dimension_semantics = [#tpu.dimension_semantics<parallel>, #tpu.dimension_semantics<parallel>, #tpu.dimension_semantics<arbitrary>], iteration_bounds = array<i64: 1, 1, 1>, scalar_prefetch = 0 : i64, scratch_operands = 1 : i64, tpu.core_type = #tpu.core_type<tc>, window_params = [{transform_indices = @transform_0, window_bounds = array<i64: 32, 256>}, {transform_indices = @transform_1, window_bounds = array<i64: 256, 512>}, {transform_indices = @transform_2, window_bounds = array<i64: 1, 512>}, {transform_indices = @transform_3, window_bounds = array<i64: 32, 512>}]} {
    %c0_i32 = arith.constant 0 : i32
    %0 = arith.cmpi eq, %arg2, %c0_i32 : i32
    %1 = arith.extui %0 : i1 to i32
    %c0_i32_0 = arith.constant 0 : i32
    %2 = arith.cmpi ne, %1, %c0_i32_0 : i32
    scf.if %2 {
      %cst_10 = arith.constant 0.000000e+00 : f32
      %12 = vector.broadcast %cst_10 : f32 to vector<32x512xf32>
      %c0_11 = arith.constant 0 : index
      %c0_12 = arith.constant 0 : index
      %13 = vector.load %arg7[%c0_11, %c0_12] : memref<32x512xf32, #tpu.memory_space<vmem>>, vector<32x512xf32>
      tpu.vector_store %arg7[%c0_11, %c0_12], %12 {strides = array<i32>} : memref<32x512xf32, #tpu.memory_space<vmem>>, vector<32x512xf32>,
    } else {
    }
    %c0 = arith.constant 0 : index
    %c0_1 = arith.constant 0 : index
    %3 = vector.load %arg7[%c0, %c0_1] : memref<32x512xf32, #tpu.memory_space<vmem>>, vector<32x512xf32>
    %c0_2 = arith.constant 0 : index
    %c0_3 = arith.constant 0 : index
    %4 = vector.load %arg3[%c0_2, %c0_3] : memref<32x256xf32, #tpu.memory_space<vmem>>, vector<32x256xf32>
    %c0_4 = arith.constant 0 : index
    %c0_5 = arith.constant 0 : index
    %5 = vector.load %arg4[%c0_4, %c0_5] : memref<256x512xf32, #tpu.memory_space<vmem>>, vector<256x512xf32>
    %cst = arith.constant dense<0.000000e+00> : vector<32x512xf32>
    %6 = tpu.matmul %4, %5, %cst {dimension_numbers = #tpu.dot_dimension_numbers<[1], [0], [0], [1], [0, 0, 1, 1], [], []>} : vector<32x256xf32>, vector<256x512xf32>, vector<32x512xf32> -> vector<32x512xf32>
    %7 = arith.addf %3, %6 : vector<32x512xf32>
    %c0_6 = arith.constant 0 : index
    %c0_7 = arith.constant 0 : index
    %8 = vector.load %arg7[%c0_6, %c0_7] : memref<32x512xf32, #tpu.memory_space<vmem>>, vector<32x512xf32>
    tpu.vector_store %arg7[%c0_6, %c0_7], %7 {strides = array<i32>} : memref<32x512xf32, #tpu.memory_space<vmem>>, vector<32x512xf32>,
    %c0_i32_8 = arith.constant 0 : i32
    %9 = arith.cmpi eq, %arg2, %c0_i32_8 : i32
    %10 = arith.extui %9 : i1 to i32
    %c0_i32_9 = arith.constant 0 : i32
    %11 = arith.cmpi ne, %10, %c0_i32_9 : i32
    scf.if %11 {
      %c0_10 = arith.constant 0 : index
      %c0_11 = arith.constant 0 : index
      %12 = vector.load %arg7[%c0_10, %c0_11] : memref<32x512xf32, #tpu.memory_space<vmem>>, vector<32x512xf32>
      %c0_12 = arith.constant 0 : index
      %c0_13 = arith.constant 0 : index
      %13 = vector.load %arg5[%c0_12, %c0_13] : memref<1x512xf32, #tpu.memory_space<vmem>>, vector<1x512xf32>
      %14 = vector.broadcast %13 : vector<1x512xf32> to vector<32x512xf32>
      %15 = arith.addf %12, %14 : vector<32x512xf32>
      %c0_14 = arith.constant 0 : index
      %c0_15 = arith.constant 0 : index
      %16 = vector.load %arg6[%c0_14, %c0_15] : memref<32x512xf32, #tpu.memory_space<vmem>>, vector<32x512xf32>
      tpu.vector_store %arg6[%c0_14, %c0_15], %15 {strides = array<i32>} : memref<32x512xf32, #tpu.memory_space<vmem>>, vector<32x512xf32>,
    } else {
    }
    return
  }
  func.func @transform_0(%arg0: i32, %arg1: i32, %arg2: i32) -> (i32, i32) {
    %c0_i32 = arith.constant 0 : i32
    return %arg0, %arg2 : i32, i32
  }
  func.func @transform_1(%arg0: i32, %arg1: i32, %arg2: i32) -> (i32, i32) {
    %c0_i32 = arith.constant 0 : i32
    return %arg2, %arg1 : i32, i32
  }
  func.func @transform_2(%arg0: i32, %arg1: i32, %arg2: i32) -> (i32, i32) {
    %c0_i32 = arith.constant 0 : i32
    %c0_i32_0 = arith.constant 0 : i32
    return %c0_i32, %arg1 : i32, i32
  }
  func.func @transform_3(%arg0: i32, %arg1: i32, %arg2: i32) -> (i32, i32) {
    %c0_i32 = arith.constant 0 : i32
    return %arg0, %arg1 : i32, i32
  }
}

module attributes {stable_mosaic.version = 11 : i64} {
  func.func @lstm_recurrence_kernel(%arg0: i32, %arg1: i32, %arg2: memref<4x8x512xf32, #tpu.memory_space<vmem>>, %arg3: memref<128x512xf32, #tpu.memory_space<vmem>>, %arg4: memref<8x128xf32, #tpu.memory_space<vmem>>, %arg5: memref<8x128xf32, #tpu.memory_space<vmem>>, %arg6: memref<4x8x128xf32, #tpu.memory_space<vmem>>, %arg7: memref<8x128xf32, #tpu.memory_space<vmem>>, %arg8: memref<8x128xf32, #tpu.memory_space<vmem>>, %arg9: memref<8x128xf32, #tpu.memory_space<vmem>>, %arg10: memref<8x128xf32, #tpu.memory_space<vmem>>) attributes {dimension_semantics = [#tpu.dimension_semantics<parallel>, #tpu.dimension_semantics<arbitrary>], iteration_bounds = array<i64: 1, 1>, scalar_prefetch = 0 : i64, scratch_operands = 2 : i64, tpu.core_type = #tpu.core_type<tc>, window_params = [{transform_indices = @transform_0, window_bounds = array<i64: 4, 8, 512>}, {pipeline_mode = #tpu.pipeline_mode<synchronous>, transform_indices = @transform_1, window_bounds = array<i64: 128, 512>}, {transform_indices = @transform_2, window_bounds = array<i64: 8, 128>}, {transform_indices = @transform_3, window_bounds = array<i64: 8, 128>}, {transform_indices = @transform_4, window_bounds = array<i64: 4, 8, 128>}, {transform_indices = @transform_5, window_bounds = array<i64: 8, 128>}, {transform_indices = @transform_6, window_bounds = array<i64: 8, 128>}]} {
    %c0_i32 = arith.constant 0 : i32
    %0 = arith.cmpi eq, %arg1, %c0_i32 : i32
    %1 = arith.extui %0 : i1 to i32
    %c0_i32_0 = arith.constant 0 : i32
    %2 = arith.cmpi ne, %1, %c0_i32_0 : i32
    scf.if %2 {
      %c0_44 = arith.constant 0 : index
      %c0_45 = arith.constant 0 : index
      %113 = vector.load %arg4[%c0_44, %c0_45] : memref<8x128xf32, #tpu.memory_space<vmem>>, vector<8x128xf32>
      %c0_46 = arith.constant 0 : index
      %c0_47 = arith.constant 0 : index
      %114 = vector.load %arg9[%c0_46, %c0_47] : memref<8x128xf32, #tpu.memory_space<vmem>>, vector<8x128xf32>
      tpu.vector_store %arg9[%c0_46, %c0_47], %113 {strides = array<i32>} : memref<8x128xf32, #tpu.memory_space<vmem>>, vector<8x128xf32>,
      %c0_48 = arith.constant 0 : index
      %c0_49 = arith.constant 0 : index
      %115 = vector.load %arg5[%c0_48, %c0_49] : memref<8x128xf32, #tpu.memory_space<vmem>>, vector<8x128xf32>
      %c0_50 = arith.constant 0 : index
      %c0_51 = arith.constant 0 : index
      %116 = vector.load %arg10[%c0_50, %c0_51] : memref<8x128xf32, #tpu.memory_space<vmem>>, vector<8x128xf32>
      tpu.vector_store %arg10[%c0_50, %c0_51], %115 {strides = array<i32>} : memref<8x128xf32, #tpu.memory_space<vmem>>, vector<8x128xf32>,
    } else {
    }
    %c0 = arith.constant 0 : index
    %c0_1 = arith.constant 0 : index
    %3 = vector.load %arg9[%c0, %c0_1] : memref<8x128xf32, #tpu.memory_space<vmem>>, vector<8x128xf32>
    %c0_2 = arith.constant 0 : index
    %c0_3 = arith.constant 0 : index
    %4 = vector.load %arg10[%c0_2, %c0_3] : memref<8x128xf32, #tpu.memory_space<vmem>>, vector<8x128xf32>
    %c0_i32_4 = arith.constant 0 : i32
    %5 = arith.index_cast %c0_i32_4 : i32 to index
    %c0_5 = arith.constant 0 : index
    %c0_6 = arith.constant 0 : index
    %6 = vector.load %arg2[%5, %c0_5, %c0_6] : memref<4x8x512xf32, #tpu.memory_space<vmem>>, vector<1x8x512xf32>
    %7 = vector.shape_cast %6 : vector<1x8x512xf32> to vector<8x512xf32>
    %c0_7 = arith.constant 0 : index
    %c0_8 = arith.constant 0 : index
    %8 = vector.load %arg3[%c0_7, %c0_8] : memref<128x512xf32, #tpu.memory_space<vmem>>, vector<128x512xf32>
    %cst = arith.constant dense<0.000000e+00> : vector<8x512xf32>
    %9 = tpu.matmul %3, %8, %cst {dimension_numbers = #tpu.dot_dimension_numbers<[1], [0], [0], [1], [0, 0, 1, 1], [], []>} : vector<8x128xf32>, vector<128x512xf32>, vector<8x512xf32> -> vector<8x512xf32>
    %10 = arith.addf %7, %9 : vector<8x512xf32>
    %11 = vector.extract_strided_slice %10 {offsets = [0, 0], sizes = [8, 384], strides = [1, 1]} : vector<8x512xf32> to vector<8x384xf32>
    %12 = arith.negf %11 : vector<8x384xf32>
    %13 = math.exp %12 : vector<8x384xf32>
    %cst_9 = arith.constant 1.000000e+00 : f32
    %14 = vector.broadcast %cst_9 : f32 to vector<8x384xf32>
    %15 = arith.addf %14, %13 : vector<8x384xf32>
    %16 = arith.divf %14, %15 : vector<8x384xf32>
    %17 = vector.extract_strided_slice %10 {offsets = [0, 384], sizes = [8, 128], strides = [1, 1]} : vector<8x512xf32> to vector<8x128xf32>
    %18 = math.tanh %17 : vector<8x128xf32>
    %19 = vector.extract_strided_slice %16 {offsets = [0, 0], sizes = [8, 128], strides = [1, 1]} : vector<8x384xf32> to vector<8x128xf32>
    %20 = vector.extract_strided_slice %16 {offsets = [0, 128], sizes = [8, 128], strides = [1, 1]} : vector<8x384xf32> to vector<8x128xf32>
    %21 = vector.extract_strided_slice %16 {offsets = [0, 256], sizes = [8, 128], strides = [1, 1]} : vector<8x384xf32> to vector<8x128xf32>
    %22 = arith.mulf %20, %4 : vector<8x128xf32>
    %23 = arith.mulf %19, %18 : vector<8x128xf32>
    %24 = arith.addf %22, %23 : vector<8x128xf32>
    %25 = math.tanh %24 : vector<8x128xf32>
    %26 = arith.mulf %21, %25 : vector<8x128xf32>
    %27 = arith.index_cast %c0_i32_4 : i32 to index
    %c0_10 = arith.constant 0 : index
    %c0_11 = arith.constant 0 : index
    %28 = vector.load %arg6[%27, %c0_10, %c0_11] : memref<4x8x128xf32, #tpu.memory_space<vmem>>, vector<1x8x128xf32>
    %29 = vector.shape_cast %28 : vector<1x8x128xf32> to vector<8x128xf32>
    %30 = vector.shape_cast %26 : vector<8x128xf32> to vector<1x8x128xf32>
    tpu.vector_store %arg6[%27, %c0_10, %c0_11], %30 {strides = array<i32>} : memref<4x8x128xf32, #tpu.memory_space<vmem>>, vector<1x8x128xf32>,
    %c1_i32 = arith.constant 1 : i32
    %31 = arith.index_cast %c1_i32 : i32 to index
    %c0_12 = arith.constant 0 : index
    %c0_13 = arith.constant 0 : index
    %32 = vector.load %arg2[%31, %c0_12, %c0_13] : memref<4x8x512xf32, #tpu.memory_space<vmem>>, vector<1x8x512xf32>
    %33 = vector.shape_cast %32 : vector<1x8x512xf32> to vector<8x512xf32>
    %c0_14 = arith.constant 0 : index
    %c0_15 = arith.constant 0 : index
    %34 = vector.load %arg3[%c0_14, %c0_15] : memref<128x512xf32, #tpu.memory_space<vmem>>, vector<128x512xf32>
    %cst_16 = arith.constant dense<0.000000e+00> : vector<8x512xf32>
    %35 = tpu.matmul %26, %34, %cst_16 {dimension_numbers = #tpu.dot_dimension_numbers<[1], [0], [0], [1], [0, 0, 1, 1], [], []>} : vector<8x128xf32>, vector<128x512xf32>, vector<8x512xf32> -> vector<8x512xf32>
    %36 = arith.addf %33, %35 : vector<8x512xf32>
    %37 = vector.extract_strided_slice %36 {offsets = [0, 0], sizes = [8, 384], strides = [1, 1]} : vector<8x512xf32> to vector<8x384xf32>
    %38 = arith.negf %37 : vector<8x384xf32>
    %39 = math.exp %38 : vector<8x384xf32>
    %cst_17 = arith.constant 1.000000e+00 : f32
    %40 = vector.broadcast %cst_17 : f32 to vector<8x384xf32>
    %41 = arith.addf %40, %39 : vector<8x384xf32>
    %42 = arith.divf %40, %41 : vector<8x384xf32>
    %43 = vector.extract_strided_slice %36 {offsets = [0, 384], sizes = [8, 128], strides = [1, 1]} : vector<8x512xf32> to vector<8x128xf32>
    %44 = math.tanh %43 : vector<8x128xf32>
    %45 = vector.extract_strided_slice %42 {offsets = [0, 0], sizes = [8, 128], strides = [1, 1]} : vector<8x384xf32> to vector<8x128xf32>
    %46 = vector.extract_strided_slice %42 {offsets = [0, 128], sizes = [8, 128], strides = [1, 1]} : vector<8x384xf32> to vector<8x128xf32>
    %47 = vector.extract_strided_slice %42 {offsets = [0, 256], sizes = [8, 128], strides = [1, 1]} : vector<8x384xf32> to vector<8x128xf32>
    %48 = arith.mulf %46, %24 : vector<8x128xf32>
    %49 = arith.mulf %45, %44 : vector<8x128xf32>
    %50 = arith.addf %48, %49 : vector<8x128xf32>
    %51 = math.tanh %50 : vector<8x128xf32>
    %52 = arith.mulf %47, %51 : vector<8x128xf32>
    %53 = arith.index_cast %c1_i32 : i32 to index
    %c0_18 = arith.constant 0 : index
    %c0_19 = arith.constant 0 : index
    %54 = vector.load %arg6[%53, %c0_18, %c0_19] : memref<4x8x128xf32, #tpu.memory_space<vmem>>, vector<1x8x128xf32>
    %55 = vector.shape_cast %54 : vector<1x8x128xf32> to vector<8x128xf32>
    %56 = vector.shape_cast %52 : vector<8x128xf32> to vector<1x8x128xf32>
    tpu.vector_store %arg6[%53, %c0_18, %c0_19], %56 {strides = array<i32>} : memref<4x8x128xf32, #tpu.memory_space<vmem>>, vector<1x8x128xf32>,
    %c2_i32 = arith.constant 2 : i32
    %57 = arith.index_cast %c2_i32 : i32 to index
    %c0_20 = arith.constant 0 : index
    %c0_21 = arith.constant 0 : index
    %58 = vector.load %arg2[%57, %c0_20, %c0_21] : memref<4x8x512xf32, #tpu.memory_space<vmem>>, vector<1x8x512xf32>
    %59 = vector.shape_cast %58 : vector<1x8x512xf32> to vector<8x512xf32>
    %c0_22 = arith.constant 0 : index
    %c0_23 = arith.constant 0 : index
    %60 = vector.load %arg3[%c0_22, %c0_23] : memref<128x512xf32, #tpu.memory_space<vmem>>, vector<128x512xf32>
    %cst_24 = arith.constant dense<0.000000e+00> : vector<8x512xf32>
    %61 = tpu.matmul %52, %60, %cst_24 {dimension_numbers = #tpu.dot_dimension_numbers<[1], [0], [0], [1], [0, 0, 1, 1], [], []>} : vector<8x128xf32>, vector<128x512xf32>, vector<8x512xf32> -> vector<8x512xf32>
    %62 = arith.addf %59, %61 : vector<8x512xf32>
    %63 = vector.extract_strided_slice %62 {offsets = [0, 0], sizes = [8, 384], strides = [1, 1]} : vector<8x512xf32> to vector<8x384xf32>
    %64 = arith.negf %63 : vector<8x384xf32>
    %65 = math.exp %64 : vector<8x384xf32>
    %cst_25 = arith.constant 1.000000e+00 : f32
    %66 = vector.broadcast %cst_25 : f32 to vector<8x384xf32>
    %67 = arith.addf %66, %65 : vector<8x384xf32>
    %68 = arith.divf %66, %67 : vector<8x384xf32>
    %69 = vector.extract_strided_slice %62 {offsets = [0, 384], sizes = [8, 128], strides = [1, 1]} : vector<8x512xf32> to vector<8x128xf32>
    %70 = math.tanh %69 : vector<8x128xf32>
    %71 = vector.extract_strided_slice %68 {offsets = [0, 0], sizes = [8, 128], strides = [1, 1]} : vector<8x384xf32> to vector<8x128xf32>
    %72 = vector.extract_strided_slice %68 {offsets = [0, 128], sizes = [8, 128], strides = [1, 1]} : vector<8x384xf32> to vector<8x128xf32>
    %73 = vector.extract_strided_slice %68 {offsets = [0, 256], sizes = [8, 128], strides = [1, 1]} : vector<8x384xf32> to vector<8x128xf32>
    %74 = arith.mulf %72, %50 : vector<8x128xf32>
    %75 = arith.mulf %71, %70 : vector<8x128xf32>
    %76 = arith.addf %74, %75 : vector<8x128xf32>
    %77 = math.tanh %76 : vector<8x128xf32>
    %78 = arith.mulf %73, %77 : vector<8x128xf32>
    %79 = arith.index_cast %c2_i32 : i32 to index
    %c0_26 = arith.constant 0 : index
    %c0_27 = arith.constant 0 : index
    %80 = vector.load %arg6[%79, %c0_26, %c0_27] : memref<4x8x128xf32, #tpu.memory_space<vmem>>, vector<1x8x128xf32>
    %81 = vector.shape_cast %80 : vector<1x8x128xf32> to vector<8x128xf32>
    %82 = vector.shape_cast %78 : vector<8x128xf32> to vector<1x8x128xf32>
    tpu.vector_store %arg6[%79, %c0_26, %c0_27], %82 {strides = array<i32>} : memref<4x8x128xf32, #tpu.memory_space<vmem>>, vector<1x8x128xf32>,
    %c3_i32 = arith.constant 3 : i32
    %83 = arith.index_cast %c3_i32 : i32 to index
    %c0_28 = arith.constant 0 : index
    %c0_29 = arith.constant 0 : index
    %84 = vector.load %arg2[%83, %c0_28, %c0_29] : memref<4x8x512xf32, #tpu.memory_space<vmem>>, vector<1x8x512xf32>
    %85 = vector.shape_cast %84 : vector<1x8x512xf32> to vector<8x512xf32>
    %c0_30 = arith.constant 0 : index
    %c0_31 = arith.constant 0 : index
    %86 = vector.load %arg3[%c0_30, %c0_31] : memref<128x512xf32, #tpu.memory_space<vmem>>, vector<128x512xf32>
    %cst_32 = arith.constant dense<0.000000e+00> : vector<8x512xf32>
    %87 = tpu.matmul %78, %86, %cst_32 {dimension_numbers = #tpu.dot_dimension_numbers<[1], [0], [0], [1], [0, 0, 1, 1], [], []>} : vector<8x128xf32>, vector<128x512xf32>, vector<8x512xf32> -> vector<8x512xf32>
    %88 = arith.addf %85, %87 : vector<8x512xf32>
    %89 = vector.extract_strided_slice %88 {offsets = [0, 0], sizes = [8, 384], strides = [1, 1]} : vector<8x512xf32> to vector<8x384xf32>
    %90 = arith.negf %89 : vector<8x384xf32>
    %91 = math.exp %90 : vector<8x384xf32>
    %cst_33 = arith.constant 1.000000e+00 : f32
    %92 = vector.broadcast %cst_33 : f32 to vector<8x384xf32>
    %93 = arith.addf %92, %91 : vector<8x384xf32>
    %94 = arith.divf %92, %93 : vector<8x384xf32>
    %95 = vector.extract_strided_slice %88 {offsets = [0, 384], sizes = [8, 128], strides = [1, 1]} : vector<8x512xf32> to vector<8x128xf32>
    %96 = math.tanh %95 : vector<8x128xf32>
    %97 = vector.extract_strided_slice %94 {offsets = [0, 0], sizes = [8, 128], strides = [1, 1]} : vector<8x384xf32> to vector<8x128xf32>
    %98 = vector.extract_strided_slice %94 {offsets = [0, 128], sizes = [8, 128], strides = [1, 1]} : vector<8x384xf32> to vector<8x128xf32>
    %99 = vector.extract_strided_slice %94 {offsets = [0, 256], sizes = [8, 128], strides = [1, 1]} : vector<8x384xf32> to vector<8x128xf32>
    %100 = arith.mulf %98, %76 : vector<8x128xf32>
    %101 = arith.mulf %97, %96 : vector<8x128xf32>
    %102 = arith.addf %100, %101 : vector<8x128xf32>
    %103 = math.tanh %102 : vector<8x128xf32>
    %104 = arith.mulf %99, %103 : vector<8x128xf32>
    %105 = arith.index_cast %c3_i32 : i32 to index
    %c0_34 = arith.constant 0 : index
    %c0_35 = arith.constant 0 : index
    %106 = vector.load %arg6[%105, %c0_34, %c0_35] : memref<4x8x128xf32, #tpu.memory_space<vmem>>, vector<1x8x128xf32>
    %107 = vector.shape_cast %106 : vector<1x8x128xf32> to vector<8x128xf32>
    %108 = vector.shape_cast %104 : vector<8x128xf32> to vector<1x8x128xf32>
    tpu.vector_store %arg6[%105, %c0_34, %c0_35], %108 {strides = array<i32>} : memref<4x8x128xf32, #tpu.memory_space<vmem>>, vector<1x8x128xf32>,
    %c4_i32 = arith.constant 4 : i32
    %c0_36 = arith.constant 0 : index
    %c0_37 = arith.constant 0 : index
    %109 = vector.load %arg9[%c0_36, %c0_37] : memref<8x128xf32, #tpu.memory_space<vmem>>, vector<8x128xf32>
    tpu.vector_store %arg9[%c0_36, %c0_37], %104 {strides = array<i32>} : memref<8x128xf32, #tpu.memory_space<vmem>>, vector<8x128xf32>,
    %c0_38 = arith.constant 0 : index
    %c0_39 = arith.constant 0 : index
    %110 = vector.load %arg10[%c0_38, %c0_39] : memref<8x128xf32, #tpu.memory_space<vmem>>, vector<8x128xf32>
    tpu.vector_store %arg10[%c0_38, %c0_39], %102 {strides = array<i32>} : memref<8x128xf32, #tpu.memory_space<vmem>>, vector<8x128xf32>,
    %c0_40 = arith.constant 0 : index
    %c0_41 = arith.constant 0 : index
    %111 = vector.load %arg7[%c0_40, %c0_41] : memref<8x128xf32, #tpu.memory_space<vmem>>, vector<8x128xf32>
    tpu.vector_store %arg7[%c0_40, %c0_41], %104 {strides = array<i32>} : memref<8x128xf32, #tpu.memory_space<vmem>>, vector<8x128xf32>,
    %c0_42 = arith.constant 0 : index
    %c0_43 = arith.constant 0 : index
    %112 = vector.load %arg8[%c0_42, %c0_43] : memref<8x128xf32, #tpu.memory_space<vmem>>, vector<8x128xf32>
    tpu.vector_store %arg8[%c0_42, %c0_43], %102 {strides = array<i32>} : memref<8x128xf32, #tpu.memory_space<vmem>>, vector<8x128xf32>,
    return
  }
  func.func @transform_0(%arg0: i32, %arg1: i32) -> (i32, i32, i32) {
    %c0_i32 = arith.constant 0 : i32
    %c0_i32_0 = arith.constant 0 : i32
    return %arg1, %arg0, %c0_i32 : i32, i32, i32
  }
  func.func @transform_1(%arg0: i32, %arg1: i32) -> (i32, i32) {
    %c0_i32 = arith.constant 0 : i32
    %c0_i32_0 = arith.constant 0 : i32
    %c0_i32_1 = arith.constant 0 : i32
    return %c0_i32, %c0_i32_0 : i32, i32
  }
  func.func @transform_2(%arg0: i32, %arg1: i32) -> (i32, i32) {
    %c0_i32 = arith.constant 0 : i32
    %c0_i32_0 = arith.constant 0 : i32
    return %arg0, %c0_i32 : i32, i32
  }
  func.func @transform_3(%arg0: i32, %arg1: i32) -> (i32, i32) {
    %c0_i32 = arith.constant 0 : i32
    %c0_i32_0 = arith.constant 0 : i32
    return %arg0, %c0_i32 : i32, i32
  }
  func.func @transform_4(%arg0: i32, %arg1: i32) -> (i32, i32, i32) {
    %c0_i32 = arith.constant 0 : i32
    %c0_i32_0 = arith.constant 0 : i32
    return %arg1, %arg0, %c0_i32 : i32, i32, i32
  }
  func.func @transform_5(%arg0: i32, %arg1: i32) -> (i32, i32) {
    %c0_i32 = arith.constant 0 : i32
    %c0_i32_0 = arith.constant 0 : i32
    return %arg0, %c0_i32 : i32, i32
  }
  func.func @transform_6(%arg0: i32, %arg1: i32) -> (i32, i32) {
    %c0_i32 = arith.constant 0 : i32
    %c0_i32_0 = arith.constant 0 : i32
    return %arg0, %c0_i32 : i32, i32
  }
}

module attributes {stable_mosaic.version = 11 : i64} {
  func.func @fc_softmax_kernel(%arg0: i32, %arg1: i32, %arg2: i32, %arg3: memref<32x128xf32, #tpu.memory_space<vmem>>, %arg4: memref<1x1x128x1024xf32, #tpu.memory_space<vmem>>, %arg5: memref<1x1x1x1024xf32, #tpu.memory_space<vmem>>, %arg6: memref<32x8x128xf32, #tpu.memory_space<vmem>>, %arg7: memref<32x8x128xf32, #tpu.memory_space<vmem>>) attributes {dimension_semantics = [#tpu.dimension_semantics<parallel>, #tpu.dimension_semantics<parallel>, #tpu.dimension_semantics<arbitrary>], iteration_bounds = array<i64: 1, 1, 1>, scalar_prefetch = 0 : i64, scratch_operands = 1 : i64, tpu.core_type = #tpu.core_type<tc>, window_params = [{transform_indices = @transform_0, window_bounds = array<i64: 32, 128>}, {transform_indices = @transform_1, window_bounds = array<i64: 1, 1, 128, 1024>}, {transform_indices = @transform_2, window_bounds = array<i64: 1, 1, 1, 1024>}, {transform_indices = @transform_3, window_bounds = array<i64: 32, 8, 128>}]} {
    %c0 = arith.constant 0 : index
    %c0_0 = arith.constant 0 : index
    %0 = vector.load %arg3[%c0, %c0_0] : memref<32x128xf32, #tpu.memory_space<vmem>>, vector<32x128xf32>
    %c0_1 = arith.constant 0 : index
    %c0_2 = arith.constant 0 : index
    %c0_3 = arith.constant 0 : index
    %c0_4 = arith.constant 0 : index
    %1 = vector.load %arg4[%c0_1, %c0_2, %c0_3, %c0_4] : memref<1x1x128x1024xf32, #tpu.memory_space<vmem>>, vector<1x1x128x1024xf32>
    %2 = vector.shape_cast %1 : vector<1x1x128x1024xf32> to vector<128x1024xf32>
    %cst = arith.constant dense<0.000000e+00> : vector<32x1024xf32>
    %3 = tpu.matmul %0, %2, %cst {dimension_numbers = #tpu.dot_dimension_numbers<[1], [0], [0], [1], [0, 0, 1, 1], [], []>} : vector<32x128xf32>, vector<128x1024xf32>, vector<32x1024xf32> -> vector<32x1024xf32>
    %c0_5 = arith.constant 0 : index
    %c0_6 = arith.constant 0 : index
    %c0_7 = arith.constant 0 : index
    %c0_8 = arith.constant 0 : index
    %4 = vector.load %arg5[%c0_5, %c0_6, %c0_7, %c0_8] : memref<1x1x1x1024xf32, #tpu.memory_space<vmem>>, vector<1x1x1x1024xf32>
    %5 = vector.shape_cast %4 : vector<1x1x1x1024xf32> to vector<1x1024xf32>
    %6 = vector.broadcast %5 : vector<1x1024xf32> to vector<32x1024xf32>
    %7 = arith.addf %3, %6 : vector<32x1024xf32>
    %8 = vector.shape_cast %7 : vector<32x1024xf32> to vector<32x8x128xf32>
    %cst_9 = arith.constant dense<0xFF800000> : vector<32x128xf32>
    %9 = vector.multi_reduction <maximumf>, %8, %cst_9 [1] : vector<32x8x128xf32> to vector<32x128xf32>
    %10 = vector.shape_cast %9 : vector<32x128xf32> to vector<32x1x128xf32>
    %11 = vector.broadcast %10 : vector<32x1x128xf32> to vector<32x8x128xf32>
    %12 = arith.subf %8, %11 : vector<32x8x128xf32>
    %13 = math.exp %12 : vector<32x8x128xf32>
    %cst_10 = arith.constant dense<0.000000e+00> : vector<32x128xf32>
    %14 = vector.multi_reduction <add>, %13, %cst_10 [1] : vector<32x8x128xf32> to vector<32x128xf32>
    %15 = vector.shape_cast %14 : vector<32x128xf32> to vector<32x1x128xf32>
    %16 = vector.broadcast %15 : vector<32x1x128xf32> to vector<32x8x128xf32>
    %17 = arith.divf %13, %16 : vector<32x8x128xf32>
    %c0_11 = arith.constant 0 : index
    %c0_12 = arith.constant 0 : index
    %c0_13 = arith.constant 0 : index
    %18 = vector.load %arg6[%c0_11, %c0_12, %c0_13] : memref<32x8x128xf32, #tpu.memory_space<vmem>>, vector<32x8x128xf32>
    tpu.vector_store %arg6[%c0_11, %c0_12, %c0_13], %17 {strides = array<i32>} : memref<32x8x128xf32, #tpu.memory_space<vmem>>, vector<32x8x128xf32>,
    return
  }
  func.func @transform_0(%arg0: i32, %arg1: i32, %arg2: i32) -> (i32, i32) {
    %c0_i32 = arith.constant 0 : i32
    %c0_i32_0 = arith.constant 0 : i32
    return %arg0, %c0_i32 : i32, i32
  }
  func.func @transform_1(%arg0: i32, %arg1: i32, %arg2: i32) -> (i32, i32, i32, i32) {
    %c0_i32 = arith.constant 0 : i32
    %c0_i32_0 = arith.constant 0 : i32
    %c0_i32_1 = arith.constant 0 : i32
    return %arg1, %arg2, %c0_i32, %c0_i32_0 : i32, i32, i32, i32
  }
  func.func @transform_2(%arg0: i32, %arg1: i32, %arg2: i32) -> (i32, i32, i32, i32) {
    %c0_i32 = arith.constant 0 : i32
    %c0_i32_0 = arith.constant 0 : i32
    %c0_i32_1 = arith.constant 0 : i32
    return %arg1, %arg2, %c0_i32, %c0_i32_0 : i32, i32, i32, i32
  }
  func.func @transform_3(%arg0: i32, %arg1: i32, %arg2: i32) -> (i32, i32, i32) {
    %c0_i32 = arith.constant 0 : i32
    %c0_i32_0 = arith.constant 0 : i32
    return %arg0, %c0_i32, %arg1 : i32, i32, i32
  }
}

</mosaic_0001>

<llo_original>
// kernel: rnn_forward.3
$region0: #{rnn_forward.3}
  #allocation0 [shape = 'u32[]', space=smem, size = 0x4, offset = 0x4, fixed_abs, tag = 'smem constant byte address 0x4 - core index']
  #allocation1 [shape = 'u32[144,128]{1,0:T(1,128)}', space=vmem, size = 0x12000, scoped, tag = 'internal scratch']
  #allocation2 [shape = 'f32[32,512]{1,0:T(8,128)}', space=vmem, size = 0x10000, scoped, tag = 'scratch operand']
  %s0 = inlined_call_operand.vmem [shape: f32[32,256], index: 0, kind: input, shape index: {}]
  %s1 = inlined_call_operand.vmem [shape: f32[256,512], index: 1, kind: input, shape index: {}]
  %s2 = inlined_call_operand.vmem [shape: f32[1,512], index: 2, kind: input, shape index: {}]
  %s3 = inlined_call_operand.vmem [shape: f32[32,512], index: 3, kind: output, shape index: {}]
  %s4 = sld [smem:[#allocation0]]
  $region30: #{rnn_forward.3} parent=0
    _
  %s6 = ssub.s32 1, %s4
  %s7 = scalar_select 0, %s6, %s4
  // Predicated region
  $region2: #{rnn_forward.3} parent=0 // pred_check
    _
  $region3: #{rnn_forward.3} parent=0 // pred_check_branch
    %9 = sbr.rel (0) target = $region5
  $region4: #{rnn_forward.3} parent=0 // pred_region
    _
  $region5: #{rnn_forward.3} parent=0 // pred_fallthru
    _
  // Predicated region
  $region6: #{rnn_forward.3} parent=0 // pred_check
    _
  $region7: #{rnn_forward.3} parent=0 // pred_check_branch
    %11 = sbr.rel (0) target = $region9
  $region8: #{rnn_forward.3} parent=0 // pred_region
    _
  $region9: #{rnn_forward.3} parent=0 // pred_fallthru
    _
  // Predicated region
  $region10: #{rnn_forward.3} parent=0 // pred_check
    _
  $region11: #{rnn_forward.3} parent=0 // pred_check_branch
    %13 = sbr.rel (0) target = $region13
  $region12: #{rnn_forward.3} parent=0 // pred_region
    _
  $region13: #{rnn_forward.3} parent=0 // pred_fallthru
    _
  %p14 = scmp.eq.s32.totalorder 0, 0
  // Predicated region
  $region14: #{rnn_forward.3} parent=0 // pred_check
    %p15 = pneg %p14
  $region15: #{rnn_forward.3} parent=0 // pred_check_branch
    %17 = sbr.rel (%p15) target = $region17
  $region16: #{rnn_forward.3} parent=0 // pred_region
    %18 = vst [vmem:[#allocation2] sm:$0xff] 0.0
    %19 = vst [vmem:[#allocation2 + $0x8] sm:$0xff] 0.0
    %20 = vst [vmem:[#allocation2 + $0x10] sm:$0xff] 0.0
    %21 = vst [vmem:[#allocation2 + $0x18] sm:$0xff] 0.0
    %22 = vst [vmem:[#allocation2 + $0x20] sm:$0xff] 0.0
    %23 = vst [vmem:[#allocation2 + $0x28] sm:$0xff] 0.0
    %24 = vst [vmem:[#allocation2 + $0x30] sm:$0xff] 0.0
    %25 = vst [vmem:[#allocation2 + $0x38] sm:$0xff] 0.0
    %26 = vst [vmem:[#allocation2 + $0x40] sm:$0xff] 0.0
    %27 = vst [vmem:[#allocation2 + $0x48] sm:$0xff] 0.0
    %28 = vst [vmem:[#allocation2 + $0x50] sm:$0xff] 0.0
    %29 = vst [vmem:[#allocation2 + $0x58] sm:$0xff] 0.0
    %30 = vst [vmem:[#allocation2 + $0x60] sm:$0xff] 0.0
    %31 = vst [vmem:[#allocation2 + $0x68] sm:$0xff] 0.0
    %32 = vst [vmem:[#allocation2 + $0x70] sm:$0xff] 0.0
    %33 = vst [vmem:[#allocation2 + $0x78] sm:$0xff] 0.0
  $region17: #{rnn_forward.3} parent=0 // pred_fallthru
    _
  %v34 = vld [vmem:[#allocation2] sm:$0xff]
  %v35 = vld [vmem:[#allocation2 + $0x8] sm:$0xff]
  %v36 = vld [vmem:[#allocation2 + $0x10] sm:$0xff]
  %v37 = vld [vmem:[#allocation2 + $0x18] sm:$0xff]
  %v38 = vld [vmem:[#allocation2 + $0x20] sm:$0xff]
  %v39 = vld [vmem:[#allocation2 + $0x28] sm:$0xff]
  %v40 = vld [vmem:[#allocation2 + $0x30] sm:$0xff]
  %v41 = vld [vmem:[#allocation2 + $0x38] sm:$0xff]
  %v42 = vld [vmem:[#allocation2 + $0x40] sm:$0xff]
  %v43 = vld [vmem:[#allocation2 + $0x48] sm:$0xff]
  %v44 = vld [vmem:[#allocation2 + $0x50] sm:$0xff]
  %v45 = vld [vmem:[#allocation2 + $0x58] sm:$0xff]
  %v46 = vld [vmem:[#allocation2 + $0x60] sm:$0xff]
  %v47 = vld [vmem:[#allocation2 + $0x68] sm:$0xff]
  %v48 = vld [vmem:[#allocation2 + $0x70] sm:$0xff]
  %v49 = vld [vmem:[#allocation2 + $0x78] sm:$0xff]
  %v50 = vld [vmem:[%s0] sm:$0xff]
  %v51 = vld [vmem:[%s0 + $0x8] sm:$0xff]
  %v52 = vld [vmem:[%s0 + $0x10] sm:$0xff]
  %v53 = vld [vmem:[%s0 + $0x18] sm:$0xff]
  %v54 = vld [vmem:[%s0 + $0x20] sm:$0xff]
  %v55 = vld [vmem:[%s0 + $0x28] sm:$0xff]
  %v56 = vld [vmem:[%s0 + $0x30] sm:$0xff]
  %v57 = vld [vmem:[%s0 + $0x38] sm:$0xff]
  %v58 = vld [vmem:[%s1] sm:$0xff]
  %v59 = vld [vmem:[%s1 + $0x8] sm:$0xff]
  %v60 = vld [vmem:[%s1 + $0x10] sm:$0xff]
  %v61 = vld [vmem:[%s1 + $0x18] sm:$0xff]
  %v62 = vld [vmem:[%s1 + $0x20] sm:$0xff]
  %v63 = vld [vmem:[%s1 + $0x28] sm:$0xff]
  %v64 = vld [vmem:[%s1 + $0x30] sm:$0xff]
  %v65 = vld [vmem:[%s1 + $0x38] sm:$0xff]
  %v66 = vld [vmem:[%s1 + $0x40] sm:$0xff]
  %v67 = vld [vmem:[%s1 + $0x48] sm:$0xff]
  %v68 = vld [vmem:[%s1 + $0x50] sm:$0xff]
  %v69 = vld [vmem:[%s1 + $0x58] sm:$0xff]
  %v70 = vld [vmem:[%s1 + $0x60] sm:$0xff]
  %v71 = vld [vmem:[%s1 + $0x68] sm:$0xff]
  %v72 = vld [vmem:[%s1 + $0x70] sm:$0xff]
  %v73 = vld [vmem:[%s1 + $0x78] sm:$0xff]
  %v74 = vld [vmem:[%s1 + $0x80] sm:$0xff]
  %v75 = vld [vmem:[%s1 + $0x88] sm:$0xff]
  %v76 = vld [vmem:[%s1 + $0x90] sm:$0xff]
  %v77 = vld [vmem:[%s1 + $0x98] sm:$0xff]
  %v78 = vld [vmem:[%s1 + $0xa0] sm:$0xff]
  %v79 = vld [vmem:[%s1 + $0xa8] sm:$0xff]
  %v80 = vld [vmem:[%s1 + $0xb0] sm:$0xff]
  %v81 = vld [vmem:[%s1 + $0xb8] sm:$0xff]
  %v82 = vld [vmem:[%s1 + $0xc0] sm:$0xff]
  %v83 = vld [vmem:[%s1 + $0xc8] sm:$0xff]
  %v84 = vld [vmem:[%s1 + $0xd0] sm:$0xff]
  %v85 = vld [vmem:[%s1 + $0xd8] sm:$0xff]
  %v86 = vld [vmem:[%s1 + $0xe0] sm:$0xff]
  %v87 = vld [vmem:[%s1 + $0xe8] sm:$0xff]
  %v88 = vld [vmem:[%s1 + $0xf0] sm:$0xff]
  %v89 = vld [vmem:[%s1 + $0xf8] sm:$0xff]
  %v90 = vld [vmem:[%s1 + $0x100] sm:$0xff]
  %v91 = vld [vmem:[%s1 + $0x108] sm:$0xff]
  %v92 = vld [vmem:[%s1 + $0x110] sm:$0xff]
  %v93 = vld [vmem:[%s1 + $0x118] sm:$0xff]
  %v94 = vld [vmem:[%s1 + $0x120] sm:$0xff]
  %v95 = vld [vmem:[%s1 + $0x128] sm:$0xff]
  %v96 = vld [vmem:[%s1 + $0x130] sm:$0xff]
  %v97 = vld [vmem:[%s1 + $0x138] sm:$0xff]
  %v98 = vld [vmem:[%s1 + $0x140] sm:$0xff]
  %v99 = vld [vmem:[%s1 + $0x148] sm:$0xff]
  %v100 = vld [vmem:[%s1 + $0x150] sm:$0xff]
  %v101 = vld [vmem:[%s1 + $0x158] sm:$0xff]
  %v102 = vld [vmem:[%s1 + $0x160] sm:$0xff]
  %v103 = vld [vmem:[%s1 + $0x168] sm:$0xff]
  %v104 = vld [vmem:[%s1 + $0x170] sm:$0xff]
  %v105 = vld [vmem:[%s1 + $0x178] sm:$0xff]
  %v106 = vld [vmem:[%s1 + $0x180] sm:$0xff]
  %v107 = vld [vmem:[%s1 + $0x188] sm:$0xff]
  %v108 = vld [vmem:[%s1 + $0x190] sm:$0xff]
  %v109 = vld [vmem:[%s1 + $0x198] sm:$0xff]
  %v110 = vld [vmem:[%s1 + $0x1a0] sm:$0xff]
  %v111 = vld [vmem:[%s1 + $0x1a8] sm:$0xff]
  %v112 = vld [vmem:[%s1 + $0x1b0] sm:$0xff]
  %v113 = vld [vmem:[%s1 + $0x1b8] sm:$0xff]
  %v114 = vld [vmem:[%s1 + $0x1c0] sm:$0xff]
  %v115 = vld [vmem:[%s1 + $0x1c8] sm:$0xff]
  %v116 = vld [vmem:[%s1 + $0x1d0] sm:$0xff]
  %v117 = vld [vmem:[%s1 + $0x1d8] sm:$0xff]
  %v118 = vld [vmem:[%s1 + $0x1e0] sm:$0xff]
  %v119 = vld [vmem:[%s1 + $0x1e8] sm:$0xff]
  %v120 = vld [vmem:[%s1 + $0x1f0] sm:$0xff]
  %v121 = vld [vmem:[%s1 + $0x1f8] sm:$0xff]
  %v122 = vld [vmem:[%s1 + $0x200] sm:$0xff]
  %v123 = vld [vmem:[%s1 + $0x208] sm:$0xff]
  %v124 = vld [vmem:[%s1 + $0x210] sm:$0xff]
  %v125 = vld [vmem:[%s1 + $0x218] sm:$0xff]
  %v126 = vld [vmem:[%s1 + $0x220] sm:$0xff]
  %v127 = vld [vmem:[%s1 + $0x228] sm:$0xff]
  %v128 = vld [vmem:[%s1 + $0x230] sm:$0xff]
  %v129 = vld [vmem:[%s1 + $0x238] sm:$0xff]
  %v130 = vld [vmem:[%s1 + $0x240] sm:$0xff]
  %v131 = vld [vmem:[%s1 + $0x248] sm:$0xff]
  %v132 = vld [vmem:[%s1 + $0x250] sm:$0xff]
  %v133 = vld [vmem:[%s1 + $0x258] sm:$0xff]
  %v134 = vld [vmem:[%s1 + $0x260] sm:$0xff]
  %v135 = vld [vmem:[%s1 + $0x268] sm:$0xff]
  %v136 = vld [vmem:[%s1 + $0x270] sm:$0xff]
  %v137 = vld [vmem:[%s1 + $0x278] sm:$0xff]
  %v138 = vld [vmem:[%s1 + $0x280] sm:$0xff]
  %v139 = vld [vmem:[%s1 + $0x288] sm:$0xff]
  %v140 = vld [vmem:[%s1 + $0x290] sm:$0xff]
  %v141 = vld [vmem:[%s1 + $0x298] sm:$0xff]
  %v142 = vld [vmem:[%s1 + $0x2a0] sm:$0xff]
  %v143 = vld [vmem:[%s1 + $0x2a8] sm:$0xff]
  %v144 = vld [vmem:[%s1 + $0x2b0] sm:$0xff]
  %v145 = vld [vmem:[%s1 + $0x2b8] sm:$0xff]
  %v146 = vld [vmem:[%s1 + $0x2c0] sm:$0xff]
  %v147 = vld [vmem:[%s1 + $0x2c8] sm:$0xff]
  %v148 = vld [vmem:[%s1 + $0x2d0] sm:$0xff]
  %v149 = vld [vmem:[%s1 + $0x2d8] sm:$0xff]
  %v150 = vld [vmem:[%s1 + $0x2e0] sm:$0xff]
  %v151 = vld [vmem:[%s1 + $0x2e8] sm:$0xff]
  %v152 = vld [vmem:[%s1 + $0x2f0] sm:$0xff]
  %v153 = vld [vmem:[%s1 + $0x2f8] sm:$0xff]
  %v154 = vld [vmem:[%s1 + $0x300] sm:$0xff]
  %v155 = vld [vmem:[%s1 + $0x308] sm:$0xff]
  %v156 = vld [vmem:[%s1 + $0x310] sm:$0xff]
  %v157 = vld [vmem:[%s1 + $0x318] sm:$0xff]
  %v158 = vld [vmem:[%s1 + $0x320] sm:$0xff]
  %v159 = vld [vmem:[%s1 + $0x328] sm:$0xff]
  %v160 = vld [vmem:[%s1 + $0x330] sm:$0xff]
  %v161 = vld [vmem:[%s1 + $0x338] sm:$0xff]
  %v162 = vld [vmem:[%s1 + $0x340] sm:$0xff]
  %v163 = vld [vmem:[%s1 + $0x348] sm:$0xff]
  %v164 = vld [vmem:[%s1 + $0x350] sm:$0xff]
  %v165 = vld [vmem:[%s1 + $0x358] sm:$0xff]
  %v166 = vld [vmem:[%s1 + $0x360] sm:$0xff]
  %v167 = vld [vmem:[%s1 + $0x368] sm:$0xff]
  %v168 = vld [vmem:[%s1 + $0x370] sm:$0xff]
  %v169 = vld [vmem:[%s1 + $0x378] sm:$0xff]
  %v170 = vld [vmem:[%s1 + $0x380] sm:$0xff]
  %v171 = vld [vmem:[%s1 + $0x388] sm:$0xff]
  %v172 = vld [vmem:[%s1 + $0x390] sm:$0xff]
  %v173 = vld [vmem:[%s1 + $0x398] sm:$0xff]
  %v174 = vld [vmem:[%s1 + $0x3a0] sm:$0xff]
  %v175 = vld [vmem:[%s1 + $0x3a8] sm:$0xff]
  %v176 = vld [vmem:[%s1 + $0x3b0] sm:$0xff]
  %v177 = vld [vmem:[%s1 + $0x3b8] sm:$0xff]
  %v178 = vld [vmem:[%s1 + $0x3c0] sm:$0xff]
  %v179 = vld [vmem:[%s1 + $0x3c8] sm:$0xff]
  %v180 = vld [vmem:[%s1 + $0x3d0] sm:$0xff]
  %v181 = vld [vmem:[%s1 + $0x3d8] sm:$0xff]
  %v182 = vld [vmem:[%s1 + $0x3e0] sm:$0xff]
  %v183 = vld [vmem:[%s1 + $0x3e8] sm:$0xff]
  %v184 = vld [vmem:[%s1 + $0x3f0] sm:$0xff]
  %v185 = vld [vmem:[%s1 + $0x3f8] sm:$0xff]
  %186 = vmatprep.subr.mxu0 %v59
  %187 = vmatpush1.msra.mxu0 %v58
  %188 = vmatprep.subr.mxu0 %v63
  %189 = vmatpush1.msra.mxu0 %v62
  %190 = vmatprep.subr.mxu0 %v67
  %191 = vmatpush1.msra.mxu0 %v66
  %192 = vmatprep.subr.mxu0 %v71
  %193 = vmatpush1.msra.mxu0 %v70
  %194 = vmatprep.subr.mxu0 %v75
  %195 = vmatpush1.msra.mxu0 %v74
  %196 = vmatprep.subr.mxu0 %v79
  %197 = vmatpush1.msra.mxu0 %v78
  %198 = vmatprep.subr.mxu0 %v83
  %199 = vmatpush1.msra.mxu0 %v82
  %200 = vmatprep.subr.mxu0 %v87
  %201 = vmatpush1.msra.mxu0 %v86
  %202 = vmatprep.subr.mxu0 %v91
  %203 = vmatpush1.msra.mxu0 %v90
  %204 = vmatprep.subr.mxu0 %v95
  %205 = vmatpush1.msra.mxu0 %v94
  %206 = vmatprep.subr.mxu0 %v99
  %207 = vmatpush1.msra.mxu0 %v98
  %208 = vmatprep.subr.mxu0 %v103
  %209 = vmatpush1.msra.mxu0 %v102
  %210 = vmatprep.subr.mxu0 %v107
  %211 = vmatpush1.msra.mxu0 %v106
  %212 = vmatprep.subr.mxu0 %v111
  %213 = vmatpush1.msra.mxu0 %v110
  %214 = vmatprep.subr.mxu0 %v115
  %215 = vmatpush1.msra.mxu0 %v114
  %216 = vmatprep.subr.mxu0 %v119
  %217 = vmatpush1.msra.mxu0 %v118
  %218 = vmatprep.subr.mxu0 %v123
  %219 = vmatpush1.msra.mxu0 %v122
  %220 = vmatprep.subr.mxu0 %v127
  %221 = vmatpush1.msra.mxu0 %v126
  %222 = vmatprep.subr.mxu0 %v131
  %223 = vmatpush1.msra.mxu0 %v130
  %224 = vmatprep.subr.mxu0 %v135
  %225 = vmatpush1.msra.mxu0 %v134
  %226 = vmatprep.subr.mxu0 %v139
  %227 = vmatpush1.msra.mxu0 %v138
  %228 = vmatprep.subr.mxu0 %v143
  %229 = vmatpush1.msra.mxu0 %v142
  %230 = vmatprep.subr.mxu0 %v147
  %231 = vmatpush1.msra.mxu0 %v146
  %232 = vmatprep.subr.mxu0 %v151
  %233 = vmatpush1.msra.mxu0 %v150
  %234 = vmatprep.subr.mxu0 %v155
  %235 = vmatpush1.msra.mxu0 %v154
  %236 = vmatprep.subr.mxu0 %v159
  %237 = vmatpush1.msra.mxu0 %v158
  %238 = vmatprep.subr.mxu0 %v163
  %239 = vmatpush1.msra.mxu0 %v162
  %240 = vmatprep.subr.mxu0 %v167
  %241 = vmatpush1.msra.mxu0 %v166
  %242 = vmatprep.subr.mxu0 %v171
  %243 = vmatpush1.msra.mxu0 %v170
  %244 = vmatprep.subr.mxu0 %v175
  %245 = vmatpush1.msra.mxu0 %v174
  %246 = vmatprep.subr.mxu0 %v179
  %247 = vmatpush1.msra.mxu0 %v178
  %248 = vmatprep.subr.mxu0 %v183
  %249 = vmatpush1.msra.mxu0 %v182
  %250 = vmatprep.mubr.f32.mxu0 %v51
  %251 = vmatmul.mubr.f32.gmra.mrb[0].mxu0 %v50
  %v252 = vpop.f32.mrb[0].mxu0
  %v253 = vadd.f32 0.0, %v252
  %v254 = vpop.f32.mrb[0].mxu0
  %v255 = vadd.f32 0.0, %v254
  %256 = vmatprep.mubr.f32.mxu0 %v53
  %257 = vmatmul.mubr.f32.gmra.mrb[0].mxu0 %v52
  %v258 = vpop.f32.mrb[0].mxu0
  %v259 = vadd.f32 0.0, %v258
  %v260 = vpop.f32.mrb[0].mxu0
  %v261 = vadd.f32 0.0, %v260
  %262 = vmatprep.mubr.f32.mxu0 %v55
  %263 = vmatmul.mubr.f32.gmra.mrb[0].mxu0 %v54
  %v264 = vpop.f32.mrb[0].mxu0
  %v265 = vadd.f32 0.0, %v264
  %v266 = vpop.f32.mrb[0].mxu0
  %v267 = vadd.f32 0.0, %v266
  %268 = vmatprep.mubr.f32.mxu0 %v57
  %269 = vmatmul.mubr.f32.gmra.mrb[0].mxu0 %v56
  %v270 = vpop.f32.mrb[0].mxu0
  %v271 = vadd.f32 0.0, %v270
  %v272 = vpop.f32.mrb[0].mxu0
  %v273 = vadd.f32 0.0, %v272
  %274 = vdwg.mxu0
  %275 = vmatprep.subr.mxu0 %v61
  %276 = vmatpush1.msra.mxu0 %v60
  %277 = vmatprep.subr.mxu0 %v65
  %278 = vmatpush1.msra.mxu0 %v64
  %279 = vmatprep.subr.mxu0 %v69
  %280 = vmatpush1.msra.mxu0 %v68
  %281 = vmatprep.subr.mxu0 %v73
  %282 = vmatpush1.msra.mxu0 %v72
  %283 = vmatprep.subr.mxu0 %v77
  %284 = vmatpush1.msra.mxu0 %v76
  %285 = vmatprep.subr.mxu0 %v81
  %286 = vmatpush1.msra.mxu0 %v80
  %287 = vmatprep.subr.mxu0 %v85
  %288 = vmatpush1.msra.mxu0 %v84
  %289 = vmatprep.subr.mxu0 %v89
  %290 = vmatpush1.msra.mxu0 %v88
  %291 = vmatprep.subr.mxu0 %v93
  %292 = vmatpush1.msra.mxu0 %v92
  %293 = vmatprep.subr.mxu0 %v97
  %294 = vmatpush1.msra.mxu0 %v96
  %295 = vmatprep.subr.mxu0 %v101
  %296 = vmatpush1.msra.mxu0 %v100
  %297 = vmatprep.subr.mxu0 %v105
  %298 = vmatpush1.msra.mxu0 %v104
  %299 = vmatprep.subr.mxu0 %v109
  %300 = vmatpush1.msra.mxu0 %v108
  %301 = vmatprep.subr.mxu0 %v113
  %302 = vmatpush1.msra.mxu0 %v112
  %303 = vmatprep.subr.mxu0 %v117
  %304 = vmatpush1.msra.mxu0 %v116
  %305 = vmatprep.subr.mxu0 %v121
  %306 = vmatpush1.msra.mxu0 %v120
  %307 = vmatprep.subr.mxu0 %v125
  %308 = vmatpush1.msra.mxu0 %v124
  %309 = vmatprep.subr.mxu0 %v129
  %310 = vmatpush1.msra.mxu0 %v128
  %311 = vmatprep.subr.mxu0 %v133
  %312 = vmatpush1.msra.mxu0 %v132
  %313 = vmatprep.subr.mxu0 %v137
  %314 = vmatpush1.msra.mxu0 %v136
  %315 = vmatprep.subr.mxu0 %v141
  %316 = vmatpush1.msra.mxu0 %v140
  %317 = vmatprep.subr.mxu0 %v145
  %318 = vmatpush1.msra.mxu0 %v144
  %319 = vmatprep.subr.mxu0 %v149
  %320 = vmatpush1.msra.mxu0 %v148
  %321 = vmatprep.subr.mxu0 %v153
  %322 = vmatpush1.msra.mxu0 %v152
  %323 = vmatprep.subr.mxu0 %v157
  %324 = vmatpush1.msra.mxu0 %v156
  %325 = vmatprep.subr.mxu0 %v161
  %326 = vmatpush1.msra.mxu0 %v160
  %327 = vmatprep.subr.mxu0 %v165
  %328 = vmatpush1.msra.mxu0 %v164
  %329 = vmatprep.subr.mxu0 %v169
  %330 = vmatpush1.msra.mxu0 %v168
  %331 = vmatprep.subr.mxu0 %v173
  %332 = vmatpush1.msra.mxu0 %v172
  %333 = vmatprep.subr.mxu0 %v177
  %334 = vmatpush1.msra.mxu0 %v176
  %335 = vmatprep.subr.mxu0 %v181
  %336 = vmatpush1.msra.mxu0 %v180
  %337 = vmatprep.subr.mxu0 %v185
  %338 = vmatpush1.msra.mxu0 %v184
  %339 = vmatprep.mubr.f32.mxu0 %v51
  %340 = vmatmul.mubr.f32.gmra.mrb[0].mxu0 %v50
  %v341 = vpop.f32.mrb[0].mxu0
  %v342 = vadd.f32 0.0, %v341
  %v343 = vpop.f32.mrb[0].mxu0
  %v344 = vadd.f32 0.0, %v343
  %345 = vmatprep.mubr.f32.mxu0 %v53
  %346 = vmatmul.mubr.f32.gmra.mrb[0].mxu0 %v52
  %v347 = vpop.f32.mrb[0].mxu0
  %v348 = vadd.f32 0.0, %v347
  %v349 = vpop.f32.mrb[0].mxu0
  %v350 = vadd.f32 0.0, %v349
  %351 = vmatprep.mubr.f32.mxu0 %v55
  %352 = vmatmul.mubr.f32.gmra.mrb[0].mxu0 %v54
  %v353 = vpop.f32.mrb[0].mxu0
  %v354 = vadd.f32 0.0, %v353
  %v355 = vpop.f32.mrb[0].mxu0
  %v356 = vadd.f32 0.0, %v355
  %357 = vmatprep.mubr.f32.mxu0 %v57
  %358 = vmatmul.mubr.f32.gmra.mrb[0].mxu0 %v56
  %v359 = vpop.f32.mrb[0].mxu0
  %v360 = vadd.f32 0.0, %v359
  %v361 = vpop.f32.mrb[0].mxu0
  %v362 = vadd.f32 0.0, %v361
  %363 = vdwg.mxu0
  %v364 = vadd.f32 %v34, %v253
  %v365 = vadd.f32 %v35, %v255
  %v366 = vadd.f32 %v36, %v342
  %v367 = vadd.f32 %v37, %v344
  %v368 = vadd.f32 %v38, %v259
  %v369 = vadd.f32 %v39, %v261
  %v370 = vadd.f32 %v40, %v348
  %v371 = vadd.f32 %v41, %v350
  %v372 = vadd.f32 %v42, %v265
  %v373 = vadd.f32 %v43, %v267
  %v374 = vadd.f32 %v44, %v354
  %v375 = vadd.f32 %v45, %v356
  %v376 = vadd.f32 %v46, %v271
  %v377 = vadd.f32 %v47, %v273
  %v378 = vadd.f32 %v48, %v360
  %v379 = vadd.f32 %v49, %v362
  %380 = vst [vmem:[#allocation2] sm:$0xff] %v364
  %381 = vst [vmem:[#allocation2 + $0x8] sm:$0xff] %v365
  %382 = vst [vmem:[#allocation2 + $0x10] sm:$0xff] %v366
  %383 = vst [vmem:[#allocation2 + $0x18] sm:$0xff] %v367
  %384 = vst [vmem:[#allocation2 + $0x20] sm:$0xff] %v368
  %385 = vst [vmem:[#allocation2 + $0x28] sm:$0xff] %v369
  %386 = vst [vmem:[#allocation2 + $0x30] sm:$0xff] %v370
  %387 = vst [vmem:[#allocation2 + $0x38] sm:$0xff] %v371
  %388 = vst [vmem:[#allocation2 + $0x40] sm:$0xff] %v372
  %389 = vst [vmem:[#allocation2 + $0x48] sm:$0xff] %v373
  %390 = vst [vmem:[#allocation2 + $0x50] sm:$0xff] %v374
  %391 = vst [vmem:[#allocation2 + $0x58] sm:$0xff] %v375
  %392 = vst [vmem:[#allocation2 + $0x60] sm:$0xff] %v376
  %393 = vst [vmem:[#allocation2 + $0x68] sm:$0xff] %v377
  %394 = vst [vmem:[#allocation2 + $0x70] sm:$0xff] %v378
  %395 = vst [vmem:[#allocation2 + $0x78] sm:$0xff] %v379
  // Predicated region
  $region18: #{rnn_forward.3} parent=0 // pred_check
    %p396 = pneg %p14
  $region19: #{rnn_forward.3} parent=0 // pred_check_branch
    %398 = sbr.rel (%p396) target = $region21
  $region20: #{rnn_forward.3} parent=0 // pred_region
    %v399 = vld [vmem:[#allocation2] sm:$0xff]
    %v400 = vld [vmem:[#allocation2 + $0x8] sm:$0xff]
    %v401 = vld [vmem:[#allocation2 + $0x10] sm:$0xff]
    %v402 = vld [vmem:[#allocation2 + $0x18] sm:$0xff]
    %v403 = vld [vmem:[#allocation2 + $0x20] sm:$0xff]
    %v404 = vld [vmem:[#allocation2 + $0x28] sm:$0xff]
    %v405 = vld [vmem:[#allocation2 + $0x30] sm:$0xff]
    %v406 = vld [vmem:[#allocation2 + $0x38] sm:$0xff]
    %v407 = vld [vmem:[#allocation2 + $0x40] sm:$0xff]
    %v408 = vld [vmem:[#allocation2 + $0x48] sm:$0xff]
    %v409 = vld [vmem:[#allocation2 + $0x50] sm:$0xff]
    %v410 = vld [vmem:[#allocation2 + $0x58] sm:$0xff]
    %v411 = vld [vmem:[#allocation2 + $0x60] sm:$0xff]
    %v412 = vld [vmem:[#allocation2 + $0x68] sm:$0xff]
    %v413 = vld [vmem:[#allocation2 + $0x70] sm:$0xff]
    %v414 = vld [vmem:[#allocation2 + $0x78] sm:$0xff]
    %v415 = vld [vmem:[%s2] sm:$0xf]
    %v417 = vlaneseq
    %v418 = vshrl.u32 %v417, 7
    %v419 = vsub.s32 0, %v418
    %v420 = vrot.slane %v415, %v419
    %v421 = vlaneseq
    %v422 = vshrl.u32 %v421, 7
    %v423 = vsub.s32 1, %v422
    %v424 = vrot.slane %v415, %v423
    %v425 = vlaneseq
    %v426 = vshrl.u32 %v425, 7
    %v427 = vsub.s32 2, %v426
    %v428 = vrot.slane %v415, %v427
    %v429 = vlaneseq
    %v430 = vshrl.u32 %v429, 7
    %v431 = vsub.s32 3, %v430
    %v432 = vrot.slane %v415, %v431
    %v437 = vadd.f32 %v399, %v420
    %v438 = vadd.f32 %v400, %v424
    %v439 = vadd.f32 %v401, %v428
    %v440 = vadd.f32 %v402, %v432
    %v441 = vadd.f32 %v403, %v420
    %v442 = vadd.f32 %v404, %v424
    %v443 = vadd.f32 %v405, %v428
    %v444 = vadd.f32 %v406, %v432
    %v445 = vadd.f32 %v407, %v420
    %v446 = vadd.f32 %v408, %v424
    %v447 = vadd.f32 %v409, %v428
    %v448 = vadd.f32 %v410, %v432
    %v449 = vadd.f32 %v411, %v420
    %v450 = vadd.f32 %v412, %v424
    %v451 = vadd.f32 %v413, %v428
    %v452 = vadd.f32 %v414, %v432
    %453 = vst [vmem:[%s3] sm:$0xff] %v437
    %454 = vst [vmem:[%s3 + $0x8] sm:$0xff] %v438
    %455 = vst [vmem:[%s3 + $0x10] sm:$0xff] %v439
    %456 = vst [vmem:[%s3 + $0x18] sm:$0xff] %v440
    %457 = vst [vmem:[%s3 + $0x20] sm:$0xff] %v441
    %458 = vst [vmem:[%s3 + $0x28] sm:$0xff] %v442
    %459 = vst [vmem:[%s3 + $0x30] sm:$0xff] %v443
    %460 = vst [vmem:[%s3 + $0x38] sm:$0xff] %v444
    %461 = vst [vmem:[%s3 + $0x40] sm:$0xff] %v445
    %462 = vst [vmem:[%s3 + $0x48] sm:$0xff] %v446
    %463 = vst [vmem:[%s3 + $0x50] sm:$0xff] %v447
    %464 = vst [vmem:[%s3 + $0x58] sm:$0xff] %v448
    %465 = vst [vmem:[%s3 + $0x60] sm:$0xff] %v449
    %466 = vst [vmem:[%s3 + $0x68] sm:$0xff] %v450
    %467 = vst [vmem:[%s3 + $0x70] sm:$0xff] %v451
    %468 = vst [vmem:[%s3 + $0x78] sm:$0xff] %v452
  $region21: #{rnn_forward.3} parent=0 // pred_fallthru
    _
  // Predicated region
  $region22: #{rnn_forward.3} parent=0 // pred_check
    _
  $region23: #{rnn_forward.3} parent=0 // pred_check_branch
    %470 = sbr.rel (0) target = $region25
  $region24: #{rnn_forward.3} parent=0 // pred_region
    _
  $region25: #{rnn_forward.3} parent=0 // pred_fallthru
    _
  // Predicated region
  $region26: #{rnn_forward.3} parent=0 // pred_check
    _
  $region27: #{rnn_forward.3} parent=0 // pred_check_branch
    %472 = sbr.rel (0) target = $region29
  $region28: #{rnn_forward.3} parent=0 // pred_region
    _
  $region29: #{rnn_forward.3} parent=0 // pred_fallthru
    _

// kernel: rnn_forward.4
$region0: #{rnn_forward.4}
  #allocation0 [shape = 'u32[]', space=smem, size = 0x4, offset = 0x4, fixed_abs, tag = 'smem constant byte address 0x4 - core index']
  #allocation1 [shape = 'u32[144,128]{1,0:T(1,128)}', space=vmem, size = 0x12000, scoped, tag = 'internal scratch']
  #allocation2 [shape = 'f32[8,128]{1,0:T(8,128)}', space=vmem, size = 0x1000, scoped, tag = 'scratch operand']
  #allocation3 [shape = 'f32[8,128]{1,0:T(8,128)}', space=vmem, size = 0x1000, scoped, tag = 'scratch operand']
  %s0 = inlined_call_operand.vmem [shape: f32[4,8,512], index: 0, kind: input, shape index: {}]
  %s1 = inlined_call_operand.vmem [shape: f32[128,512], index: 1, kind: input, shape index: {}]
  %s2 = inlined_call_operand.vmem [shape: f32[8,128], index: 2, kind: input, shape index: {}]
  %s3 = inlined_call_operand.vmem [shape: f32[8,128], index: 3, kind: input, shape index: {}]
  %s4 = inlined_call_operand.vmem [shape: f32[4,8,128], index: 4, kind: output, shape index: {0}]
  %s5 = inlined_call_operand.vmem [shape: f32[8,128], index: 5, kind: output, shape index: {1}]
  %s6 = inlined_call_operand.vmem [shape: f32[8,128], index: 6, kind: output, shape index: {2}]
  %7 = xla_tuple %s4, %s5, %s6
  %s8 = sld [smem:[#allocation0]]
  $region46: #{rnn_forward.4} parent=0
    _
  %s10 = ssub.s32 1, %s8
  %s11 = scalar_select 0, %s10, %s8
  // Predicated region
  $region2: #{rnn_forward.4} parent=0 // pred_check
    _
  $region3: #{rnn_forward.4} parent=0 // pred_check_branch
    %13 = sbr.rel (0) target = $region5
  $region4: #{rnn_forward.4} parent=0 // pred_region
    _
  $region5: #{rnn_forward.4} parent=0 // pred_fallthru
    _
  // Predicated region
  $region6: #{rnn_forward.4} parent=0 // pred_check
    _
  $region7: #{rnn_forward.4} parent=0 // pred_check_branch
    %15 = sbr.rel (0) target = $region9
  $region8: #{rnn_forward.4} parent=0 // pred_region
    _
  $region9: #{rnn_forward.4} parent=0 // pred_fallthru
    _
  // Predicated region
  $region10: #{rnn_forward.4} parent=0 // pred_check
    _
  $region11: #{rnn_forward.4} parent=0 // pred_check_branch
    %17 = sbr.rel (0) target = $region13
  $region12: #{rnn_forward.4} parent=0 // pred_region
    _
  $region13: #{rnn_forward.4} parent=0 // pred_fallthru
    _
  // Predicated region
  $region14: #{rnn_forward.4} parent=0 // pred_check
    _
  $region15: #{rnn_forward.4} parent=0 // pred_check_branch
    %19 = sbr.rel (0) target = $region17
  $region16: #{rnn_forward.4} parent=0 // pred_region
    _
  $region17: #{rnn_forward.4} parent=0 // pred_fallthru
    _
  %p20 = scmp.eq.s32.totalorder 0, 0
  // Predicated region
  $region18: #{rnn_forward.4} parent=0 // pred_check
    %p21 = pneg %p20
  $region19: #{rnn_forward.4} parent=0 // pred_check_branch
    %23 = sbr.rel (%p21) target = $region21
  $region20: #{rnn_forward.4} parent=0 // pred_region
    %v24 = vld [vmem:[%s2] sm:$0xff]
    %25 = vst [vmem:[#allocation2] sm:$0xff] %v24
    %v26 = vld [vmem:[%s3] sm:$0xff]
    %27 = vst [vmem:[#allocation3] sm:$0xff] %v26
  $region21: #{rnn_forward.4} parent=0 // pred_fallthru
    _
  %v28 = vld [vmem:[#allocation2] sm:$0xff]
  %v29 = vld [vmem:[#allocation3] sm:$0xff]
  %v30 = vld [vmem:[%s0] sm:$0xff]
  %v31 = vld [vmem:[%s0 + $0x8] sm:$0xff]
  %v32 = vld [vmem:[%s0 + $0x10] sm:$0xff]
  %v33 = vld [vmem:[%s0 + $0x18] sm:$0xff]
  %v34 = vld [vmem:[%s1] sm:$0xff]
  %v35 = vld [vmem:[%s1 + $0x8] sm:$0xff]
  %v36 = vld [vmem:[%s1 + $0x10] sm:$0xff]
  %v37 = vld [vmem:[%s1 + $0x18] sm:$0xff]
  %v38 = vld [vmem:[%s1 + $0x20] sm:$0xff]
  %v39 = vld [vmem:[%s1 + $0x28] sm:$0xff]
  %v40 = vld [vmem:[%s1 + $0x30] sm:$0xff]
  %v41 = vld [vmem:[%s1 + $0x38] sm:$0xff]
  %v42 = vld [vmem:[%s1 + $0x40] sm:$0xff]
  %v43 = vld [vmem:[%s1 + $0x48] sm:$0xff]
  %v44 = vld [vmem:[%s1 + $0x50] sm:$0xff]
  %v45 = vld [vmem:[%s1 + $0x58] sm:$0xff]
  %v46 = vld [vmem:[%s1 + $0x60] sm:$0xff]
  %v47 = vld [vmem:[%s1 + $0x68] sm:$0xff]
  %v48 = vld [vmem:[%s1 + $0x70] sm:$0xff]
  %v49 = vld [vmem:[%s1 + $0x78] sm:$0xff]
  %v50 = vld [vmem:[%s1 + $0x80] sm:$0xff]
  %v51 = vld [vmem:[%s1 + $0x88] sm:$0xff]
  %v52 = vld [vmem:[%s1 + $0x90] sm:$0xff]
  %v53 = vld [vmem:[%s1 + $0x98] sm:$0xff]
  %v54 = vld [vmem:[%s1 + $0xa0] sm:$0xff]
  %v55 = vld [vmem:[%s1 + $0xa8] sm:$0xff]
  %v56 = vld [vmem:[%s1 + $0xb0] sm:$0xff]
  %v57 = vld [vmem:[%s1 + $0xb8] sm:$0xff]
  %v58 = vld [vmem:[%s1 + $0xc0] sm:$0xff]
  %v59 = vld [vmem:[%s1 + $0xc8] sm:$0xff]
  %v60 = vld [vmem:[%s1 + $0xd0] sm:$0xff]
  %v61 = vld [vmem:[%s1 + $0xd8] sm:$0xff]
  %v62 = vld [vmem:[%s1 + $0xe0] sm:$0xff]
  %v63 = vld [vmem:[%s1 + $0xe8] sm:$0xff]
  %v64 = vld [vmem:[%s1 + $0xf0] sm:$0xff]
  %v65 = vld [vmem:[%s1 + $0xf8] sm:$0xff]
  %v66 = vld [vmem:[%s1 + $0x100] sm:$0xff]
  %v67 = vld [vmem:[%s1 + $0x108] sm:$0xff]
  %v68 = vld [vmem:[%s1 + $0x110] sm:$0xff]
  %v69 = vld [vmem:[%s1 + $0x118] sm:$0xff]
  %v70 = vld [vmem:[%s1 + $0x120] sm:$0xff]
  %v71 = vld [vmem:[%s1 + $0x128] sm:$0xff]
  %v72 = vld [vmem:[%s1 + $0x130] sm:$0xff]
  %v73 = vld [vmem:[%s1 + $0x138] sm:$0xff]
  %v74 = vld [vmem:[%s1 + $0x140] sm:$0xff]
  %v75 = vld [vmem:[%s1 + $0x148] sm:$0xff]
  %v76 = vld [vmem:[%s1 + $0x150] sm:$0xff]
  %v77 = vld [vmem:[%s1 + $0x158] sm:$0xff]
  %v78 = vld [vmem:[%s1 + $0x160] sm:$0xff]
  %v79 = vld [vmem:[%s1 + $0x168] sm:$0xff]
  %v80 = vld [vmem:[%s1 + $0x170] sm:$0xff]
  %v81 = vld [vmem:[%s1 + $0x178] sm:$0xff]
  %v82 = vld [vmem:[%s1 + $0x180] sm:$0xff]
  %v83 = vld [vmem:[%s1 + $0x188] sm:$0xff]
  %v84 = vld [vmem:[%s1 + $0x190] sm:$0xff]
  %v85 = vld [vmem:[%s1 + $0x198] sm:$0xff]
  %v86 = vld [vmem:[%s1 + $0x1a0] sm:$0xff]
  %v87 = vld [vmem:[%s1 + $0x1a8] sm:$0xff]
  %v88 = vld [vmem:[%s1 + $0x1b0] sm:$0xff]
  %v89 = vld [vmem:[%s1 + $0x1b8] sm:$0xff]
  %v90 = vld [vmem:[%s1 + $0x1c0] sm:$0xff]
  %v91 = vld [vmem:[%s1 + $0x1c8] sm:$0xff]
  %v92 = vld [vmem:[%s1 + $0x1d0] sm:$0xff]
  %v93 = vld [vmem:[%s1 + $0x1d8] sm:$0xff]
  %v94 = vld [vmem:[%s1 + $0x1e0] sm:$0xff]
  %v95 = vld [vmem:[%s1 + $0x1e8] sm:$0xff]
  %v96 = vld [vmem:[%s1 + $0x1f0] sm:$0xff]
  %v97 = vld [vmem:[%s1 + $0x1f8] sm:$0xff]
  %98 = vmatprep.subr.mxu0 %v35
  %99 = vmatpush1.msra.mxu0 %v34
  %100 = vmatprep.subr.mxu0 %v39
  %101 = vmatpush1.msra.mxu0 %v38
  %102 = vmatprep.subr.mxu0 %v43
  %103 = vmatpush1.msra.mxu0 %v42
  %104 = vmatprep.subr.mxu0 %v47
  %105 = vmatpush1.msra.mxu0 %v46
  %106 = vmatprep.subr.mxu0 %v51
  %107 = vmatpush1.msra.mxu0 %v50
  %108 = vmatprep.subr.mxu0 %v55
  %109 = vmatpush1.msra.mxu0 %v54
  %110 = vmatprep.subr.mxu0 %v59
  %111 = vmatpush1.msra.mxu0 %v58
  %112 = vmatprep.subr.mxu0 %v63
  %113 = vmatpush1.msra.mxu0 %v62
  %114 = vmatprep.subr.mxu0 %v67
  %115 = vmatpush1.msra.mxu0 %v66
  %116 = vmatprep.subr.mxu0 %v71
  %117 = vmatpush1.msra.mxu0 %v70
  %118 = vmatprep.subr.mxu0 %v75
  %119 = vmatpush1.msra.mxu0 %v74
  %120 = vmatprep.subr.mxu0 %v79
  %121 = vmatpush1.msra.mxu0 %v78
  %122 = vmatprep.subr.mxu0 %v83
  %123 = vmatpush1.msra.mxu0 %v82
  %124 = vmatprep.subr.mxu0 %v87
  %125 = vmatpush1.msra.mxu0 %v86
  %126 = vmatprep.subr.mxu0 %v91
  %127 = vmatpush1.msra.mxu0 %v90
  %128 = vmatprep.subr.mxu0 %v95
  %129 = vmatpush1.msra.mxu0 %v94
  %130 = vmatprep.subr.mxu0 0.0
  %131 = vmatpush1.msra.mxu0 0.0
  %132 = vmatprep.subr.mxu0 0.0
  %133 = vmatpush1.msra.mxu0 0.0
  %134 = vmatprep.subr.mxu0 0.0
  %135 = vmatpush1.msra.mxu0 0.0
  %136 = vmatprep.subr.mxu0 0.0
  %137 = vmatpush1.msra.mxu0 0.0
  %138 = vmatprep.subr.mxu0 0.0
  %139 = vmatpush1.msra.mxu0 0.0
  %140 = vmatprep.subr.mxu0 0.0
  %141 = vmatpush1.msra.mxu0 0.0
  %142 = vmatprep.subr.mxu0 0.0
  %143 = vmatpush1.msra.mxu0 0.0
  %144 = vmatprep.subr.mxu0 0.0
  %145 = vmatpush1.msra.mxu0 0.0
  %146 = vmatprep.subr.mxu0 0.0
  %147 = vmatpush1.msra.mxu0 0.0
  %148 = vmatprep.subr.mxu0 0.0
  %149 = vmatpush1.msra.mxu0 0.0
  %150 = vmatprep.subr.mxu0 0.0
  %151 = vmatpush1.msra.mxu0 0.0
  %152 = vmatprep.subr.mxu0 0.0
  %153 = vmatpush1.msra.mxu0 0.0
  %154 = vmatprep.subr.mxu0 0.0
  %155 = vmatpush1.msra.mxu0 0.0
  %156 = vmatprep.subr.mxu0 0.0
  %157 = vmatpush1.msra.mxu0 0.0
  %158 = vmatprep.subr.mxu0 0.0
  %159 = vmatpush1.msra.mxu0 0.0
  %160 = vmatprep.subr.mxu0 0.0
  %161 = vmatpush1.msra.mxu0 0.0
  %162 = vmatprep.mubr.f32.mxu0 0.0
  %163 = vmatmul.mubr.f32.gmra.mrb[0].mxu0 %v28
  %v164 = vpop.f32.mrb[0].mxu0
  %v165 = vadd.f32 0.0, %v164
  %v166 = vpop.f32.mrb[0].mxu0
  %v167 = vadd.f32 0.0, %v166
  %168 = vdwg.mxu0
  %169 = vmatprep.subr.mxu0 %v37
  %170 = vmatpush1.msra.mxu0 %v36
  %171 = vmatprep.subr.mxu0 %v41
  %172 = vmatpush1.msra.mxu0 %v40
  %173 = vmatprep.subr.mxu0 %v45
  %174 = vmatpush1.msra.mxu0 %v44
  %175 = vmatprep.subr.mxu0 %v49
  %176 = vmatpush1.msra.mxu0 %v48
  %177 = vmatprep.subr.mxu0 %v53
  %178 = vmatpush1.msra.mxu0 %v52
  %179 = vmatprep.subr.mxu0 %v57
  %180 = vmatpush1.msra.mxu0 %v56
  %181 = vmatprep.subr.mxu0 %v61
  %182 = vmatpush1.msra.mxu0 %v60
  %183 = vmatprep.subr.mxu0 %v65
  %184 = vmatpush1.msra.mxu0 %v64
  %185 = vmatprep.subr.mxu0 %v69
  %186 = vmatpush1.msra.mxu0 %v68
  %187 = vmatprep.subr.mxu0 %v73
  %188 = vmatpush1.msra.mxu0 %v72
  %189 = vmatprep.subr.mxu0 %v77
  %190 = vmatpush1.msra.mxu0 %v76
  %191 = vmatprep.subr.mxu0 %v81
  %192 = vmatpush1.msra.mxu0 %v80
  %193 = vmatprep.subr.mxu0 %v85
  %194 = vmatpush1.msra.mxu0 %v84
  %195 = vmatprep.subr.mxu0 %v89
  %196 = vmatpush1.msra.mxu0 %v88
  %197 = vmatprep.subr.mxu0 %v93
  %198 = vmatpush1.msra.mxu0 %v92
  %199 = vmatprep.subr.mxu0 %v97
  %200 = vmatpush1.msra.mxu0 %v96
  %201 = vmatprep.subr.mxu0 0.0
  %202 = vmatpush1.msra.mxu0 0.0
  %203 = vmatprep.subr.mxu0 0.0
  %204 = vmatpush1.msra.mxu0 0.0
  %205 = vmatprep.subr.mxu0 0.0
  %206 = vmatpush1.msra.mxu0 0.0
  %207 = vmatprep.subr.mxu0 0.0
  %208 = vmatpush1.msra.mxu0 0.0
  %209 = vmatprep.subr.mxu0 0.0
  %210 = vmatpush1.msra.mxu0 0.0
  %211 = vmatprep.subr.mxu0 0.0
  %212 = vmatpush1.msra.mxu0 0.0
  %213 = vmatprep.subr.mxu0 0.0
  %214 = vmatpush1.msra.mxu0 0.0
  %215 = vmatprep.subr.mxu0 0.0
  %216 = vmatpush1.msra.mxu0 0.0
  %217 = vmatprep.subr.mxu0 0.0
  %218 = vmatpush1.msra.mxu0 0.0
  %219 = vmatprep.subr.mxu0 0.0
  %220 = vmatpush1.msra.mxu0 0.0
  %221 = vmatprep.subr.mxu0 0.0
  %222 = vmatpush1.msra.mxu0 0.0
  %223 = vmatprep.subr.mxu0 0.0
  %224 = vmatpush1.msra.mxu0 0.0
  %225 = vmatprep.subr.mxu0 0.0
  %226 = vmatpush1.msra.mxu0 0.0
  %227 = vmatprep.subr.mxu0 0.0
  %228 = vmatpush1.msra.mxu0 0.0
  %229 = vmatprep.subr.mxu0 0.0
  %230 = vmatpush1.msra.mxu0 0.0
  %231 = vmatprep.subr.mxu0 0.0
  %232 = vmatpush1.msra.mxu0 0.0
  %233 = vmatprep.mubr.f32.mxu0 0.0
  %234 = vmatmul.mubr.f32.gmra.mrb[0].mxu0 %v28
  %v235 = vpop.f32.mrb[0].mxu0
  %v236 = vadd.f32 0.0, %v235
  %v237 = vpop.f32.mrb[0].mxu0
  %v238 = vadd.f32 0.0, %v237
  %239 = vdwg.mxu0
  %v240 = vadd.f32 %v30, %v165
  %v241 = vadd.f32 %v31, %v167
  %v242 = vadd.f32 %v32, %v236
  %v243 = vadd.f32 %v33, %v238
  %v244 = vxor.u32 %v240, 2147483648
  %v245 = vxor.u32 %v241, 2147483648
  %v246 = vxor.u32 %v242, 2147483648
  %v247 = vmul.f32 %v244, 1.442695
  %v248 = vpow.pop %v247
  %v249 = vmul.f32 %v245, 1.442695
  %v250 = vpow.pop %v249
  %v251 = vmul.f32 %v246, 1.442695
  %v252 = vpow.pop %v251
  %v253 = vadd.f32 %v248, 1.0
  %v254 = vadd.f32 %v250, 1.0
  %v255 = vadd.f32 %v252, 1.0
  %v256 = vrcp.pop %v253
  %v257 = vmul.f32 1.0, %v256
  %v258 = vrcp.pop %v254
  %v259 = vmul.f32 1.0, %v258
  %v260 = vrcp.pop %v255
  %v261 = vmul.f32 1.0, %v260
  %v262 = vtanh.pop %v243
  %v263 = vmul.f32 %v259, %v29
  %v264 = vmul.f32 %v257, %v262
  %v265 = vadd.f32 %v263, %v264
  %v266 = vtanh.pop %v265
  %v267 = vmul.f32 %v261, %v266
  %268 = vst [vmem:[%s4] sm:$0xff] %v267
  %s269 = scalar_lea.vmem %s0, 32
  %v270 = vld [vmem:[%s269] sm:$0xff]
  %v271 = vld [vmem:[%s269 + $0x8] sm:$0xff]
  %v272 = vld [vmem:[%s269 + $0x10] sm:$0xff]
  %v273 = vld [vmem:[%s269 + $0x18] sm:$0xff]
  %v274 = vld [vmem:[%s1] sm:$0xff]
  %v275 = vld [vmem:[%s1 + $0x8] sm:$0xff]
  %v276 = vld [vmem:[%s1 + $0x10] sm:$0xff]
  %v277 = vld [vmem:[%s1 + $0x18] sm:$0xff]
  %v278 = vld [vmem:[%s1 + $0x20] sm:$0xff]
  %v279 = vld [vmem:[%s1 + $0x28] sm:$0xff]
  %v280 = vld [vmem:[%s1 + $0x30] sm:$0xff]
  %v281 = vld [vmem:[%s1 + $0x38] sm:$0xff]
  %v282 = vld [vmem:[%s1 + $0x40] sm:$0xff]
  %v283 = vld [vmem:[%s1 + $0x48] sm:$0xff]
  %v284 = vld [vmem:[%s1 + $0x50] sm:$0xff]
  %v285 = vld [vmem:[%s1 + $0x58] sm:$0xff]
  %v286 = vld [vmem:[%s1 + $0x60] sm:$0xff]
  %v287 = vld [vmem:[%s1 + $0x68] sm:$0xff]
  %v288 = vld [vmem:[%s1 + $0x70] sm:$0xff]
  %v289 = vld [vmem:[%s1 + $0x78] sm:$0xff]
  %v290 = vld [vmem:[%s1 + $0x80] sm:$0xff]
  %v291 = vld [vmem:[%s1 + $0x88] sm:$0xff]
  %v292 = vld [vmem:[%s1 + $0x90] sm:$0xff]
  %v293 = vld [vmem:[%s1 + $0x98] sm:$0xff]
  %v294 = vld [vmem:[%s1 + $0xa0] sm:$0xff]
  %v295 = vld [vmem:[%s1 + $0xa8] sm:$0xff]
  %v296 = vld [vmem:[%s1 + $0xb0] sm:$0xff]
  %v297 = vld [vmem:[%s1 + $0xb8] sm:$0xff]
  %v298 = vld [vmem:[%s1 + $0xc0] sm:$0xff]
  %v299 = vld [vmem:[%s1 + $0xc8] sm:$0xff]
  %v300 = vld [vmem:[%s1 + $0xd0] sm:$0xff]
  %v301 = vld [vmem:[%s1 + $0xd8] sm:$0xff]
  %v302 = vld [vmem:[%s1 + $0xe0] sm:$0xff]
  %v303 = vld [vmem:[%s1 + $0xe8] sm:$0xff]
  %v304 = vld [vmem:[%s1 + $0xf0] sm:$0xff]
  %v305 = vld [vmem:[%s1 + $0xf8] sm:$0xff]
  %v306 = vld [vmem:[%s1 + $0x100] sm:$0xff]
  %v307 = vld [vmem:[%s1 + $0x108] sm:$0xff]
  %v308 = vld [vmem:[%s1 + $0x110] sm:$0xff]
  %v309 = vld [vmem:[%s1 + $0x118] sm:$0xff]
  %v310 = vld [vmem:[%s1 + $0x120] sm:$0xff]
  %v311 = vld [vmem:[%s1 + $0x128] sm:$0xff]
  %v312 = vld [vmem:[%s1 + $0x130] sm:$0xff]
  %v313 = vld [vmem:[%s1 + $0x138] sm:$0xff]
  %v314 = vld [vmem:[%s1 + $0x140] sm:$0xff]
  %v315 = vld [vmem:[%s1 + $0x148] sm:$0xff]
  %v316 = vld [vmem:[%s1 + $0x150] sm:$0xff]
  %v317 = vld [vmem:[%s1 + $0x158] sm:$0xff]
  %v318 = vld [vmem:[%s1 + $0x160] sm:$0xff]
  %v319 = vld [vmem:[%s1 + $0x168] sm:$0xff]
  %v320 = vld [vmem:[%s1 + $0x170] sm:$0xff]
  %v321 = vld [vmem:[%s1 + $0x178] sm:$0xff]
  %v322 = vld [vmem:[%s1 + $0x180] sm:$0xff]
  %v323 = vld [vmem:[%s1 + $0x188] sm:$0xff]
  %v324 = vld [vmem:[%s1 + $0x190] sm:$0xff]
  %v325 = vld [vmem:[%s1 + $0x198] sm:$0xff]
  %v326 = vld [vmem:[%s1 + $0x1a0] sm:$0xff]
  %v327 = vld [vmem:[%s1 + $0x1a8] sm:$0xff]
  %v328 = vld [vmem:[%s1 + $0x1b0] sm:$0xff]
  %v329 = vld [vmem:[%s1 + $0x1b8] sm:$0xff]
  %v330 = vld [vmem:[%s1 + $0x1c0] sm:$0xff]
  %v331 = vld [vmem:[%s1 + $0x1c8] sm:$0xff]
  %v332 = vld [vmem:[%s1 + $0x1d0] sm:$0xff]
  %v333 = vld [vmem:[%s1 + $0x1d8] sm:$0xff]
  %v334 = vld [vmem:[%s1 + $0x1e0] sm:$0xff]
  %v335 = vld [vmem:[%s1 + $0x1e8] sm:$0xff]
  %v336 = vld [vmem:[%s1 + $0x1f0] sm:$0xff]
  %v337 = vld [vmem:[%s1 + $0x1f8] sm:$0xff]
  %338 = vmatprep.subr.mxu0 %v275
  %339 = vmatpush1.msra.mxu0 %v274
  %340 = vmatprep.subr.mxu0 %v279
  %341 = vmatpush1.msra.mxu0 %v278
  %342 = vmatprep.subr.mxu0 %v283
  %343 = vmatpush1.msra.mxu0 %v282
  %344 = vmatprep.subr.mxu0 %v287
  %345 = vmatpush1.msra.mxu0 %v286
  %346 = vmatprep.subr.mxu0 %v291
  %347 = vmatpush1.msra.mxu0 %v290
  %348 = vmatprep.subr.mxu0 %v295
  %349 = vmatpush1.msra.mxu0 %v294
  %350 = vmatprep.subr.mxu0 %v299
  %351 = vmatpush1.msra.mxu0 %v298
  %352 = vmatprep.subr.mxu0 %v303
  %353 = vmatpush1.msra.mxu0 %v302
  %354 = vmatprep.subr.mxu0 %v307
  %355 = vmatpush1.msra.mxu0 %v306
  %356 = vmatprep.subr.mxu0 %v311
  %357 = vmatpush1.msra.mxu0 %v310
  %358 = vmatprep.subr.mxu0 %v315
  %359 = vmatpush1.msra.mxu0 %v314
  %360 = vmatprep.subr.mxu0 %v319
  %361 = vmatpush1.msra.mxu0 %v318
  %362 = vmatprep.subr.mxu0 %v323
  %363 = vmatpush1.msra.mxu0 %v322
  %364 = vmatprep.subr.mxu0 %v327
  %365 = vmatpush1.msra.mxu0 %v326
  %366 = vmatprep.subr.mxu0 %v331
  %367 = vmatpush1.msra.mxu0 %v330
  %368 = vmatprep.subr.mxu0 %v335
  %369 = vmatpush1.msra.mxu0 %v334
  %370 = vmatprep.subr.mxu0 0.0
  %371 = vmatpush1.msra.mxu0 0.0
  %372 = vmatprep.subr.mxu0 0.0
  %373 = vmatpush1.msra.mxu0 0.0
  %374 = vmatprep.subr.mxu0 0.0
  %375 = vmatpush1.msra.mxu0 0.0
  %376 = vmatprep.subr.mxu0 0.0
  %377 = vmatpush1.msra.mxu0 0.0
  %378 = vmatprep.subr.mxu0 0.0
  %379 = vmatpush1.msra.mxu0 0.0
  %380 = vmatprep.subr.mxu0 0.0
  %381 = vmatpush1.msra.mxu0 0.0
  %382 = vmatprep.subr.mxu0 0.0
  %383 = vmatpush1.msra.mxu0 0.0
  %384 = vmatprep.subr.mxu0 0.0
  %385 = vmatpush1.msra.mxu0 0.0
  %386 = vmatprep.subr.mxu0 0.0
  %387 = vmatpush1.msra.mxu0 0.0
  %388 = vmatprep.subr.mxu0 0.0
  %389 = vmatpush1.msra.mxu0 0.0
  %390 = vmatprep.subr.mxu0 0.0
  %391 = vmatpush1.msra.mxu0 0.0
  %392 = vmatprep.subr.mxu0 0.0
  %393 = vmatpush1.msra.mxu0 0.0
  %394 = vmatprep.subr.mxu0 0.0
  %395 = vmatpush1.msra.mxu0 0.0
  %396 = vmatprep.subr.mxu0 0.0
  %397 = vmatpush1.msra.mxu0 0.0
  %398 = vmatprep.subr.mxu0 0.0
  %399 = vmatpush1.msra.mxu0 0.0
  %400 = vmatprep.subr.mxu0 0.0
  %401 = vmatpush1.msra.mxu0 0.0
  %402 = vmatprep.mubr.f32.mxu0 0.0
  %403 = vmatmul.mubr.f32.gmra.mrb[0].mxu0 %v267
  %v404 = vpop.f32.mrb[0].mxu0
  %v405 = vadd.f32 0.0, %v404
  %v406 = vpop.f32.mrb[0].mxu0
  %v407 = vadd.f32 0.0, %v406
  %408 = vdwg.mxu0
  %409 = vmatprep.subr.mxu0 %v277
  %410 = vmatpush1.msra.mxu0 %v276
  %411 = vmatprep.subr.mxu0 %v281
  %412 = vmatpush1.msra.mxu0 %v280
  %413 = vmatprep.subr.mxu0 %v285
  %414 = vmatpush1.msra.mxu0 %v284
  %415 = vmatprep.subr.mxu0 %v289
  %416 = vmatpush1.msra.mxu0 %v288
  %417 = vmatprep.subr.mxu0 %v293
  %418 = vmatpush1.msra.mxu0 %v292
  %419 = vmatprep.subr.mxu0 %v297
  %420 = vmatpush1.msra.mxu0 %v296
  %421 = vmatprep.subr.mxu0 %v301
  %422 = vmatpush1.msra.mxu0 %v300
  %423 = vmatprep.subr.mxu0 %v305
  %424 = vmatpush1.msra.mxu0 %v304
  %425 = vmatprep.subr.mxu0 %v309
  %426 = vmatpush1.msra.mxu0 %v308
  %427 = vmatprep.subr.mxu0 %v313
  %428 = vmatpush1.msra.mxu0 %v312
  %429 = vmatprep.subr.mxu0 %v317
  %430 = vmatpush1.msra.mxu0 %v316
  %431 = vmatprep.subr.mxu0 %v321
  %432 = vmatpush1.msra.mxu0 %v320
  %433 = vmatprep.subr.mxu0 %v325
  %434 = vmatpush1.msra.mxu0 %v324
  %435 = vmatprep.subr.mxu0 %v329
  %436 = vmatpush1.msra.mxu0 %v328
  %437 = vmatprep.subr.mxu0 %v333
  %438 = vmatpush1.msra.mxu0 %v332
  %439 = vmatprep.subr.mxu0 %v337
  %440 = vmatpush1.msra.mxu0 %v336
  %441 = vmatprep.subr.mxu0 0.0
  %442 = vmatpush1.msra.mxu0 0.0
  %443 = vmatprep.subr.mxu0 0.0
  %444 = vmatpush1.msra.mxu0 0.0
  %445 = vmatprep.subr.mxu0 0.0
  %446 = vmatpush1.msra.mxu0 0.0
  %447 = vmatprep.subr.mxu0 0.0
  %448 = vmatpush1.msra.mxu0 0.0
  %449 = vmatprep.subr.mxu0 0.0
  %450 = vmatpush1.msra.mxu0 0.0
  %451 = vmatprep.subr.mxu0 0.0
  %452 = vmatpush1.msra.mxu0 0.0
  %453 = vmatprep.subr.mxu0 0.0
  %454 = vmatpush1.msra.mxu0 0.0
  %455 = vmatprep.subr.mxu0 0.0
  %456 = vmatpush1.msra.mxu0 0.0
  %457 = vmatprep.subr.mxu0 0.0
  %458 = vmatpush1.msra.mxu0 0.0
  %459 = vmatprep.subr.mxu0 0.0
  %460 = vmatpush1.msra.mxu0 0.0
  %461 = vmatprep.subr.mxu0 0.0
  %462 = vmatpush1.msra.mxu0 0.0
  %463 = vmatprep.subr.mxu0 0.0
  %464 = vmatpush1.msra.mxu0 0.0
  %465 = vmatprep.subr.mxu0 0.0
  %466 = vmatpush1.msra.mxu0 0.0
  %467 = vmatprep.subr.mxu0 0.0
  %468 = vmatpush1.msra.mxu0 0.0
  %469 = vmatprep.subr.mxu0 0.0
  %470 = vmatpush1.msra.mxu0 0.0
  %471 = vmatprep.subr.mxu0 0.0
  %472 = vmatpush1.msra.mxu0 0.0
  %473 = vmatprep.mubr.f32.mxu0 0.0
  %474 = vmatmul.mubr.f32.gmra.mrb[0].mxu0 %v267
  %v475 = vpop.f32.mrb[0].mxu0
  %v476 = vadd.f32 0.0, %v475
  %v477 = vpop.f32.mrb[0].mxu0
  %v478 = vadd.f32 0.0, %v477
  %479 = vdwg.mxu0
  %v480 = vadd.f32 %v270, %v405
  %v481 = vadd.f32 %v271, %v407
  %v482 = vadd.f32 %v272, %v476
  %v483 = vadd.f32 %v273, %v478
  %v484 = vxor.u32 %v480, 2147483648
  %v485 = vxor.u32 %v481, 2147483648
  %v486 = vxor.u32 %v482, 2147483648
  %v487 = vmul.f32 %v484, 1.442695
  %v488 = vpow.pop %v487
  %v489 = vmul.f32 %v485, 1.442695
  %v490 = vpow.pop %v489
  %v491 = vmul.f32 %v486, 1.442695
  %v492 = vpow.pop %v491
  %v493 = vadd.f32 %v488, 1.0
  %v494 = vadd.f32 %v490, 1.0
  %v495 = vadd.f32 %v492, 1.0
  %v496 = vrcp.pop %v493
  %v497 = vmul.f32 1.0, %v496
  %v498 = vrcp.pop %v494
  %v499 = vmul.f32 1.0, %v498
  %v500 = vrcp.pop %v495
  %v501 = vmul.f32 1.0, %v500
  %v502 = vtanh.pop %v483
  %v503 = vmul.f32 %v499, %v265
  %v504 = vmul.f32 %v497, %v502
  %v505 = vadd.f32 %v503, %v504
  %v506 = vtanh.pop %v505
  %v507 = vmul.f32 %v501, %v506
  %s508 = scalar_lea.vmem %s4, 8
  %509 = vst [vmem:[%s508] sm:$0xff] %v507
  %s510 = scalar_lea.vmem %s0, 64
  %v511 = vld [vmem:[%s510] sm:$0xff]
  %v512 = vld [vmem:[%s510 + $0x8] sm:$0xff]
  %v513 = vld [vmem:[%s510 + $0x10] sm:$0xff]
  %v514 = vld [vmem:[%s510 + $0x18] sm:$0xff]
  %v515 = vld [vmem:[%s1] sm:$0xff]
  %v516 = vld [vmem:[%s1 + $0x8] sm:$0xff]
  %v517 = vld [vmem:[%s1 + $0x10] sm:$0xff]
  %v518 = vld [vmem:[%s1 + $0x18] sm:$0xff]
  %v519 = vld [vmem:[%s1 + $0x20] sm:$0xff]
  %v520 = vld [vmem:[%s1 + $0x28] sm:$0xff]
  %v521 = vld [vmem:[%s1 + $0x30] sm:$0xff]
  %v522 = vld [vmem:[%s1 + $0x38] sm:$0xff]
  %v523 = vld [vmem:[%s1 + $0x40] sm:$0xff]
  %v524 = vld [vmem:[%s1 + $0x48] sm:$0xff]
  %v525 = vld [vmem:[%s1 + $0x50] sm:$0xff]
  %v526 = vld [vmem:[%s1 + $0x58] sm:$0xff]
  %v527 = vld [vmem:[%s1 + $0x60] sm:$0xff]
  %v528 = vld [vmem:[%s1 + $0x68] sm:$0xff]
  %v529 = vld [vmem:[%s1 + $0x70] sm:$0xff]
  %v530 = vld [vmem:[%s1 + $0x78] sm:$0xff]
  %v531 = vld [vmem:[%s1 + $0x80] sm:$0xff]
  %v532 = vld [vmem:[%s1 + $0x88] sm:$0xff]
  %v533 = vld [vmem:[%s1 + $0x90] sm:$0xff]
  %v534 = vld [vmem:[%s1 + $0x98] sm:$0xff]
  %v535 = vld [vmem:[%s1 + $0xa0] sm:$0xff]
  %v536 = vld [vmem:[%s1 + $0xa8] sm:$0xff]
  %v537 = vld [vmem:[%s1 + $0xb0] sm:$0xff]
  %v538 = vld [vmem:[%s1 + $0xb8] sm:$0xff]
  %v539 = vld [vmem:[%s1 + $0xc0] sm:$0xff]
  %v540 = vld [vmem:[%s1 + $0xc8] sm:$0xff]
  %v541 = vld [vmem:[%s1 + $0xd0] sm:$0xff]
  %v542 = vld [vmem:[%s1 + $0xd8] sm:$0xff]
  %v543 = vld [vmem:[%s1 + $0xe0] sm:$0xff]
  %v544 = vld [vmem:[%s1 + $0xe8] sm:$0xff]
  %v545 = vld [vmem:[%s1 + $0xf0] sm:$0xff]
  %v546 = vld [vmem:[%s1 + $0xf8] sm:$0xff]
  %v547 = vld [vmem:[%s1 + $0x100] sm:$0xff]
  %v548 = vld [vmem:[%s1 + $0x108] sm:$0xff]
  %v549 = vld [vmem:[%s1 + $0x110] sm:$0xff]
  %v550 = vld [vmem:[%s1 + $0x118] sm:$0xff]
  %v551 = vld [vmem:[%s1 + $0x120] sm:$0xff]
  %v552 = vld [vmem:[%s1 + $0x128] sm:$0xff]
  %v553 = vld [vmem:[%s1 + $0x130] sm:$0xff]
  %v554 = vld [vmem:[%s1 + $0x138] sm:$0xff]
  %v555 = vld [vmem:[%s1 + $0x140] sm:$0xff]
  %v556 = vld [vmem:[%s1 + $0x148] sm:$0xff]
  %v557 = vld [vmem:[%s1 + $0x150] sm:$0xff]
  %v558 = vld [vmem:[%s1 + $0x158] sm:$0xff]
  %v559 = vld [vmem:[%s1 + $0x160] sm:$0xff]
  %v560 = vld [vmem:[%s1 + $0x168] sm:$0xff]
  %v561 = vld [vmem:[%s1 + $0x170] sm:$0xff]
  %v562 = vld [vmem:[%s1 + $0x178] sm:$0xff]
  %v563 = vld [vmem:[%s1 + $0x180] sm:$0xff]
  %v564 = vld [vmem:[%s1 + $0x188] sm:$0xff]
  %v565 = vld [vmem:[%s1 + $0x190] sm:$0xff]
  %v566 = vld [vmem:[%s1 + $0x198] sm:$0xff]
  %v567 = vld [vmem:[%s1 + $0x1a0] sm:$0xff]
  %v568 = vld [vmem:[%s1 + $0x1a8] sm:$0xff]
  %v569 = vld [vmem:[%s1 + $0x1b0] sm:$0xff]
  %v570 = vld [vmem:[%s1 + $0x1b8] sm:$0xff]
  %v571 = vld [vmem:[%s1 + $0x1c0] sm:$0xff]
  %v572 = vld [vmem:[%s1 + $0x1c8] sm:$0xff]
  %v573 = vld [vmem:[%s1 + $0x1d0] sm:$0xff]
  %v574 = vld [vmem:[%s1 + $0x1d8] sm:$0xff]
  %v575 = vld [vmem:[%s1 + $0x1e0] sm:$0xff]
  %v576 = vld [vmem:[%s1 + $0x1e8] sm:$0xff]
  %v577 = vld [vmem:[%s1 + $0x1f0] sm:$0xff]
  %v578 = vld [vmem:[%s1 + $0x1f8] sm:$0xff]
  %579 = vmatprep.subr.mxu0 %v516
  %580 = vmatpush1.msra.mxu0 %v515
  %581 = vmatprep.subr.mxu0 %v520
  %582 = vmatpush1.msra.mxu0 %v519
  %583 = vmatprep.subr.mxu0 %v524
  %584 = vmatpush1.msra.mxu0 %v523
  %585 = vmatprep.subr.mxu0 %v528
  %586 = vmatpush1.msra.mxu0 %v527
  %587 = vmatprep.subr.mxu0 %v532
  %588 = vmatpush1.msra.mxu0 %v531
  %589 = vmatprep.subr.mxu0 %v536
  %590 = vmatpush1.msra.mxu0 %v535
  %591 = vmatprep.subr.mxu0 %v540
  %592 = vmatpush1.msra.mxu0 %v539
  %593 = vmatprep.subr.mxu0 %v544
  %594 = vmatpush1.msra.mxu0 %v543
  %595 = vmatprep.subr.mxu0 %v548
  %596 = vmatpush1.msra.mxu0 %v547
  %597 = vmatprep.subr.mxu0 %v552
  %598 = vmatpush1.msra.mxu0 %v551
  %599 = vmatprep.subr.mxu0 %v556
  %600 = vmatpush1.msra.mxu0 %v555
  %601 = vmatprep.subr.mxu0 %v560
  %602 = vmatpush1.msra.mxu0 %v559
  %603 = vmatprep.subr.mxu0 %v564
  %604 = vmatpush1.msra.mxu0 %v563
  %605 = vmatprep.subr.mxu0 %v568
  %606 = vmatpush1.msra.mxu0 %v567
  %607 = vmatprep.subr.mxu0 %v572
  %608 = vmatpush1.msra.mxu0 %v571
  %609 = vmatprep.subr.mxu0 %v576
  %610 = vmatpush1.msra.mxu0 %v575
  %611 = vmatprep.subr.mxu0 0.0
  %612 = vmatpush1.msra.mxu0 0.0
  %613 = vmatprep.subr.mxu0 0.0
  %614 = vmatpush1.msra.mxu0 0.0
  %615 = vmatprep.subr.mxu0 0.0
  %616 = vmatpush1.msra.mxu0 0.0
  %617 = vmatprep.subr.mxu0 0.0
  %618 = vmatpush1.msra.mxu0 0.0
  %619 = vmatprep.subr.mxu0 0.0
  %620 = vmatpush1.msra.mxu0 0.0
  %621 = vmatprep.subr.mxu0 0.0
  %622 = vmatpush1.msra.mxu0 0.0
  %623 = vmatprep.subr.mxu0 0.0
  %624 = vmatpush1.msra.mxu0 0.0
  %625 = vmatprep.subr.mxu0 0.0
  %626 = vmatpush1.msra.mxu0 0.0
  %627 = vmatprep.subr.mxu0 0.0
  %628 = vmatpush1.msra.mxu0 0.0
  %629 = vmatprep.subr.mxu0 0.0
  %630 = vmatpush1.msra.mxu0 0.0
  %631 = vmatprep.subr.mxu0 0.0
  %632 = vmatpush1.msra.mxu0 0.0
  %633 = vmatprep.subr.mxu0 0.0
  %634 = vmatpush1.msra.mxu0 0.0
  %635 = vmatprep.subr.mxu0 0.0
  %636 = vmatpush1.msra.mxu0 0.0
  %637 = vmatprep.subr.mxu0 0.0
  %638 = vmatpush1.msra.mxu0 0.0
  %639 = vmatprep.subr.mxu0 0.0
  %640 = vmatpush1.msra.mxu0 0.0
  %641 = vmatprep.subr.mxu0 0.0
  %642 = vmatpush1.msra.mxu0 0.0
  %643 = vmatprep.mubr.f32.mxu0 0.0
  %644 = vmatmul.mubr.f32.gmra.mrb[0].mxu0 %v507
  %v645 = vpop.f32.mrb[0].mxu0
  %v646 = vadd.f32 0.0, %v645
  %v647 = vpop.f32.mrb[0].mxu0
  %v648 = vadd.f32 0.0, %v647
  %649 = vdwg.mxu0
  %650 = vmatprep.subr.mxu0 %v518
  %651 = vmatpush1.msra.mxu0 %v517
  %652 = vmatprep.subr.mxu0 %v522
  %653 = vmatpush1.msra.mxu0 %v521
  %654 = vmatprep.subr.mxu0 %v526
  %655 = vmatpush1.msra.mxu0 %v525
  %656 = vmatprep.subr.mxu0 %v530
  %657 = vmatpush1.msra.mxu0 %v529
  %658 = vmatprep.subr.mxu0 %v534
  %659 = vmatpush1.msra.mxu0 %v533
  %660 = vmatprep.subr.mxu0 %v538
  %661 = vmatpush1.msra.mxu0 %v537
  %662 = vmatprep.subr.mxu0 %v542
  %663 = vmatpush1.msra.mxu0 %v541
  %664 = vmatprep.subr.mxu0 %v546
  %665 = vmatpush1.msra.mxu0 %v545
  %666 = vmatprep.subr.mxu0 %v550
  %667 = vmatpush1.msra.mxu0 %v549
  %668 = vmatprep.subr.mxu0 %v554
  %669 = vmatpush1.msra.mxu0 %v553
  %670 = vmatprep.subr.mxu0 %v558
  %671 = vmatpush1.msra.mxu0 %v557
  %672 = vmatprep.subr.mxu0 %v562
  %673 = vmatpush1.msra.mxu0 %v561
  %674 = vmatprep.subr.mxu0 %v566
  %675 = vmatpush1.msra.mxu0 %v565
  %676 = vmatprep.subr.mxu0 %v570
  %677 = vmatpush1.msra.mxu0 %v569
  %678 = vmatprep.subr.mxu0 %v574
  %679 = vmatpush1.msra.mxu0 %v573
  %680 = vmatprep.subr.mxu0 %v578
  %681 = vmatpush1.msra.mxu0 %v577
  %682 = vmatprep.subr.mxu0 0.0
  %683 = vmatpush1.msra.mxu0 0.0
  %684 = vmatprep.subr.mxu0 0.0
  %685 = vmatpush1.msra.mxu0 0.0
  %686 = vmatprep.subr.mxu0 0.0
  %687 = vmatpush1.msra.mxu0 0.0
  %688 = vmatprep.subr.mxu0 0.0
  %689 = vmatpush1.msra.mxu0 0.0
  %690 = vmatprep.subr.mxu0 0.0
  %691 = vmatpush1.msra.mxu0 0.0
  %692 = vmatprep.subr.mxu0 0.0
  %693 = vmatpush1.msra.mxu0 0.0
  %694 = vmatprep.subr.mxu0 0.0
  %695 = vmatpush1.msra.mxu0 0.0
  %696 = vmatprep.subr.mxu0 0.0
  %697 = vmatpush1.msra.mxu0 0.0
  %698 = vmatprep.subr.mxu0 0.0
  %699 = vmatpush1.msra.mxu0 0.0
  %700 = vmatprep.subr.mxu0 0.0
  %701 = vmatpush1.msra.mxu0 0.0
  %702 = vmatprep.subr.mxu0 0.0
  %703 = vmatpush1.msra.mxu0 0.0
  %704 = vmatprep.subr.mxu0 0.0
  %705 = vmatpush1.msra.mxu0 0.0
  %706 = vmatprep.subr.mxu0 0.0
  %707 = vmatpush1.msra.mxu0 0.0
  %708 = vmatprep.subr.mxu0 0.0
  %709 = vmatpush1.msra.mxu0 0.0
  %710 = vmatprep.subr.mxu0 0.0
  %711 = vmatpush1.msra.mxu0 0.0
  %712 = vmatprep.subr.mxu0 0.0
  %713 = vmatpush1.msra.mxu0 0.0
  %714 = vmatprep.mubr.f32.mxu0 0.0
  %715 = vmatmul.mubr.f32.gmra.mrb[0].mxu0 %v507
  %v716 = vpop.f32.mrb[0].mxu0
  %v717 = vadd.f32 0.0, %v716
  %v718 = vpop.f32.mrb[0].mxu0
  %v719 = vadd.f32 0.0, %v718
  %720 = vdwg.mxu0
  %v721 = vadd.f32 %v511, %v646
  %v722 = vadd.f32 %v512, %v648
  %v723 = vadd.f32 %v513, %v717
  %v724 = vadd.f32 %v514, %v719
  %v725 = vxor.u32 %v721, 2147483648
  %v726 = vxor.u32 %v722, 2147483648
  %v727 = vxor.u32 %v723, 2147483648
  %v728 = vmul.f32 %v725, 1.442695
  %v729 = vpow.pop %v728
  %v730 = vmul.f32 %v726, 1.442695
  %v731 = vpow.pop %v730
  %v732 = vmul.f32 %v727, 1.442695
  %v733 = vpow.pop %v732
  %v734 = vadd.f32 %v729, 1.0
  %v735 = vadd.f32 %v731, 1.0
  %v736 = vadd.f32 %v733, 1.0
  %v737 = vrcp.pop %v734
  %v738 = vmul.f32 1.0, %v737
  %v739 = vrcp.pop %v735
  %v740 = vmul.f32 1.0, %v739
  %v741 = vrcp.pop %v736
  %v742 = vmul.f32 1.0, %v741
  %v743 = vtanh.pop %v724
  %v744 = vmul.f32 %v740, %v505
  %v745 = vmul.f32 %v738, %v743
  %v746 = vadd.f32 %v744, %v745
  %v747 = vtanh.pop %v746
  %v748 = vmul.f32 %v742, %v747
  %s749 = scalar_lea.vmem %s4, 16
  %750 = vst [vmem:[%s749] sm:$0xff] %v748
  %s751 = scalar_lea.vmem %s0, 96
  %v752 = vld [vmem:[%s751] sm:$0xff]
  %v753 = vld [vmem:[%s751 + $0x8] sm:$0xff]
  %v754 = vld [vmem:[%s751 + $0x10] sm:$0xff]
  %v755 = vld [vmem:[%s751 + $0x18] sm:$0xff]
  %v756 = vld [vmem:[%s1] sm:$0xff]
  %v757 = vld [vmem:[%s1 + $0x8] sm:$0xff]
  %v758 = vld [vmem:[%s1 + $0x10] sm:$0xff]
  %v759 = vld [vmem:[%s1 + $0x18] sm:$0xff]
  %v760 = vld [vmem:[%s1 + $0x20] sm:$0xff]
  %v761 = vld [vmem:[%s1 + $0x28] sm:$0xff]
  %v762 = vld [vmem:[%s1 + $0x30] sm:$0xff]
  %v763 = vld [vmem:[%s1 + $0x38] sm:$0xff]
  %v764 = vld [vmem:[%s1 + $0x40] sm:$0xff]
  %v765 = vld [vmem:[%s1 + $0x48] sm:$0xff]
  %v766 = vld [vmem:[%s1 + $0x50] sm:$0xff]
  %v767 = vld [vmem:[%s1 + $0x58] sm:$0xff]
  %v768 = vld [vmem:[%s1 + $0x60] sm:$0xff]
  %v769 = vld [vmem:[%s1 + $0x68] sm:$0xff]
  %v770 = vld [vmem:[%s1 + $0x70] sm:$0xff]
  %v771 = vld [vmem:[%s1 + $0x78] sm:$0xff]
  %v772 = vld [vmem:[%s1 + $0x80] sm:$0xff]
  %v773 = vld [vmem:[%s1 + $0x88] sm:$0xff]
  %v774 = vld [vmem:[%s1 + $0x90] sm:$0xff]
  %v775 = vld [vmem:[%s1 + $0x98] sm:$0xff]
  %v776 = vld [vmem:[%s1 + $0xa0] sm:$0xff]
  %v777 = vld [vmem:[%s1 + $0xa8] sm:$0xff]
  %v778 = vld [vmem:[%s1 + $0xb0] sm:$0xff]
  %v779 = vld [vmem:[%s1 + $0xb8] sm:$0xff]
  %v780 = vld [vmem:[%s1 + $0xc0] sm:$0xff]
  %v781 = vld [vmem:[%s1 + $0xc8] sm:$0xff]
  %v782 = vld [vmem:[%s1 + $0xd0] sm:$0xff]
  %v783 = vld [vmem:[%s1 + $0xd8] sm:$0xff]
  %v784 = vld [vmem:[%s1 + $0xe0] sm:$0xff]
  %v785 = vld [vmem:[%s1 + $0xe8] sm:$0xff]
  %v786 = vld [vmem:[%s1 + $0xf0] sm:$0xff]
  %v787 = vld [vmem:[%s1 + $0xf8] sm:$0xff]
  %v788 = vld [vmem:[%s1 + $0x100] sm:$0xff]
  %v789 = vld [vmem:[%s1 + $0x108] sm:$0xff]
  %v790 = vld [vmem:[%s1 + $0x110] sm:$0xff]
  %v791 = vld [vmem:[%s1 + $0x118] sm:$0xff]
  %v792 = vld [vmem:[%s1 + $0x120] sm:$0xff]
  %v793 = vld [vmem:[%s1 + $0x128] sm:$0xff]
  %v794 = vld [vmem:[%s1 + $0x130] sm:$0xff]
  %v795 = vld [vmem:[%s1 + $0x138] sm:$0xff]
  %v796 = vld [vmem:[%s1 + $0x140] sm:$0xff]
  %v797 = vld [vmem:[%s1 + $0x148] sm:$0xff]
  %v798 = vld [vmem:[%s1 + $0x150] sm:$0xff]
  %v799 = vld [vmem:[%s1 + $0x158] sm:$0xff]
  %v800 = vld [vmem:[%s1 + $0x160] sm:$0xff]
  %v801 = vld [vmem:[%s1 + $0x168] sm:$0xff]
  %v802 = vld [vmem:[%s1 + $0x170] sm:$0xff]
  %v803 = vld [vmem:[%s1 + $0x178] sm:$0xff]
  %v804 = vld [vmem:[%s1 + $0x180] sm:$0xff]
  %v805 = vld [vmem:[%s1 + $0x188] sm:$0xff]
  %v806 = vld [vmem:[%s1 + $0x190] sm:$0xff]
  %v807 = vld [vmem:[%s1 + $0x198] sm:$0xff]
  %v808 = vld [vmem:[%s1 + $0x1a0] sm:$0xff]
  %v809 = vld [vmem:[%s1 + $0x1a8] sm:$0xff]
  %v810 = vld [vmem:[%s1 + $0x1b0] sm:$0xff]
  %v811 = vld [vmem:[%s1 + $0x1b8] sm:$0xff]
  %v812 = vld [vmem:[%s1 + $0x1c0] sm:$0xff]
  %v813 = vld [vmem:[%s1 + $0x1c8] sm:$0xff]
  %v814 = vld [vmem:[%s1 + $0x1d0] sm:$0xff]
  %v815 = vld [vmem:[%s1 + $0x1d8] sm:$0xff]
  %v816 = vld [vmem:[%s1 + $0x1e0] sm:$0xff]
  %v817 = vld [vmem:[%s1 + $0x1e8] sm:$0xff]
  %v818 = vld [vmem:[%s1 + $0x1f0] sm:$0xff]
  %v819 = vld [vmem:[%s1 + $0x1f8] sm:$0xff]
  %820 = vmatprep.subr.mxu0 %v757
  %821 = vmatpush1.msra.mxu0 %v756
  %822 = vmatprep.subr.mxu0 %v761
  %823 = vmatpush1.msra.mxu0 %v760
  %824 = vmatprep.subr.mxu0 %v765
  %825 = vmatpush1.msra.mxu0 %v764
  %826 = vmatprep.subr.mxu0 %v769
  %827 = vmatpush1.msra.mxu0 %v768
  %828 = vmatprep.subr.mxu0 %v773
  %829 = vmatpush1.msra.mxu0 %v772
  %830 = vmatprep.subr.mxu0 %v777
  %831 = vmatpush1.msra.mxu0 %v776
  %832 = vmatprep.subr.mxu0 %v781
  %833 = vmatpush1.msra.mxu0 %v780
  %834 = vmatprep.subr.mxu0 %v785
  %835 = vmatpush1.msra.mxu0 %v784
  %836 = vmatprep.subr.mxu0 %v789
  %837 = vmatpush1.msra.mxu0 %v788
  %838 = vmatprep.subr.mxu0 %v793
  %839 = vmatpush1.msra.mxu0 %v792
  %840 = vmatprep.subr.mxu0 %v797
  %841 = vmatpush1.msra.mxu0 %v796
  %842 = vmatprep.subr.mxu0 %v801
  %843 = vmatpush1.msra.mxu0 %v800
  %844 = vmatprep.subr.mxu0 %v805
  %845 = vmatpush1.msra.mxu0 %v804
  %846 = vmatprep.subr.mxu0 %v809
  %847 = vmatpush1.msra.mxu0 %v808
  %848 = vmatprep.subr.mxu0 %v813
  %849 = vmatpush1.msra.mxu0 %v812
  %850 = vmatprep.subr.mxu0 %v817
  %851 = vmatpush1.msra.mxu0 %v816
  %852 = vmatprep.subr.mxu0 0.0
  %853 = vmatpush1.msra.mxu0 0.0
  %854 = vmatprep.subr.mxu0 0.0
  %855 = vmatpush1.msra.mxu0 0.0
  %856 = vmatprep.subr.mxu0 0.0
  %857 = vmatpush1.msra.mxu0 0.0
  %858 = vmatprep.subr.mxu0 0.0
  %859 = vmatpush1.msra.mxu0 0.0
  %860 = vmatprep.subr.mxu0 0.0
  %861 = vmatpush1.msra.mxu0 0.0
  %862 = vmatprep.subr.mxu0 0.0
  %863 = vmatpush1.msra.mxu0 0.0
  %864 = vmatprep.subr.mxu0 0.0
  %865 = vmatpush1.msra.mxu0 0.0
  %866 = vmatprep.subr.mxu0 0.0
  %867 = vmatpush1.msra.mxu0 0.0
  %868 = vmatprep.subr.mxu0 0.0
  %869 = vmatpush1.msra.mxu0 0.0
  %870 = vmatprep.subr.mxu0 0.0
  %871 = vmatpush1.msra.mxu0 0.0
  %872 = vmatprep.subr.mxu0 0.0
  %873 = vmatpush1.msra.mxu0 0.0
  %874 = vmatprep.subr.mxu0 0.0
  %875 = vmatpush1.msra.mxu0 0.0
  %876 = vmatprep.subr.mxu0 0.0
  %877 = vmatpush1.msra.mxu0 0.0
  %878 = vmatprep.subr.mxu0 0.0
  %879 = vmatpush1.msra.mxu0 0.0
  %880 = vmatprep.subr.mxu0 0.0
  %881 = vmatpush1.msra.mxu0 0.0
  %882 = vmatprep.subr.mxu0 0.0
  %883 = vmatpush1.msra.mxu0 0.0
  %884 = vmatprep.mubr.f32.mxu0 0.0
  %885 = vmatmul.mubr.f32.gmra.mrb[0].mxu0 %v748
  %v886 = vpop.f32.mrb[0].mxu0
  %v887 = vadd.f32 0.0, %v886
  %v888 = vpop.f32.mrb[0].mxu0
  %v889 = vadd.f32 0.0, %v888
  %890 = vdwg.mxu0
  %891 = vmatprep.subr.mxu0 %v759
  %892 = vmatpush1.msra.mxu0 %v758
  %893 = vmatprep.subr.mxu0 %v763
  %894 = vmatpush1.msra.mxu0 %v762
  %895 = vmatprep.subr.mxu0 %v767
  %896 = vmatpush1.msra.mxu0 %v766
  %897 = vmatprep.subr.mxu0 %v771
  %898 = vmatpush1.msra.mxu0 %v770
  %899 = vmatprep.subr.mxu0 %v775
  %900 = vmatpush1.msra.mxu0 %v774
  %901 = vmatprep.subr.mxu0 %v779
  %902 = vmatpush1.msra.mxu0 %v778
  %903 = vmatprep.subr.mxu0 %v783
  %904 = vmatpush1.msra.mxu0 %v782
  %905 = vmatprep.subr.mxu0 %v787
  %906 = vmatpush1.msra.mxu0 %v786
  %907 = vmatprep.subr.mxu0 %v791
  %908 = vmatpush1.msra.mxu0 %v790
  %909 = vmatprep.subr.mxu0 %v795
  %910 = vmatpush1.msra.mxu0 %v794
  %911 = vmatprep.subr.mxu0 %v799
  %912 = vmatpush1.msra.mxu0 %v798
  %913 = vmatprep.subr.mxu0 %v803
  %914 = vmatpush1.msra.mxu0 %v802
  %915 = vmatprep.subr.mxu0 %v807
  %916 = vmatpush1.msra.mxu0 %v806
  %917 = vmatprep.subr.mxu0 %v811
  %918 = vmatpush1.msra.mxu0 %v810
  %919 = vmatprep.subr.mxu0 %v815
  %920 = vmatpush1.msra.mxu0 %v814
  %921 = vmatprep.subr.mxu0 %v819
  %922 = vmatpush1.msra.mxu0 %v818
  %923 = vmatprep.subr.mxu0 0.0
  %924 = vmatpush1.msra.mxu0 0.0
  %925 = vmatprep.subr.mxu0 0.0
  %926 = vmatpush1.msra.mxu0 0.0
  %927 = vmatprep.subr.mxu0 0.0
  %928 = vmatpush1.msra.mxu0 0.0
  %929 = vmatprep.subr.mxu0 0.0
  %930 = vmatpush1.msra.mxu0 0.0
  %931 = vmatprep.subr.mxu0 0.0
  %932 = vmatpush1.msra.mxu0 0.0
  %933 = vmatprep.subr.mxu0 0.0
  %934 = vmatpush1.msra.mxu0 0.0
  %935 = vmatprep.subr.mxu0 0.0
  %936 = vmatpush1.msra.mxu0 0.0
  %937 = vmatprep.subr.mxu0 0.0
  %938 = vmatpush1.msra.mxu0 0.0
  %939 = vmatprep.subr.mxu0 0.0
  %940 = vmatpush1.msra.mxu0 0.0
  %941 = vmatprep.subr.mxu0 0.0
  %942 = vmatpush1.msra.mxu0 0.0
  %943 = vmatprep.subr.mxu0 0.0
  %944 = vmatpush1.msra.mxu0 0.0
  %945 = vmatprep.subr.mxu0 0.0
  %946 = vmatpush1.msra.mxu0 0.0
  %947 = vmatprep.subr.mxu0 0.0
  %948 = vmatpush1.msra.mxu0 0.0
  %949 = vmatprep.subr.mxu0 0.0
  %950 = vmatpush1.msra.mxu0 0.0
  %951 = vmatprep.subr.mxu0 0.0
  %952 = vmatpush1.msra.mxu0 0.0
  %953 = vmatprep.subr.mxu0 0.0
  %954 = vmatpush1.msra.mxu0 0.0
  %955 = vmatprep.mubr.f32.mxu0 0.0
  %956 = vmatmul.mubr.f32.gmra.mrb[0].mxu0 %v748
  %v957 = vpop.f32.mrb[0].mxu0
  %v958 = vadd.f32 0.0, %v957
  %v959 = vpop.f32.mrb[0].mxu0
  %v960 = vadd.f32 0.0, %v959
  %961 = vdwg.mxu0
  %v962 = vadd.f32 %v752, %v887
  %v963 = vadd.f32 %v753, %v889
  %v964 = vadd.f32 %v754, %v958
  %v965 = vadd.f32 %v755, %v960
  %v966 = vxor.u32 %v962, 2147483648
  %v967 = vxor.u32 %v963, 2147483648
  %v968 = vxor.u32 %v964, 2147483648
  %v969 = vmul.f32 %v966, 1.442695
  %v970 = vpow.pop %v969
  %v971 = vmul.f32 %v967, 1.442695
  %v972 = vpow.pop %v971
  %v973 = vmul.f32 %v968, 1.442695
  %v974 = vpow.pop %v973
  %v975 = vadd.f32 %v970, 1.0
  %v976 = vadd.f32 %v972, 1.0
  %v977 = vadd.f32 %v974, 1.0
  %v978 = vrcp.pop %v975
  %v979 = vmul.f32 1.0, %v978
  %v980 = vrcp.pop %v976
  %v981 = vmul.f32 1.0, %v980
  %v982 = vrcp.pop %v977
  %v983 = vmul.f32 1.0, %v982
  %v984 = vtanh.pop %v965
  %v985 = vmul.f32 %v981, %v746
  %v986 = vmul.f32 %v979, %v984
  %v987 = vadd.f32 %v985, %v986
  %v988 = vtanh.pop %v987
  %v989 = vmul.f32 %v983, %v988
  %s990 = scalar_lea.vmem %s4, 24
  %991 = vst [vmem:[%s990] sm:$0xff] %v989
  %992 = vst [vmem:[#allocation2] sm:$0xff] %v989
  %993 = vst [vmem:[#allocation3] sm:$0xff] %v987
  %994 = vst [vmem:[%s5] sm:$0xff] %v989
  %995 = vst [vmem:[%s6] sm:$0xff] %v987
  // Predicated region
  $region22: #{rnn_forward.4} parent=0 // pred_check
    _
  $region23: #{rnn_forward.4} parent=0 // pred_check_branch
    %997 = sbr.rel (0) target = $region25
  $region24: #{rnn_forward.4} parent=0 // pred_region
    _
  $region25: #{rnn_forward.4} parent=0 // pred_fallthru
    _
  // Predicated region
  $region26: #{rnn_forward.4} parent=0 // pred_check
    _
  $region27: #{rnn_forward.4} parent=0 // pred_check_branch
    %999 = sbr.rel (0) target = $region29
  $region28: #{rnn_forward.4} parent=0 // pred_region
    _
  $region29: #{rnn_forward.4} parent=0 // pred_fallthru
    _
  // Predicated region
  $region30: #{rnn_forward.4} parent=0 // pred_check
    _
  $region31: #{rnn_forward.4} parent=0 // pred_check_branch
    %1001 = sbr.rel (0) target = $region33
  $region32: #{rnn_forward.4} parent=0 // pred_region
    _
  $region33: #{rnn_forward.4} parent=0 // pred_fallthru
    _
  // Predicated region
  $region34: #{rnn_forward.4} parent=0 // pred_check
    _
  $region35: #{rnn_forward.4} parent=0 // pred_check_branch
    %1003 = sbr.rel (0) target = $region37
  $region36: #{rnn_forward.4} parent=0 // pred_region
    _
  $region37: #{rnn_forward.4} parent=0 // pred_fallthru
    _
  // Predicated region
  $region38: #{rnn_forward.4} parent=0 // pred_check
    _
  $region39: #{rnn_forward.4} parent=0 // pred_check_branch
    %1005 = sbr.rel (0) target = $region41
  $region40: #{rnn_forward.4} parent=0 // pred_region
    _
  $region41: #{rnn_forward.4} parent=0 // pred_fallthru
    _
  // Predicated region
  $region42: #{rnn_forward.4} parent=0 // pred_check
    _
  $region43: #{rnn_forward.4} parent=0 // pred_check_branch
    %1007 = sbr.rel (0) target = $region45
  $region44: #{rnn_forward.4} parent=0 // pred_region
    _
  $region45: #{rnn_forward.4} parent=0 // pred_fallthru
    _

// kernel: rnn_forward.5
$region0: #{rnn_forward.5}
  #allocation0 [shape = 'u32[]', space=smem, size = 0x4, offset = 0x4, fixed_abs, tag = 'smem constant byte address 0x4 - core index']
  #allocation1 [shape = 'u32[144,128]{1,0:T(1,128)}', space=vmem, size = 0x12000, scoped, tag = 'internal scratch']
  #allocation2 [shape = 'f32[32,8,128]{2,1,0:T(8,128)}', space=vmem, size = 0x20000, scoped, tag = 'scratch operand']
  %s0 = inlined_call_operand.vmem [shape: f32[32,128], index: 0, kind: input, shape index: {}]
  %s1 = inlined_call_operand.vmem [shape: f32[1,1,128,1024], index: 1, kind: input, shape index: {}]
  %s2 = inlined_call_operand.vmem [shape: f32[1,1,1,1024], index: 2, kind: input, shape index: {}]
  %s3 = inlined_call_operand.vmem [shape: f32[32,8,128], index: 3, kind: output, shape index: {}]
  %s4 = sld [smem:[#allocation0]]
  $region22: #{rnn_forward.5} parent=0
    _
  %s6 = ssub.s32 1, %s4
  %s7 = scalar_select 0, %s6, %s4
  // Predicated region
  $region2: #{rnn_forward.5} parent=0 // pred_check
    _
  $region3: #{rnn_forward.5} parent=0 // pred_check_branch
    %9 = sbr.rel (0) target = $region5
  $region4: #{rnn_forward.5} parent=0 // pred_region
    _
  $region5: #{rnn_forward.5} parent=0 // pred_fallthru
    _
  // Predicated region
  $region6: #{rnn_forward.5} parent=0 // pred_check
    _
  $region7: #{rnn_forward.5} parent=0 // pred_check_branch
    %11 = sbr.rel (0) target = $region9
  $region8: #{rnn_forward.5} parent=0 // pred_region
    _
  $region9: #{rnn_forward.5} parent=0 // pred_fallthru
    _
  // Predicated region
  $region10: #{rnn_forward.5} parent=0 // pred_check
    _
  $region11: #{rnn_forward.5} parent=0 // pred_check_branch
    %13 = sbr.rel (0) target = $region13
  $region12: #{rnn_forward.5} parent=0 // pred_region
    _
  $region13: #{rnn_forward.5} parent=0 // pred_fallthru
    _
  %v14 = vld [vmem:[%s0] sm:$0xff]
  %v15 = vld [vmem:[%s0 + $0x8] sm:$0xff]
  %v16 = vld [vmem:[%s0 + $0x10] sm:$0xff]
  %v17 = vld [vmem:[%s0 + $0x18] sm:$0xff]
  %v18 = vld [vmem:[%s1] sm:$0xff]
  %v19 = vld [vmem:[%s1 + $0x8] sm:$0xff]
  %v20 = vld [vmem:[%s1 + $0x10] sm:$0xff]
  %v21 = vld [vmem:[%s1 + $0x18] sm:$0xff]
  %v22 = vld [vmem:[%s1 + $0x20] sm:$0xff]
  %v23 = vld [vmem:[%s1 + $0x28] sm:$0xff]
  %v24 = vld [vmem:[%s1 + $0x30] sm:$0xff]
  %v25 = vld [vmem:[%s1 + $0x38] sm:$0xff]
  %v26 = vld [vmem:[%s1 + $0x40] sm:$0xff]
  %v27 = vld [vmem:[%s1 + $0x48] sm:$0xff]
  %v28 = vld [vmem:[%s1 + $0x50] sm:$0xff]
  %v29 = vld [vmem:[%s1 + $0x58] sm:$0xff]
  %v30 = vld [vmem:[%s1 + $0x60] sm:$0xff]
  %v31 = vld [vmem:[%s1 + $0x68] sm:$0xff]
  %v32 = vld [vmem:[%s1 + $0x70] sm:$0xff]
  %v33 = vld [vmem:[%s1 + $0x78] sm:$0xff]
  %v34 = vld [vmem:[%s1 + $0x80] sm:$0xff]
  %v35 = vld [vmem:[%s1 + $0x88] sm:$0xff]
  %v36 = vld [vmem:[%s1 + $0x90] sm:$0xff]
  %v37 = vld [vmem:[%s1 + $0x98] sm:$0xff]
  %v38 = vld [vmem:[%s1 + $0xa0] sm:$0xff]
  %v39 = vld [vmem:[%s1 + $0xa8] sm:$0xff]
  %v40 = vld [vmem:[%s1 + $0xb0] sm:$0xff]
  %v41 = vld [vmem:[%s1 + $0xb8] sm:$0xff]
  %v42 = vld [vmem:[%s1 + $0xc0] sm:$0xff]
  %v43 = vld [vmem:[%s1 + $0xc8] sm:$0xff]
  %v44 = vld [vmem:[%s1 + $0xd0] sm:$0xff]
  %v45 = vld [vmem:[%s1 + $0xd8] sm:$0xff]
  %v46 = vld [vmem:[%s1 + $0xe0] sm:$0xff]
  %v47 = vld [vmem:[%s1 + $0xe8] sm:$0xff]
  %v48 = vld [vmem:[%s1 + $0xf0] sm:$0xff]
  %v49 = vld [vmem:[%s1 + $0xf8] sm:$0xff]
  %v50 = vld [vmem:[%s1 + $0x100] sm:$0xff]
  %v51 = vld [vmem:[%s1 + $0x108] sm:$0xff]
  %v52 = vld [vmem:[%s1 + $0x110] sm:$0xff]
  %v53 = vld [vmem:[%s1 + $0x118] sm:$0xff]
  %v54 = vld [vmem:[%s1 + $0x120] sm:$0xff]
  %v55 = vld [vmem:[%s1 + $0x128] sm:$0xff]
  %v56 = vld [vmem:[%s1 + $0x130] sm:$0xff]
  %v57 = vld [vmem:[%s1 + $0x138] sm:$0xff]
  %v58 = vld [vmem:[%s1 + $0x140] sm:$0xff]
  %v59 = vld [vmem:[%s1 + $0x148] sm:$0xff]
  %v60 = vld [vmem:[%s1 + $0x150] sm:$0xff]
  %v61 = vld [vmem:[%s1 + $0x158] sm:$0xff]
  %v62 = vld [vmem:[%s1 + $0x160] sm:$0xff]
  %v63 = vld [vmem:[%s1 + $0x168] sm:$0xff]
  %v64 = vld [vmem:[%s1 + $0x170] sm:$0xff]
  %v65 = vld [vmem:[%s1 + $0x178] sm:$0xff]
  %v66 = vld [vmem:[%s1 + $0x180] sm:$0xff]
  %v67 = vld [vmem:[%s1 + $0x188] sm:$0xff]
  %v68 = vld [vmem:[%s1 + $0x190] sm:$0xff]
  %v69 = vld [vmem:[%s1 + $0x198] sm:$0xff]
  %v70 = vld [vmem:[%s1 + $0x1a0] sm:$0xff]
  %v71 = vld [vmem:[%s1 + $0x1a8] sm:$0xff]
  %v72 = vld [vmem:[%s1 + $0x1b0] sm:$0xff]
  %v73 = vld [vmem:[%s1 + $0x1b8] sm:$0xff]
  %v74 = vld [vmem:[%s1 + $0x1c0] sm:$0xff]
  %v75 = vld [vmem:[%s1 + $0x1c8] sm:$0xff]
  %v76 = vld [vmem:[%s1 + $0x1d0] sm:$0xff]
  %v77 = vld [vmem:[%s1 + $0x1d8] sm:$0xff]
  %v78 = vld [vmem:[%s1 + $0x1e0] sm:$0xff]
  %v79 = vld [vmem:[%s1 + $0x1e8] sm:$0xff]
  %v80 = vld [vmem:[%s1 + $0x1f0] sm:$0xff]
  %v81 = vld [vmem:[%s1 + $0x1f8] sm:$0xff]
  %v82 = vld [vmem:[%s1 + $0x200] sm:$0xff]
  %v83 = vld [vmem:[%s1 + $0x208] sm:$0xff]
  %v84 = vld [vmem:[%s1 + $0x210] sm:$0xff]
  %v85 = vld [vmem:[%s1 + $0x218] sm:$0xff]
  %v86 = vld [vmem:[%s1 + $0x220] sm:$0xff]
  %v87 = vld [vmem:[%s1 + $0x228] sm:$0xff]
  %v88 = vld [vmem:[%s1 + $0x230] sm:$0xff]
  %v89 = vld [vmem:[%s1 + $0x238] sm:$0xff]
  %v90 = vld [vmem:[%s1 + $0x240] sm:$0xff]
  %v91 = vld [vmem:[%s1 + $0x248] sm:$0xff]
  %v92 = vld [vmem:[%s1 + $0x250] sm:$0xff]
  %v93 = vld [vmem:[%s1 + $0x258] sm:$0xff]
  %v94 = vld [vmem:[%s1 + $0x260] sm:$0xff]
  %v95 = vld [vmem:[%s1 + $0x268] sm:$0xff]
  %v96 = vld [vmem:[%s1 + $0x270] sm:$0xff]
  %v97 = vld [vmem:[%s1 + $0x278] sm:$0xff]
  %v98 = vld [vmem:[%s1 + $0x280] sm:$0xff]
  %v99 = vld [vmem:[%s1 + $0x288] sm:$0xff]
  %v100 = vld [vmem:[%s1 + $0x290] sm:$0xff]
  %v101 = vld [vmem:[%s1 + $0x298] sm:$0xff]
  %v102 = vld [vmem:[%s1 + $0x2a0] sm:$0xff]
  %v103 = vld [vmem:[%s1 + $0x2a8] sm:$0xff]
  %v104 = vld [vmem:[%s1 + $0x2b0] sm:$0xff]
  %v105 = vld [vmem:[%s1 + $0x2b8] sm:$0xff]
  %v106 = vld [vmem:[%s1 + $0x2c0] sm:$0xff]
  %v107 = vld [vmem:[%s1 + $0x2c8] sm:$0xff]
  %v108 = vld [vmem:[%s1 + $0x2d0] sm:$0xff]
  %v109 = vld [vmem:[%s1 + $0x2d8] sm:$0xff]
  %v110 = vld [vmem:[%s1 + $0x2e0] sm:$0xff]
  %v111 = vld [vmem:[%s1 + $0x2e8] sm:$0xff]
  %v112 = vld [vmem:[%s1 + $0x2f0] sm:$0xff]
  %v113 = vld [vmem:[%s1 + $0x2f8] sm:$0xff]
  %v114 = vld [vmem:[%s1 + $0x300] sm:$0xff]
  %v115 = vld [vmem:[%s1 + $0x308] sm:$0xff]
  %v116 = vld [vmem:[%s1 + $0x310] sm:$0xff]
  %v117 = vld [vmem:[%s1 + $0x318] sm:$0xff]
  %v118 = vld [vmem:[%s1 + $0x320] sm:$0xff]
  %v119 = vld [vmem:[%s1 + $0x328] sm:$0xff]
  %v120 = vld [vmem:[%s1 + $0x330] sm:$0xff]
  %v121 = vld [vmem:[%s1 + $0x338] sm:$0xff]
  %v122 = vld [vmem:[%s1 + $0x340] sm:$0xff]
  %v123 = vld [vmem:[%s1 + $0x348] sm:$0xff]
  %v124 = vld [vmem:[%s1 + $0x350] sm:$0xff]
  %v125 = vld [vmem:[%s1 + $0x358] sm:$0xff]
  %v126 = vld [vmem:[%s1 + $0x360] sm:$0xff]
  %v127 = vld [vmem:[%s1 + $0x368] sm:$0xff]
  %v128 = vld [vmem:[%s1 + $0x370] sm:$0xff]
  %v129 = vld [vmem:[%s1 + $0x378] sm:$0xff]
  %v130 = vld [vmem:[%s1 + $0x380] sm:$0xff]
  %v131 = vld [vmem:[%s1 + $0x388] sm:$0xff]
  %v132 = vld [vmem:[%s1 + $0x390] sm:$0xff]
  %v133 = vld [vmem:[%s1 + $0x398] sm:$0xff]
  %v134 = vld [vmem:[%s1 + $0x3a0] sm:$0xff]
  %v135 = vld [vmem:[%s1 + $0x3a8] sm:$0xff]
  %v136 = vld [vmem:[%s1 + $0x3b0] sm:$0xff]
  %v137 = vld [vmem:[%s1 + $0x3b8] sm:$0xff]
  %v138 = vld [vmem:[%s1 + $0x3c0] sm:$0xff]
  %v139 = vld [vmem:[%s1 + $0x3c8] sm:$0xff]
  %v140 = vld [vmem:[%s1 + $0x3d0] sm:$0xff]
  %v141 = vld [vmem:[%s1 + $0x3d8] sm:$0xff]
  %v142 = vld [vmem:[%s1 + $0x3e0] sm:$0xff]
  %v143 = vld [vmem:[%s1 + $0x3e8] sm:$0xff]
  %v144 = vld [vmem:[%s1 + $0x3f0] sm:$0xff]
  %v145 = vld [vmem:[%s1 + $0x3f8] sm:$0xff]
  %v146 = vld [vmem:[%s2] sm:$0xff]
  %v148 = vlaneseq
  %v149 = vshrl.u32 %v148, 7
  %v150 = vsub.s32 0, %v149
  %v151 = vrot.slane %v146, %v150
  %v152 = vlaneseq
  %v153 = vshrl.u32 %v152, 7
  %v154 = vsub.s32 1, %v153
  %v155 = vrot.slane %v146, %v154
  %v156 = vlaneseq
  %v157 = vshrl.u32 %v156, 7
  %v158 = vsub.s32 2, %v157
  %v159 = vrot.slane %v146, %v158
  %v160 = vlaneseq
  %v161 = vshrl.u32 %v160, 7
  %v162 = vsub.s32 3, %v161
  %v163 = vrot.slane %v146, %v162
  %v164 = vlaneseq
  %v165 = vshrl.u32 %v164, 7
  %v166 = vsub.s32 4, %v165
  %v167 = vrot.slane %v146, %v166
  %v168 = vlaneseq
  %v169 = vshrl.u32 %v168, 7
  %v170 = vsub.s32 5, %v169
  %v171 = vrot.slane %v146, %v170
  %v172 = vlaneseq
  %v173 = vshrl.u32 %v172, 7
  %v174 = vsub.s32 6, %v173
  %v175 = vrot.slane %v146, %v174
  %v176 = vlaneseq
  %v177 = vshrl.u32 %v176, 7
  %v178 = vsub.s32 7, %v177
  %v179 = vrot.slane %v146, %v178
  %188 = vmatprep.subr.mxu0 %v19
  %189 = vmatpush1.msra.mxu0 %v18
  %190 = vmatprep.subr.mxu0 %v27
  %191 = vmatpush1.msra.mxu0 %v26
  %192 = vmatprep.subr.mxu0 %v35
  %193 = vmatpush1.msra.mxu0 %v34
  %194 = vmatprep.subr.mxu0 %v43
  %195 = vmatpush1.msra.mxu0 %v42
  %196 = vmatprep.subr.mxu0 %v51
  %197 = vmatpush1.msra.mxu0 %v50
  %198 = vmatprep.subr.mxu0 %v59
  %199 = vmatpush1.msra.mxu0 %v58
  %200 = vmatprep.subr.mxu0 %v67
  %201 = vmatpush1.msra.mxu0 %v66
  %202 = vmatprep.subr.mxu0 %v75
  %203 = vmatpush1.msra.mxu0 %v74
  %204 = vmatprep.subr.mxu0 %v83
  %205 = vmatpush1.msra.mxu0 %v82
  %206 = vmatprep.subr.mxu0 %v91
  %207 = vmatpush1.msra.mxu0 %v90
  %208 = vmatprep.subr.mxu0 %v99
  %209 = vmatpush1.msra.mxu0 %v98
  %210 = vmatprep.subr.mxu0 %v107
  %211 = vmatpush1.msra.mxu0 %v106
  %212 = vmatprep.subr.mxu0 %v115
  %213 = vmatpush1.msra.mxu0 %v114
  %214 = vmatprep.subr.mxu0 %v123
  %215 = vmatpush1.msra.mxu0 %v122
  %216 = vmatprep.subr.mxu0 %v131
  %217 = vmatpush1.msra.mxu0 %v130
  %218 = vmatprep.subr.mxu0 %v139
  %219 = vmatpush1.msra.mxu0 %v138
  %220 = vmatprep.subr.mxu0 0.0
  %221 = vmatpush1.msra.mxu0 0.0
  %222 = vmatprep.subr.mxu0 0.0
  %223 = vmatpush1.msra.mxu0 0.0
  %224 = vmatprep.subr.mxu0 0.0
  %225 = vmatpush1.msra.mxu0 0.0
  %226 = vmatprep.subr.mxu0 0.0
  %227 = vmatpush1.msra.mxu0 0.0
  %228 = vmatprep.subr.mxu0 0.0
  %229 = vmatpush1.msra.mxu0 0.0
  %230 = vmatprep.subr.mxu0 0.0
  %231 = vmatpush1.msra.mxu0 0.0
  %232 = vmatprep.subr.mxu0 0.0
  %233 = vmatpush1.msra.mxu0 0.0
  %234 = vmatprep.subr.mxu0 0.0
  %235 = vmatpush1.msra.mxu0 0.0
  %236 = vmatprep.subr.mxu0 0.0
  %237 = vmatpush1.msra.mxu0 0.0
  %238 = vmatprep.subr.mxu0 0.0
  %239 = vmatpush1.msra.mxu0 0.0
  %240 = vmatprep.subr.mxu0 0.0
  %241 = vmatpush1.msra.mxu0 0.0
  %242 = vmatprep.subr.mxu0 0.0
  %243 = vmatpush1.msra.mxu0 0.0
  %244 = vmatprep.subr.mxu0 0.0
  %245 = vmatpush1.msra.mxu0 0.0
  %246 = vmatprep.subr.mxu0 0.0
  %247 = vmatpush1.msra.mxu0 0.0
  %248 = vmatprep.subr.mxu0 0.0
  %249 = vmatpush1.msra.mxu0 0.0
  %250 = vmatprep.subr.mxu0 0.0
  %251 = vmatpush1.msra.mxu0 0.0
  %252 = vmatprep.mubr.f32.mxu0 0.0
  %253 = vmatmul.mubr.f32.gmra.mrb[0].mxu0 %v14
  %v254 = vpop.f32.mrb[0].mxu0
  %v255 = vadd.f32 %v151, %v254
  %v256 = vpop.f32.mrb[0].mxu0
  %v257 = vadd.f32 %v155, %v256
  %258 = vmatprep.mubr.f32.mxu0 0.0
  %259 = vmatmul.mubr.f32.gmra.mrb[0].mxu0 %v15
  %v260 = vpop.f32.mrb[0].mxu0
  %v261 = vadd.f32 %v151, %v260
  %v262 = vpop.f32.mrb[0].mxu0
  %v263 = vadd.f32 %v155, %v262
  %264 = vmatprep.mubr.f32.mxu0 0.0
  %265 = vmatmul.mubr.f32.gmra.mrb[0].mxu0 %v16
  %v266 = vpop.f32.mrb[0].mxu0
  %v267 = vadd.f32 %v151, %v266
  %v268 = vpop.f32.mrb[0].mxu0
  %v269 = vadd.f32 %v155, %v268
  %270 = vmatprep.mubr.f32.mxu0 0.0
  %271 = vmatmul.mubr.f32.gmra.mrb[0].mxu0 %v17
  %v272 = vpop.f32.mrb[0].mxu0
  %v273 = vadd.f32 %v151, %v272
  %v274 = vpop.f32.mrb[0].mxu0
  %v275 = vadd.f32 %v155, %v274
  %276 = vdwg.mxu0
  %277 = vmatprep.subr.mxu0 %v21
  %278 = vmatpush1.msra.mxu0 %v20
  %279 = vmatprep.subr.mxu0 %v29
  %280 = vmatpush1.msra.mxu0 %v28
  %281 = vmatprep.subr.mxu0 %v37
  %282 = vmatpush1.msra.mxu0 %v36
  %283 = vmatprep.subr.mxu0 %v45
  %284 = vmatpush1.msra.mxu0 %v44
  %285 = vmatprep.subr.mxu0 %v53
  %286 = vmatpush1.msra.mxu0 %v52
  %287 = vmatprep.subr.mxu0 %v61
  %288 = vmatpush1.msra.mxu0 %v60
  %289 = vmatprep.subr.mxu0 %v69
  %290 = vmatpush1.msra.mxu0 %v68
  %291 = vmatprep.subr.mxu0 %v77
  %292 = vmatpush1.msra.mxu0 %v76
  %293 = vmatprep.subr.mxu0 %v85
  %294 = vmatpush1.msra.mxu0 %v84
  %295 = vmatprep.subr.mxu0 %v93
  %296 = vmatpush1.msra.mxu0 %v92
  %297 = vmatprep.subr.mxu0 %v101
  %298 = vmatpush1.msra.mxu0 %v100
  %299 = vmatprep.subr.mxu0 %v109
  %300 = vmatpush1.msra.mxu0 %v108
  %301 = vmatprep.subr.mxu0 %v117
  %302 = vmatpush1.msra.mxu0 %v116
  %303 = vmatprep.subr.mxu0 %v125
  %304 = vmatpush1.msra.mxu0 %v124
  %305 = vmatprep.subr.mxu0 %v133
  %306 = vmatpush1.msra.mxu0 %v132
  %307 = vmatprep.subr.mxu0 %v141
  %308 = vmatpush1.msra.mxu0 %v140
  %309 = vmatprep.subr.mxu0 0.0
  %310 = vmatpush1.msra.mxu0 0.0
  %311 = vmatprep.subr.mxu0 0.0
  %312 = vmatpush1.msra.mxu0 0.0
  %313 = vmatprep.subr.mxu0 0.0
  %314 = vmatpush1.msra.mxu0 0.0
  %315 = vmatprep.subr.mxu0 0.0
  %316 = vmatpush1.msra.mxu0 0.0
  %317 = vmatprep.subr.mxu0 0.0
  %318 = vmatpush1.msra.mxu0 0.0
  %319 = vmatprep.subr.mxu0 0.0
  %320 = vmatpush1.msra.mxu0 0.0
  %321 = vmatprep.subr.mxu0 0.0
  %322 = vmatpush1.msra.mxu0 0.0
  %323 = vmatprep.subr.mxu0 0.0
  %324 = vmatpush1.msra.mxu0 0.0
  %325 = vmatprep.subr.mxu0 0.0
  %326 = vmatpush1.msra.mxu0 0.0
  %327 = vmatprep.subr.mxu0 0.0
  %328 = vmatpush1.msra.mxu0 0.0
  %329 = vmatprep.subr.mxu0 0.0
  %330 = vmatpush1.msra.mxu0 0.0
  %331 = vmatprep.subr.mxu0 0.0
  %332 = vmatpush1.msra.mxu0 0.0
  %333 = vmatprep.subr.mxu0 0.0
  %334 = vmatpush1.msra.mxu0 0.0
  %335 = vmatprep.subr.mxu0 0.0
  %336 = vmatpush1.msra.mxu0 0.0
  %337 = vmatprep.subr.mxu0 0.0
  %338 = vmatpush1.msra.mxu0 0.0
  %339 = vmatprep.subr.mxu0 0.0
  %340 = vmatpush1.msra.mxu0 0.0
  %341 = vmatprep.mubr.f32.mxu0 0.0
  %342 = vmatmul.mubr.f32.gmra.mrb[0].mxu0 %v14
  %v343 = vpop.f32.mrb[0].mxu0
  %v344 = vadd.f32 %v159, %v343
  %v345 = vpop.f32.mrb[0].mxu0
  %v346 = vadd.f32 %v163, %v345
  %347 = vmatprep.mubr.f32.mxu0 0.0
  %348 = vmatmul.mubr.f32.gmra.mrb[0].mxu0 %v15
  %v349 = vpop.f32.mrb[0].mxu0
  %v350 = vadd.f32 %v159, %v349
  %v351 = vpop.f32.mrb[0].mxu0
  %v352 = vadd.f32 %v163, %v351
  %353 = vmatprep.mubr.f32.mxu0 0.0
  %354 = vmatmul.mubr.f32.gmra.mrb[0].mxu0 %v16
  %v355 = vpop.f32.mrb[0].mxu0
  %v356 = vadd.f32 %v159, %v355
  %v357 = vpop.f32.mrb[0].mxu0
  %v358 = vadd.f32 %v163, %v357
  %359 = vmatprep.mubr.f32.mxu0 0.0
  %360 = vmatmul.mubr.f32.gmra.mrb[0].mxu0 %v17
  %v361 = vpop.f32.mrb[0].mxu0
  %v362 = vadd.f32 %v159, %v361
  %v363 = vpop.f32.mrb[0].mxu0
  %v364 = vadd.f32 %v163, %v363
  %365 = vdwg.mxu0
  %366 = vmatprep.subr.mxu0 %v23
  %367 = vmatpush1.msra.mxu0 %v22
  %368 = vmatprep.subr.mxu0 %v31
  %369 = vmatpush1.msra.mxu0 %v30
  %370 = vmatprep.subr.mxu0 %v39
  %371 = vmatpush1.msra.mxu0 %v38
  %372 = vmatprep.subr.mxu0 %v47
  %373 = vmatpush1.msra.mxu0 %v46
  %374 = vmatprep.subr.mxu0 %v55
  %375 = vmatpush1.msra.mxu0 %v54
  %376 = vmatprep.subr.mxu0 %v63
  %377 = vmatpush1.msra.mxu0 %v62
  %378 = vmatprep.subr.mxu0 %v71
  %379 = vmatpush1.msra.mxu0 %v70
  %380 = vmatprep.subr.mxu0 %v79
  %381 = vmatpush1.msra.mxu0 %v78
  %382 = vmatprep.subr.mxu0 %v87
  %383 = vmatpush1.msra.mxu0 %v86
  %384 = vmatprep.subr.mxu0 %v95
  %385 = vmatpush1.msra.mxu0 %v94
  %386 = vmatprep.subr.mxu0 %v103
  %387 = vmatpush1.msra.mxu0 %v102
  %388 = vmatprep.subr.mxu0 %v111
  %389 = vmatpush1.msra.mxu0 %v110
  %390 = vmatprep.subr.mxu0 %v119
  %391 = vmatpush1.msra.mxu0 %v118
  %392 = vmatprep.subr.mxu0 %v127
  %393 = vmatpush1.msra.mxu0 %v126
  %394 = vmatprep.subr.mxu0 %v135
  %395 = vmatpush1.msra.mxu0 %v134
  %396 = vmatprep.subr.mxu0 %v143
  %397 = vmatpush1.msra.mxu0 %v142
  %398 = vmatprep.subr.mxu0 0.0
  %399 = vmatpush1.msra.mxu0 0.0
  %400 = vmatprep.subr.mxu0 0.0
  %401 = vmatpush1.msra.mxu0 0.0
  %402 = vmatprep.subr.mxu0 0.0
  %403 = vmatpush1.msra.mxu0 0.0
  %404 = vmatprep.subr.mxu0 0.0
  %405 = vmatpush1.msra.mxu0 0.0
  %406 = vmatprep.subr.mxu0 0.0
  %407 = vmatpush1.msra.mxu0 0.0
  %408 = vmatprep.subr.mxu0 0.0
  %409 = vmatpush1.msra.mxu0 0.0
  %410 = vmatprep.subr.mxu0 0.0
  %411 = vmatpush1.msra.mxu0 0.0
  %412 = vmatprep.subr.mxu0 0.0
  %413 = vmatpush1.msra.mxu0 0.0
  %414 = vmatprep.subr.mxu0 0.0
  %415 = vmatpush1.msra.mxu0 0.0
  %416 = vmatprep.subr.mxu0 0.0
  %417 = vmatpush1.msra.mxu0 0.0
  %418 = vmatprep.subr.mxu0 0.0
  %419 = vmatpush1.msra.mxu0 0.0
  %420 = vmatprep.subr.mxu0 0.0
  %421 = vmatpush1.msra.mxu0 0.0
  %422 = vmatprep.subr.mxu0 0.0
  %423 = vmatpush1.msra.mxu0 0.0
  %424 = vmatprep.subr.mxu0 0.0
  %425 = vmatpush1.msra.mxu0 0.0
  %426 = vmatprep.subr.mxu0 0.0
  %427 = vmatpush1.msra.mxu0 0.0
  %428 = vmatprep.subr.mxu0 0.0
  %429 = vmatpush1.msra.mxu0 0.0
  %430 = vmatprep.mubr.f32.mxu0 0.0
  %431 = vmatmul.mubr.f32.gmra.mrb[0].mxu0 %v14
  %v432 = vpop.f32.mrb[0].mxu0
  %v433 = vadd.f32 %v167, %v432
  %v434 = vpop.f32.mrb[0].mxu0
  %v435 = vadd.f32 %v171, %v434
  %436 = vmatprep.mubr.f32.mxu0 0.0
  %437 = vmatmul.mubr.f32.gmra.mrb[0].mxu0 %v15
  %v438 = vpop.f32.mrb[0].mxu0
  %v439 = vadd.f32 %v167, %v438
  %v440 = vpop.f32.mrb[0].mxu0
  %v441 = vadd.f32 %v171, %v440
  %442 = vmatprep.mubr.f32.mxu0 0.0
  %443 = vmatmul.mubr.f32.gmra.mrb[0].mxu0 %v16
  %v444 = vpop.f32.mrb[0].mxu0
  %v445 = vadd.f32 %v167, %v444
  %v446 = vpop.f32.mrb[0].mxu0
  %v447 = vadd.f32 %v171, %v446
  %448 = vmatprep.mubr.f32.mxu0 0.0
  %449 = vmatmul.mubr.f32.gmra.mrb[0].mxu0 %v17
  %v450 = vpop.f32.mrb[0].mxu0
  %v451 = vadd.f32 %v167, %v450
  %v452 = vpop.f32.mrb[0].mxu0
  %v453 = vadd.f32 %v171, %v452
  %454 = vdwg.mxu0
  %455 = vmatprep.subr.mxu0 %v25
  %456 = vmatpush1.msra.mxu0 %v24
  %457 = vmatprep.subr.mxu0 %v33
  %458 = vmatpush1.msra.mxu0 %v32
  %459 = vmatprep.subr.mxu0 %v41
  %460 = vmatpush1.msra.mxu0 %v40
  %461 = vmatprep.subr.mxu0 %v49
  %462 = vmatpush1.msra.mxu0 %v48
  %463 = vmatprep.subr.mxu0 %v57
  %464 = vmatpush1.msra.mxu0 %v56
  %465 = vmatprep.subr.mxu0 %v65
  %466 = vmatpush1.msra.mxu0 %v64
  %467 = vmatprep.subr.mxu0 %v73
  %468 = vmatpush1.msra.mxu0 %v72
  %469 = vmatprep.subr.mxu0 %v81
  %470 = vmatpush1.msra.mxu0 %v80
  %471 = vmatprep.subr.mxu0 %v89
  %472 = vmatpush1.msra.mxu0 %v88
  %473 = vmatprep.subr.mxu0 %v97
  %474 = vmatpush1.msra.mxu0 %v96
  %475 = vmatprep.subr.mxu0 %v105
  %476 = vmatpush1.msra.mxu0 %v104
  %477 = vmatprep.subr.mxu0 %v113
  %478 = vmatpush1.msra.mxu0 %v112
  %479 = vmatprep.subr.mxu0 %v121
  %480 = vmatpush1.msra.mxu0 %v120
  %481 = vmatprep.subr.mxu0 %v129
  %482 = vmatpush1.msra.mxu0 %v128
  %483 = vmatprep.subr.mxu0 %v137
  %484 = vmatpush1.msra.mxu0 %v136
  %485 = vmatprep.subr.mxu0 %v145
  %486 = vmatpush1.msra.mxu0 %v144
  %487 = vmatprep.subr.mxu0 0.0
  %488 = vmatpush1.msra.mxu0 0.0
  %489 = vmatprep.subr.mxu0 0.0
  %490 = vmatpush1.msra.mxu0 0.0
  %491 = vmatprep.subr.mxu0 0.0
  %492 = vmatpush1.msra.mxu0 0.0
  %493 = vmatprep.subr.mxu0 0.0
  %494 = vmatpush1.msra.mxu0 0.0
  %495 = vmatprep.subr.mxu0 0.0
  %496 = vmatpush1.msra.mxu0 0.0
  %497 = vmatprep.subr.mxu0 0.0
  %498 = vmatpush1.msra.mxu0 0.0
  %499 = vmatprep.subr.mxu0 0.0
  %500 = vmatpush1.msra.mxu0 0.0
  %501 = vmatprep.subr.mxu0 0.0
  %502 = vmatpush1.msra.mxu0 0.0
  %503 = vmatprep.subr.mxu0 0.0
  %504 = vmatpush1.msra.mxu0 0.0
  %505 = vmatprep.subr.mxu0 0.0
  %506 = vmatpush1.msra.mxu0 0.0
  %507 = vmatprep.subr.mxu0 0.0
  %508 = vmatpush1.msra.mxu0 0.0
  %509 = vmatprep.subr.mxu0 0.0
  %510 = vmatpush1.msra.mxu0 0.0
  %511 = vmatprep.subr.mxu0 0.0
  %512 = vmatpush1.msra.mxu0 0.0
  %513 = vmatprep.subr.mxu0 0.0
  %514 = vmatpush1.msra.mxu0 0.0
  %515 = vmatprep.subr.mxu0 0.0
  %516 = vmatpush1.msra.mxu0 0.0
  %517 = vmatprep.subr.mxu0 0.0
  %518 = vmatpush1.msra.mxu0 0.0
  %519 = vmatprep.mubr.f32.mxu0 0.0
  %520 = vmatmul.mubr.f32.gmra.mrb[0].mxu0 %v14
  %v521 = vpop.f32.mrb[0].mxu0
  %v522 = vadd.f32 %v175, %v521
  %v523 = vpop.f32.mrb[0].mxu0
  %v524 = vadd.f32 %v179, %v523
  %525 = vmatprep.mubr.f32.mxu0 0.0
  %526 = vmatmul.mubr.f32.gmra.mrb[0].mxu0 %v15
  %v527 = vpop.f32.mrb[0].mxu0
  %v528 = vadd.f32 %v175, %v527
  %v529 = vpop.f32.mrb[0].mxu0
  %v530 = vadd.f32 %v179, %v529
  %531 = vmatprep.mubr.f32.mxu0 0.0
  %532 = vmatmul.mubr.f32.gmra.mrb[0].mxu0 %v16
  %v533 = vpop.f32.mrb[0].mxu0
  %v534 = vadd.f32 %v175, %v533
  %v535 = vpop.f32.mrb[0].mxu0
  %v536 = vadd.f32 %v179, %v535
  %537 = vmatprep.mubr.f32.mxu0 0.0
  %538 = vmatmul.mubr.f32.gmra.mrb[0].mxu0 %v17
  %v539 = vpop.f32.mrb[0].mxu0
  %v540 = vadd.f32 %v175, %v539
  %v541 = vpop.f32.mrb[0].mxu0
  %v542 = vadd.f32 %v179, %v541
  %543 = vdwg.mxu0
  %v544 = vcombine.low %v255, %v344
  %v545 = vcombine.high %v255, %v344
  %v547 = vunpack.c.l.s4 1983009808
  %v548 = vunpack.c.0.s8 %v547
  %v549 = vlaneseq
  %v550 = vshrl.u32 %v549, 7
  %v551 = vsub.s32 %v548, %v550
  %v552 = vrot.slane %v544, %v551
  %v554 = vunpack.c.l.s4 1983009808
  %v555 = vunpack.c.0.s8 %v554
  %v556 = vlaneseq
  %v557 = vshrl.u32 %v556, 7
  %v558 = vsub.s32 %v555, %v557
  %v559 = vrot.slane %v545, %v558
  %v560 = vcombine.low %v257, %v346
  %v561 = vcombine.high %v257, %v346
  %v563 = vunpack.c.l.s4 1983009808
  %v564 = vunpack.c.0.s8 %v563
  %v565 = vlaneseq
  %v566 = vshrl.u32 %v565, 7
  %v567 = vsub.s32 %v564, %v566
  %v568 = vrot.slane %v560, %v567
  %v570 = vunpack.c.l.s4 1983009808
  %v571 = vunpack.c.0.s8 %v570
  %v572 = vlaneseq
  %v573 = vshrl.u32 %v572, 7
  %v574 = vsub.s32 %v571, %v573
  %v575 = vrot.slane %v561, %v574
  %v576 = vcombine.low %v433, %v522
  %v577 = vcombine.high %v433, %v522
  %v579 = vunpack.c.l.s4 1983009808
  %v580 = vunpack.c.0.s8 %v579
  %v581 = vlaneseq
  %v582 = vshrl.u32 %v581, 7
  %v583 = vsub.s32 %v580, %v582
  %v584 = vrot.slane %v576, %v583
  %v586 = vunpack.c.l.s4 1983009808
  %v587 = vunpack.c.0.s8 %v586
  %v588 = vlaneseq
  %v589 = vshrl.u32 %v588, 7
  %v590 = vsub.s32 %v587, %v589
  %v591 = vrot.slane %v577, %v590
  %v592 = vcombine.low %v435, %v524
  %v593 = vcombine.high %v435, %v524
  %v595 = vunpack.c.l.s4 1983009808
  %v596 = vunpack.c.0.s8 %v595
  %v597 = vlaneseq
  %v598 = vshrl.u32 %v597, 7
  %v599 = vsub.s32 %v596, %v598
  %v600 = vrot.slane %v592, %v599
  %v602 = vunpack.c.l.s4 1983009808
  %v603 = vunpack.c.0.s8 %v602
  %v604 = vlaneseq
  %v605 = vshrl.u32 %v604, 7
  %v606 = vsub.s32 %v603, %v605
  %v607 = vrot.slane %v593, %v606
  %v608 = vcombine.low %v552, %v568
  %v609 = vcombine.high %v552, %v568
  %v611 = vunpack.c.l.s4 1934713408
  %v612 = vunpack.c.0.s8 %v611
  %v613 = vlaneseq
  %v614 = vshrl.u32 %v613, 7
  %v615 = vsub.s32 %v612, %v614
  %v616 = vrot.slane %v608, %v615
  %v618 = vunpack.c.l.s4 1934713408
  %v619 = vunpack.c.0.s8 %v618
  %v620 = vlaneseq
  %v621 = vshrl.u32 %v620, 7
  %v622 = vsub.s32 %v619, %v621
  %v623 = vrot.slane %v609, %v622
  %v624 = vcombine.low %v559, %v575
  %v625 = vcombine.high %v559, %v575
  %v627 = vunpack.c.l.s4 1934713408
  %v628 = vunpack.c.0.s8 %v627
  %v629 = vlaneseq
  %v630 = vshrl.u32 %v629, 7
  %v631 = vsub.s32 %v628, %v630
  %v632 = vrot.slane %v624, %v631
  %v634 = vunpack.c.l.s4 1934713408
  %v635 = vunpack.c.0.s8 %v634
  %v636 = vlaneseq
  %v637 = vshrl.u32 %v636, 7
  %v638 = vsub.s32 %v635, %v637
  %v639 = vrot.slane %v625, %v638
  %v640 = vcombine.low %v584, %v600
  %v641 = vcombine.high %v584, %v600
  %v643 = vunpack.c.l.s4 1934713408
  %v644 = vunpack.c.0.s8 %v643
  %v645 = vlaneseq
  %v646 = vshrl.u32 %v645, 7
  %v647 = vsub.s32 %v644, %v646
  %v648 = vrot.slane %v640, %v647
  %v650 = vunpack.c.l.s4 1934713408
  %v651 = vunpack.c.0.s8 %v650
  %v652 = vlaneseq
  %v653 = vshrl.u32 %v652, 7
  %v654 = vsub.s32 %v651, %v653
  %v655 = vrot.slane %v641, %v654
  %v656 = vcombine.low %v591, %v607
  %v657 = vcombine.high %v591, %v607
  %v659 = vunpack.c.l.s4 1934713408
  %v660 = vunpack.c.0.s8 %v659
  %v661 = vlaneseq
  %v662 = vshrl.u32 %v661, 7
  %v663 = vsub.s32 %v660, %v662
  %v664 = vrot.slane %v656, %v663
  %v666 = vunpack.c.l.s4 1934713408
  %v667 = vunpack.c.0.s8 %v666
  %v668 = vlaneseq
  %v669 = vshrl.u32 %v668, 7
  %v670 = vsub.s32 %v667, %v669
  %v671 = vrot.slane %v657, %v670
  %v672 = vcombine.low %v616, %v648
  %v673 = vcombine.high %v616, %v648
  %v674 = vcombine.low %v623, %v655
  %v675 = vcombine.high %v623, %v655
  %v676 = vcombine.low %v632, %v664
  %v677 = vcombine.high %v632, %v664
  %v678 = vcombine.low %v639, %v671
  %v679 = vcombine.high %v639, %v671
  %v680 = vcombine.low %v261, %v350
  %v681 = vcombine.high %v261, %v350
  %v683 = vunpack.c.l.s4 1983009808
  %v684 = vunpack.c.0.s8 %v683
  %v685 = vlaneseq
  %v686 = vshrl.u32 %v685, 7
  %v687 = vsub.s32 %v684, %v686
  %v688 = vrot.slane %v680, %v687
  %v690 = vunpack.c.l.s4 1983009808
  %v691 = vunpack.c.0.s8 %v690
  %v692 = vlaneseq
  %v693 = vshrl.u32 %v692, 7
  %v694 = vsub.s32 %v691, %v693
  %v695 = vrot.slane %v681, %v694
  %v696 = vcombine.low %v263, %v352
  %v697 = vcombine.high %v263, %v352
  %v699 = vunpack.c.l.s4 1983009808
  %v700 = vunpack.c.0.s8 %v699
  %v701 = vlaneseq
  %v702 = vshrl.u32 %v701, 7
  %v703 = vsub.s32 %v700, %v702
  %v704 = vrot.slane %v696, %v703
  %v706 = vunpack.c.l.s4 1983009808
  %v707 = vunpack.c.0.s8 %v706
  %v708 = vlaneseq
  %v709 = vshrl.u32 %v708, 7
  %v710 = vsub.s32 %v707, %v709
  %v711 = vrot.slane %v697, %v710
  %v712 = vcombine.low %v439, %v528
  %v713 = vcombine.high %v439, %v528
  %v715 = vunpack.c.l.s4 1983009808
  %v716 = vunpack.c.0.s8 %v715
  %v717 = vlaneseq
  %v718 = vshrl.u32 %v717, 7
  %v719 = vsub.s32 %v716, %v718
  %v720 = vrot.slane %v712, %v719
  %v722 = vunpack.c.l.s4 1983009808
  %v723 = vunpack.c.0.s8 %v722
  %v724 = vlaneseq
  %v725 = vshrl.u32 %v724, 7
  %v726 = vsub.s32 %v723, %v725
  %v727 = vrot.slane %v713, %v726
  %v728 = vcombine.low %v441, %v530
  %v729 = vcombine.high %v441, %v530
  %v731 = vunpack.c.l.s4 1983009808
  %v732 = vunpack.c.0.s8 %v731
  %v733 = vlaneseq
  %v734 = vshrl.u32 %v733, 7
  %v735 = vsub.s32 %v732, %v734
  %v736 = vrot.slane %v728, %v735
  %v738 = vunpack.c.l.s4 1983009808
  %v739 = vunpack.c.0.s8 %v738
  %v740 = vlaneseq
  %v741 = vshrl.u32 %v740, 7
  %v742 = vsub.s32 %v739, %v741
  %v743 = vrot.slane %v729, %v742
  %v744 = vcombine.low %v688, %v704
  %v745 = vcombine.high %v688, %v704
  %v747 = vunpack.c.l.s4 1934713408
  %v748 = vunpack.c.0.s8 %v747
  %v749 = vlaneseq
  %v750 = vshrl.u32 %v749, 7
  %v751 = vsub.s32 %v748, %v750
  %v752 = vrot.slane %v744, %v751
  %v754 = vunpack.c.l.s4 1934713408
  %v755 = vunpack.c.0.s8 %v754
  %v756 = vlaneseq
  %v757 = vshrl.u32 %v756, 7
  %v758 = vsub.s32 %v755, %v757
  %v759 = vrot.slane %v745, %v758
  %v760 = vcombine.low %v695, %v711
  %v761 = vcombine.high %v695, %v711
  %v763 = vunpack.c.l.s4 1934713408
  %v764 = vunpack.c.0.s8 %v763
  %v765 = vlaneseq
  %v766 = vshrl.u32 %v765, 7
  %v767 = vsub.s32 %v764, %v766
  %v768 = vrot.slane %v760, %v767
  %v770 = vunpack.c.l.s4 1934713408
  %v771 = vunpack.c.0.s8 %v770
  %v772 = vlaneseq
  %v773 = vshrl.u32 %v772, 7
  %v774 = vsub.s32 %v771, %v773
  %v775 = vrot.slane %v761, %v774
  %v776 = vcombine.low %v720, %v736
  %v777 = vcombine.high %v720, %v736
  %v779 = vunpack.c.l.s4 1934713408
  %v780 = vunpack.c.0.s8 %v779
  %v781 = vlaneseq
  %v782 = vshrl.u32 %v781, 7
  %v783 = vsub.s32 %v780, %v782
  %v784 = vrot.slane %v776, %v783
  %v786 = vunpack.c.l.s4 1934713408
  %v787 = vunpack.c.0.s8 %v786
  %v788 = vlaneseq
  %v789 = vshrl.u32 %v788, 7
  %v790 = vsub.s32 %v787, %v789
  %v791 = vrot.slane %v777, %v790
  %v792 = vcombine.low %v727, %v743
  %v793 = vcombine.high %v727, %v743
  %v795 = vunpack.c.l.s4 1934713408
  %v796 = vunpack.c.0.s8 %v795
  %v797 = vlaneseq
  %v798 = vshrl.u32 %v797, 7
  %v799 = vsub.s32 %v796, %v798
  %v800 = vrot.slane %v792, %v799
  %v802 = vunpack.c.l.s4 1934713408
  %v803 = vunpack.c.0.s8 %v802
  %v804 = vlaneseq
  %v805 = vshrl.u32 %v804, 7
  %v806 = vsub.s32 %v803, %v805
  %v807 = vrot.slane %v793, %v806
  %v808 = vcombine.low %v752, %v784
  %v809 = vcombine.high %v752, %v784
  %v810 = vcombine.low %v759, %v791
  %v811 = vcombine.high %v759, %v791
  %v812 = vcombine.low %v768, %v800
  %v813 = vcombine.high %v768, %v800
  %v814 = vcombine.low %v775, %v807
  %v815 = vcombine.high %v775, %v807
  %v816 = vcombine.low %v267, %v356
  %v817 = vcombine.high %v267, %v356
  %v819 = vunpack.c.l.s4 1983009808
  %v820 = vunpack.c.0.s8 %v819
  %v821 = vlaneseq
  %v822 = vshrl.u32 %v821, 7
  %v823 = vsub.s32 %v820, %v822
  %v824 = vrot.slane %v816, %v823
  %v826 = vunpack.c.l.s4 1983009808
  %v827 = vunpack.c.0.s8 %v826
  %v828 = vlaneseq
  %v829 = vshrl.u32 %v828, 7
  %v830 = vsub.s32 %v827, %v829
  %v831 = vrot.slane %v817, %v830
  %v832 = vcombine.low %v269, %v358
  %v833 = vcombine.high %v269, %v358
  %v835 = vunpack.c.l.s4 1983009808
  %v836 = vunpack.c.0.s8 %v835
  %v837 = vlaneseq
  %v838 = vshrl.u32 %v837, 7
  %v839 = vsub.s32 %v836, %v838
  %v840 = vrot.slane %v832, %v839
  %v842 = vunpack.c.l.s4 1983009808
  %v843 = vunpack.c.0.s8 %v842
  %v844 = vlaneseq
  %v845 = vshrl.u32 %v844, 7
  %v846 = vsub.s32 %v843, %v845
  %v847 = vrot.slane %v833, %v846
  %v848 = vcombine.low %v445, %v534
  %v849 = vcombine.high %v445, %v534
  %v851 = vunpack.c.l.s4 1983009808
  %v852 = vunpack.c.0.s8 %v851
  %v853 = vlaneseq
  %v854 = vshrl.u32 %v853, 7
  %v855 = vsub.s32 %v852, %v854
  %v856 = vrot.slane %v848, %v855
  %v858 = vunpack.c.l.s4 1983009808
  %v859 = vunpack.c.0.s8 %v858
  %v860 = vlaneseq
  %v861 = vshrl.u32 %v860, 7
  %v862 = vsub.s32 %v859, %v861
  %v863 = vrot.slane %v849, %v862
  %v864 = vcombine.low %v447, %v536
  %v865 = vcombine.high %v447, %v536
  %v867 = vunpack.c.l.s4 1983009808
  %v868 = vunpack.c.0.s8 %v867
  %v869 = vlaneseq
  %v870 = vshrl.u32 %v869, 7
  %v871 = vsub.s32 %v868, %v870
  %v872 = vrot.slane %v864, %v871
  %v874 = vunpack.c.l.s4 1983009808
  %v875 = vunpack.c.0.s8 %v874
  %v876 = vlaneseq
  %v877 = vshrl.u32 %v876, 7
  %v878 = vsub.s32 %v875, %v877
  %v879 = vrot.slane %v865, %v878
  %v880 = vcombine.low %v824, %v840
  %v881 = vcombine.high %v824, %v840
  %v883 = vunpack.c.l.s4 1934713408
  %v884 = vunpack.c.0.s8 %v883
  %v885 = vlaneseq
  %v886 = vshrl.u32 %v885, 7
  %v887 = vsub.s32 %v884, %v886
  %v888 = vrot.slane %v880, %v887
  %v890 = vunpack.c.l.s4 1934713408
  %v891 = vunpack.c.0.s8 %v890
  %v892 = vlaneseq
  %v893 = vshrl.u32 %v892, 7
  %v894 = vsub.s32 %v891, %v893
  %v895 = vrot.slane %v881, %v894
  %v896 = vcombine.low %v831, %v847
  %v897 = vcombine.high %v831, %v847
  %v899 = vunpack.c.l.s4 1934713408
  %v900 = vunpack.c.0.s8 %v899
  %v901 = vlaneseq
  %v902 = vshrl.u32 %v901, 7
  %v903 = vsub.s32 %v900, %v902
  %v904 = vrot.slane %v896, %v903
  %v906 = vunpack.c.l.s4 1934713408
  %v907 = vunpack.c.0.s8 %v906
  %v908 = vlaneseq
  %v909 = vshrl.u32 %v908, 7
  %v910 = vsub.s32 %v907, %v909
  %v911 = vrot.slane %v897, %v910
  %v912 = vcombine.low %v856, %v872
  %v913 = vcombine.high %v856, %v872
  %v915 = vunpack.c.l.s4 1934713408
  %v916 = vunpack.c.0.s8 %v915
  %v917 = vlaneseq
  %v918 = vshrl.u32 %v917, 7
  %v919 = vsub.s32 %v916, %v918
  %v920 = vrot.slane %v912, %v919
  %v922 = vunpack.c.l.s4 1934713408
  %v923 = vunpack.c.0.s8 %v922
  %v924 = vlaneseq
  %v925 = vshrl.u32 %v924, 7
  %v926 = vsub.s32 %v923, %v925
  %v927 = vrot.slane %v913, %v926
  %v928 = vcombine.low %v863, %v879
  %v929 = vcombine.high %v863, %v879
  %v931 = vunpack.c.l.s4 1934713408
  %v932 = vunpack.c.0.s8 %v931
  %v933 = vlaneseq
  %v934 = vshrl.u32 %v933, 7
  %v935 = vsub.s32 %v932, %v934
  %v936 = vrot.slane %v928, %v935
  %v938 = vunpack.c.l.s4 1934713408
  %v939 = vunpack.c.0.s8 %v938
  %v940 = vlaneseq
  %v941 = vshrl.u32 %v940, 7
  %v942 = vsub.s32 %v939, %v941
  %v943 = vrot.slane %v929, %v942
  %v944 = vcombine.low %v888, %v920
  %v945 = vcombine.high %v888, %v920
  %v946 = vcombine.low %v895, %v927
  %v947 = vcombine.high %v895, %v927
  %v948 = vcombine.low %v904, %v936
  %v949 = vcombine.high %v904, %v936
  %v950 = vcombine.low %v911, %v943
  %v951 = vcombine.high %v911, %v943
  %v952 = vcombine.low %v273, %v362
  %v953 = vcombine.high %v273, %v362
  %v955 = vunpack.c.l.s4 1983009808
  %v956 = vunpack.c.0.s8 %v955
  %v957 = vlaneseq
  %v958 = vshrl.u32 %v957, 7
  %v959 = vsub.s32 %v956, %v958
  %v960 = vrot.slane %v952, %v959
  %v962 = vunpack.c.l.s4 1983009808
  %v963 = vunpack.c.0.s8 %v962
  %v964 = vlaneseq
  %v965 = vshrl.u32 %v964, 7
  %v966 = vsub.s32 %v963, %v965
  %v967 = vrot.slane %v953, %v966
  %v968 = vcombine.low %v275, %v364
  %v969 = vcombine.high %v275, %v364
  %v971 = vunpack.c.l.s4 1983009808
  %v972 = vunpack.c.0.s8 %v971
  %v973 = vlaneseq
  %v974 = vshrl.u32 %v973, 7
  %v975 = vsub.s32 %v972, %v974
  %v976 = vrot.slane %v968, %v975
  %v978 = vunpack.c.l.s4 1983009808
  %v979 = vunpack.c.0.s8 %v978
  %v980 = vlaneseq
  %v981 = vshrl.u32 %v980, 7
  %v982 = vsub.s32 %v979, %v981
  %v983 = vrot.slane %v969, %v982
  %v984 = vcombine.low %v451, %v540
  %v985 = vcombine.high %v451, %v540
  %v987 = vunpack.c.l.s4 1983009808
  %v988 = vunpack.c.0.s8 %v987
  %v989 = vlaneseq
  %v990 = vshrl.u32 %v989, 7
  %v991 = vsub.s32 %v988, %v990
  %v992 = vrot.slane %v984, %v991
  %v994 = vunpack.c.l.s4 1983009808
  %v995 = vunpack.c.0.s8 %v994
  %v996 = vlaneseq
  %v997 = vshrl.u32 %v996, 7
  %v998 = vsub.s32 %v995, %v997
  %v999 = vrot.slane %v985, %v998
  %v1000 = vcombine.low %v453, %v542
  %v1001 = vcombine.high %v453, %v542
  %v1003 = vunpack.c.l.s4 1983009808
  %v1004 = vunpack.c.0.s8 %v1003
  %v1005 = vlaneseq
  %v1006 = vshrl.u32 %v1005, 7
  %v1007 = vsub.s32 %v1004, %v1006
  %v1008 = vrot.slane %v1000, %v1007
  %v1010 = vunpack.c.l.s4 1983009808
  %v1011 = vunpack.c.0.s8 %v1010
  %v1012 = vlaneseq
  %v1013 = vshrl.u32 %v1012, 7
  %v1014 = vsub.s32 %v1011, %v1013
  %v1015 = vrot.slane %v1001, %v1014
  %v1016 = vcombine.low %v960, %v976
  %v1017 = vcombine.high %v960, %v976
  %v1019 = vunpack.c.l.s4 1934713408
  %v1020 = vunpack.c.0.s8 %v1019
  %v1021 = vlaneseq
  %v1022 = vshrl.u32 %v1021, 7
  %v1023 = vsub.s32 %v1020, %v1022
  %v1024 = vrot.slane %v1016, %v1023
  %v1026 = vunpack.c.l.s4 1934713408
  %v1027 = vunpack.c.0.s8 %v1026
  %v1028 = vlaneseq
  %v1029 = vshrl.u32 %v1028, 7
  %v1030 = vsub.s32 %v1027, %v1029
  %v1031 = vrot.slane %v1017, %v1030
  %v1032 = vcombine.low %v967, %v983
  %v1033 = vcombine.high %v967, %v983
  %v1035 = vunpack.c.l.s4 1934713408
  %v1036 = vunpack.c.0.s8 %v1035
  %v1037 = vlaneseq
  %v1038 = vshrl.u32 %v1037, 7
  %v1039 = vsub.s32 %v1036, %v1038
  %v1040 = vrot.slane %v1032, %v1039
  %v1042 = vunpack.c.l.s4 1934713408
  %v1043 = vunpack.c.0.s8 %v1042
  %v1044 = vlaneseq
  %v1045 = vshrl.u32 %v1044, 7
  %v1046 = vsub.s32 %v1043, %v1045
  %v1047 = vrot.slane %v1033, %v1046
  %v1048 = vcombine.low %v992, %v1008
  %v1049 = vcombine.high %v992, %v1008
  %v1051 = vunpack.c.l.s4 1934713408
  %v1052 = vunpack.c.0.s8 %v1051
  %v1053 = vlaneseq
  %v1054 = vshrl.u32 %v1053, 7
  %v1055 = vsub.s32 %v1052, %v1054
  %v1056 = vrot.slane %v1048, %v1055
  %v1058 = vunpack.c.l.s4 1934713408
  %v1059 = vunpack.c.0.s8 %v1058
  %v1060 = vlaneseq
  %v1061 = vshrl.u32 %v1060, 7
  %v1062 = vsub.s32 %v1059, %v1061
  %v1063 = vrot.slane %v1049, %v1062
  %v1064 = vcombine.low %v999, %v1015
  %v1065 = vcombine.high %v999, %v1015
  %v1067 = vunpack.c.l.s4 1934713408
  %v1068 = vunpack.c.0.s8 %v1067
  %v1069 = vlaneseq
  %v1070 = vshrl.u32 %v1069, 7
  %v1071 = vsub.s32 %v1068, %v1070
  %v1072 = vrot.slane %v1064, %v1071
  %v1074 = vunpack.c.l.s4 1934713408
  %v1075 = vunpack.c.0.s8 %v1074
  %v1076 = vlaneseq
  %v1077 = vshrl.u32 %v1076, 7
  %v1078 = vsub.s32 %v1075, %v1077
  %v1079 = vrot.slane %v1065, %v1078
  %v1080 = vcombine.low %v1024, %v1056
  %v1081 = vcombine.high %v1024, %v1056
  %v1082 = vcombine.low %v1031, %v1063
  %v1083 = vcombine.high %v1031, %v1063
  %v1084 = vcombine.low %v1040, %v1072
  %v1085 = vcombine.high %v1040, %v1072
  %v1086 = vcombine.low %v1047, %v1079
  %v1087 = vcombine.high %v1047, %v1079
  %v1088 = vrot.slane %v672, 4
  %v1089 = vmax.f32 %v672, %v1088
  %v1090 = vrot.slane %v1089, 2
  %v1091 = vmax.f32 %v1089, %v1090
  %v1092 = vrot.slane %v1091, 1
  %v1093 = vmax.f32 %v1091, %v1092
  %v1094 = vrot.slane %v673, 4
  %v1095 = vmax.f32 %v673, %v1094
  %v1096 = vrot.slane %v1095, 2
  %v1097 = vmax.f32 %v1095, %v1096
  %v1098 = vrot.slane %v1097, 1
  %v1099 = vmax.f32 %v1097, %v1098
  %v1100 = vrot.slane %v674, 4
  %v1101 = vmax.f32 %v674, %v1100
  %v1102 = vrot.slane %v1101, 2
  %v1103 = vmax.f32 %v1101, %v1102
  %v1104 = vrot.slane %v1103, 1
  %v1105 = vmax.f32 %v1103, %v1104
  %v1106 = vrot.slane %v675, 4
  %v1107 = vmax.f32 %v675, %v1106
  %v1108 = vrot.slane %v1107, 2
  %v1109 = vmax.f32 %v1107, %v1108
  %v1110 = vrot.slane %v1109, 1
  %v1111 = vmax.f32 %v1109, %v1110
  %v1112 = vrot.slane %v676, 4
  %v1113 = vmax.f32 %v676, %v1112
  %v1114 = vrot.slane %v1113, 2
  %v1115 = vmax.f32 %v1113, %v1114
  %v1116 = vrot.slane %v1115, 1
  %v1117 = vmax.f32 %v1115, %v1116
  %v1118 = vrot.slane %v677, 4
  %v1119 = vmax.f32 %v677, %v1118
  %v1120 = vrot.slane %v1119, 2
  %v1121 = vmax.f32 %v1119, %v1120
  %v1122 = vrot.slane %v1121, 1
  %v1123 = vmax.f32 %v1121, %v1122
  %v1124 = vrot.slane %v678, 4
  %v1125 = vmax.f32 %v678, %v1124
  %v1126 = vrot.slane %v1125, 2
  %v1127 = vmax.f32 %v1125, %v1126
  %v1128 = vrot.slane %v1127, 1
  %v1129 = vmax.f32 %v1127, %v1128
  %v1130 = vrot.slane %v679, 4
  %v1131 = vmax.f32 %v679, %v1130
  %v1132 = vrot.slane %v1131, 2
  %v1133 = vmax.f32 %v1131, %v1132
  %v1134 = vrot.slane %v1133, 1
  %v1135 = vmax.f32 %v1133, %v1134
  %v1136 = vrot.slane %v808, 4
  %v1137 = vmax.f32 %v808, %v1136
  %v1138 = vrot.slane %v1137, 2
  %v1139 = vmax.f32 %v1137, %v1138
  %v1140 = vrot.slane %v1139, 1
  %v1141 = vmax.f32 %v1139, %v1140
  %v1142 = vrot.slane %v809, 4
  %v1143 = vmax.f32 %v809, %v1142
  %v1144 = vrot.slane %v1143, 2
  %v1145 = vmax.f32 %v1143, %v1144
  %v1146 = vrot.slane %v1145, 1
  %v1147 = vmax.f32 %v1145, %v1146
  %v1148 = vrot.slane %v810, 4
  %v1149 = vmax.f32 %v810, %v1148
  %v1150 = vrot.slane %v1149, 2
  %v1151 = vmax.f32 %v1149, %v1150
  %v1152 = vrot.slane %v1151, 1
  %v1153 = vmax.f32 %v1151, %v1152
  %v1154 = vrot.slane %v811, 4
  %v1155 = vmax.f32 %v811, %v1154
  %v1156 = vrot.slane %v1155, 2
  %v1157 = vmax.f32 %v1155, %v1156
  %v1158 = vrot.slane %v1157, 1
  %v1159 = vmax.f32 %v1157, %v1158
  %v1160 = vrot.slane %v812, 4
  %v1161 = vmax.f32 %v812, %v1160
  %v1162 = vrot.slane %v1161, 2
  %v1163 = vmax.f32 %v1161, %v1162
  %v1164 = vrot.slane %v1163, 1
  %v1165 = vmax.f32 %v1163, %v1164
  %v1166 = vrot.slane %v813, 4
  %v1167 = vmax.f32 %v813, %v1166
  %v1168 = vrot.slane %v1167, 2
  %v1169 = vmax.f32 %v1167, %v1168
  %v1170 = vrot.slane %v1169, 1
  %v1171 = vmax.f32 %v1169, %v1170
  %v1172 = vrot.slane %v814, 4
  %v1173 = vmax.f32 %v814, %v1172
  %v1174 = vrot.slane %v1173, 2
  %v1175 = vmax.f32 %v1173, %v1174
  %v1176 = vrot.slane %v1175, 1
  %v1177 = vmax.f32 %v1175, %v1176
  %v1178 = vrot.slane %v815, 4
  %v1179 = vmax.f32 %v815, %v1178
  %v1180 = vrot.slane %v1179, 2
  %v1181 = vmax.f32 %v1179, %v1180
  %v1182 = vrot.slane %v1181, 1
  %v1183 = vmax.f32 %v1181, %v1182
  %v1184 = vrot.slane %v944, 4
  %v1185 = vmax.f32 %v944, %v1184
  %v1186 = vrot.slane %v1185, 2
  %v1187 = vmax.f32 %v1185, %v1186
  %v1188 = vrot.slane %v1187, 1
  %v1189 = vmax.f32 %v1187, %v1188
  %v1190 = vrot.slane %v945, 4
  %v1191 = vmax.f32 %v945, %v1190
  %v1192 = vrot.slane %v1191, 2
  %v1193 = vmax.f32 %v1191, %v1192
  %v1194 = vrot.slane %v1193, 1
  %v1195 = vmax.f32 %v1193, %v1194
  %v1196 = vrot.slane %v946, 4
  %v1197 = vmax.f32 %v946, %v1196
  %v1198 = vrot.slane %v1197, 2
  %v1199 = vmax.f32 %v1197, %v1198
  %v1200 = vrot.slane %v1199, 1
  %v1201 = vmax.f32 %v1199, %v1200
  %v1202 = vrot.slane %v947, 4
  %v1203 = vmax.f32 %v947, %v1202
  %v1204 = vrot.slane %v1203, 2
  %v1205 = vmax.f32 %v1203, %v1204
  %v1206 = vrot.slane %v1205, 1
  %v1207 = vmax.f32 %v1205, %v1206
  %v1208 = vrot.slane %v948, 4
  %v1209 = vmax.f32 %v948, %v1208
  %v1210 = vrot.slane %v1209, 2
  %v1211 = vmax.f32 %v1209, %v1210
  %v1212 = vrot.slane %v1211, 1
  %v1213 = vmax.f32 %v1211, %v1212
  %v1214 = vrot.slane %v949, 4
  %v1215 = vmax.f32 %v949, %v1214
  %v1216 = vrot.slane %v1215, 2
  %v1217 = vmax.f32 %v1215, %v1216
  %v1218 = vrot.slane %v1217, 1
  %v1219 = vmax.f32 %v1217, %v1218
  %v1220 = vrot.slane %v950, 4
  %v1221 = vmax.f32 %v950, %v1220
  %v1222 = vrot.slane %v1221, 2
  %v1223 = vmax.f32 %v1221, %v1222
  %v1224 = vrot.slane %v1223, 1
  %v1225 = vmax.f32 %v1223, %v1224
  %v1226 = vrot.slane %v951, 4
  %v1227 = vmax.f32 %v951, %v1226
  %v1228 = vrot.slane %v1227, 2
  %v1229 = vmax.f32 %v1227, %v1228
  %v1230 = vrot.slane %v1229, 1
  %v1231 = vmax.f32 %v1229, %v1230
  %v1232 = vrot.slane %v1080, 4
  %v1233 = vmax.f32 %v1080, %v1232
  %v1234 = vrot.slane %v1233, 2
  %v1235 = vmax.f32 %v1233, %v1234
  %v1236 = vrot.slane %v1235, 1
  %v1237 = vmax.f32 %v1235, %v1236
  %v1238 = vrot.slane %v1081, 4
  %v1239 = vmax.f32 %v1081, %v1238
  %v1240 = vrot.slane %v1239, 2
  %v1241 = vmax.f32 %v1239, %v1240
  %v1242 = vrot.slane %v1241, 1
  %v1243 = vmax.f32 %v1241, %v1242
  %v1244 = vrot.slane %v1082, 4
  %v1245 = vmax.f32 %v1082, %v1244
  %v1246 = vrot.slane %v1245, 2
  %v1247 = vmax.f32 %v1245, %v1246
  %v1248 = vrot.slane %v1247, 1
  %v1249 = vmax.f32 %v1247, %v1248
  %v1250 = vrot.slane %v1083, 4
  %v1251 = vmax.f32 %v1083, %v1250
  %v1252 = vrot.slane %v1251, 2
  %v1253 = vmax.f32 %v1251, %v1252
  %v1254 = vrot.slane %v1253, 1
  %v1255 = vmax.f32 %v1253, %v1254
  %v1256 = vrot.slane %v1084, 4
  %v1257 = vmax.f32 %v1084, %v1256
  %v1258 = vrot.slane %v1257, 2
  %v1259 = vmax.f32 %v1257, %v1258
  %v1260 = vrot.slane %v1259, 1
  %v1261 = vmax.f32 %v1259, %v1260
  %v1262 = vrot.slane %v1085, 4
  %v1263 = vmax.f32 %v1085, %v1262
  %v1264 = vrot.slane %v1263, 2
  %v1265 = vmax.f32 %v1263, %v1264
  %v1266 = vrot.slane %v1265, 1
  %v1267 = vmax.f32 %v1265, %v1266
  %v1268 = vrot.slane %v1086, 4
  %v1269 = vmax.f32 %v1086, %v1268
  %v1270 = vrot.slane %v1269, 2
  %v1271 = vmax.f32 %v1269, %v1270
  %v1272 = vrot.slane %v1271, 1
  %v1273 = vmax.f32 %v1271, %v1272
  %v1274 = vrot.slane %v1087, 4
  %v1275 = vmax.f32 %v1087, %v1274
  %v1276 = vrot.slane %v1275, 2
  %v1277 = vmax.f32 %v1275, %v1276
  %v1278 = vrot.slane %v1277, 1
  %v1279 = vmax.f32 %v1277, %v1278
  %v1280 = vsub.f32 %v672, %v1093
  %v1281 = vsub.f32 %v673, %v1099
  %v1282 = vsub.f32 %v674, %v1105
  %v1283 = vsub.f32 %v675, %v1111
  %v1284 = vsub.f32 %v676, %v1117
  %v1285 = vsub.f32 %v677, %v1123
  %v1286 = vsub.f32 %v678, %v1129
  %v1287 = vsub.f32 %v679, %v1135
  %v1288 = vsub.f32 %v808, %v1141
  %v1289 = vsub.f32 %v809, %v1147
  %v1290 = vsub.f32 %v810, %v1153
  %v1291 = vsub.f32 %v811, %v1159
  %v1292 = vsub.f32 %v812, %v1165
  %v1293 = vsub.f32 %v813, %v1171
  %v1294 = vsub.f32 %v814, %v1177
  %v1295 = vsub.f32 %v815, %v1183
  %v1296 = vsub.f32 %v944, %v1189
  %v1297 = vsub.f32 %v945, %v1195
  %v1298 = vsub.f32 %v946, %v1201
  %v1299 = vsub.f32 %v947, %v1207
  %v1300 = vsub.f32 %v948, %v1213
  %v1301 = vsub.f32 %v949, %v1219
  %v1302 = vsub.f32 %v950, %v1225
  %v1303 = vsub.f32 %v951, %v1231
  %v1304 = vsub.f32 %v1080, %v1237
  %v1305 = vsub.f32 %v1081, %v1243
  %v1306 = vsub.f32 %v1082, %v1249
  %v1307 = vsub.f32 %v1083, %v1255
  %v1308 = vsub.f32 %v1084, %v1261
  %v1309 = vsub.f32 %v1085, %v1267
  %v1310 = vsub.f32 %v1086, %v1273
  %v1311 = vsub.f32 %v1087, %v1279
  %v1312 = vmul.f32 %v1280, 1.442695
  %v1313 = vpow.pop %v1312
  %v1314 = vmul.f32 %v1281, 1.442695
  %v1315 = vpow.pop %v1314
  %v1316 = vmul.f32 %v1282, 1.442695
  %v1317 = vpow.pop %v1316
  %v1318 = vmul.f32 %v1283, 1.442695
  %v1319 = vpow.pop %v1318
  %v1320 = vmul.f32 %v1284, 1.442695
  %v1321 = vpow.pop %v1320
  %v1322 = vmul.f32 %v1285, 1.442695
  %v1323 = vpow.pop %v1322
  %v1324 = vmul.f32 %v1286, 1.442695
  %v1325 = vpow.pop %v1324
  %v1326 = vmul.f32 %v1287, 1.442695
  %v1327 = vpow.pop %v1326
  %v1328 = vmul.f32 %v1288, 1.442695
  %v1329 = vpow.pop %v1328
  %v1330 = vmul.f32 %v1289, 1.442695
  %v1331 = vpow.pop %v1330
  %v1332 = vmul.f32 %v1290, 1.442695
  %v1333 = vpow.pop %v1332
  %v1334 = vmul.f32 %v1291, 1.442695
  %v1335 = vpow.pop %v1334
  %v1336 = vmul.f32 %v1292, 1.442695
  %v1337 = vpow.pop %v1336
  %v1338 = vmul.f32 %v1293, 1.442695
  %v1339 = vpow.pop %v1338
  %v1340 = vmul.f32 %v1294, 1.442695
  %v1341 = vpow.pop %v1340
  %v1342 = vmul.f32 %v1295, 1.442695
  %v1343 = vpow.pop %v1342
  %v1344 = vmul.f32 %v1296, 1.442695
  %v1345 = vpow.pop %v1344
  %v1346 = vmul.f32 %v1297, 1.442695
  %v1347 = vpow.pop %v1346
  %v1348 = vmul.f32 %v1298, 1.442695
  %v1349 = vpow.pop %v1348
  %v1350 = vmul.f32 %v1299, 1.442695
  %v1351 = vpow.pop %v1350
  %v1352 = vmul.f32 %v1300, 1.442695
  %v1353 = vpow.pop %v1352
  %v1354 = vmul.f32 %v1301, 1.442695
  %v1355 = vpow.pop %v1354
  %v1356 = vmul.f32 %v1302, 1.442695
  %v1357 = vpow.pop %v1356
  %v1358 = vmul.f32 %v1303, 1.442695
  %v1359 = vpow.pop %v1358
  %v1360 = vmul.f32 %v1304, 1.442695
  %v1361 = vpow.pop %v1360
  %v1362 = vmul.f32 %v1305, 1.442695
  %v1363 = vpow.pop %v1362
  %v1364 = vmul.f32 %v1306, 1.442695
  %v1365 = vpow.pop %v1364
  %v1366 = vmul.f32 %v1307, 1.442695
  %v1367 = vpow.pop %v1366
  %v1368 = vmul.f32 %v1308, 1.442695
  %v1369 = vpow.pop %v1368
  %v1370 = vmul.f32 %v1309, 1.442695
  %v1371 = vpow.pop %v1370
  %v1372 = vmul.f32 %v1310, 1.442695
  %v1373 = vpow.pop %v1372
  %v1374 = vmul.f32 %v1311, 1.442695
  %v1375 = vpow.pop %v1374
  %v1376 = vrot.slane %v1313, 4
  %v1377 = vadd.f32 %v1313, %v1376
  %v1378 = vrot.slane %v1377, 2
  %v1379 = vadd.f32 %v1377, %v1378
  %v1380 = vrot.slane %v1379, 1
  %v1381 = vadd.f32 %v1379, %v1380
  %v1382 = vrot.slane %v1315, 4
  %v1383 = vadd.f32 %v1315, %v1382
  %v1384 = vrot.slane %v1383, 2
  %v1385 = vadd.f32 %v1383, %v1384
  %v1386 = vrot.slane %v1385, 1
  %v1387 = vadd.f32 %v1385, %v1386
  %v1388 = vrot.slane %v1317, 4
  %v1389 = vadd.f32 %v1317, %v1388
  %v1390 = vrot.slane %v1389, 2
  %v1391 = vadd.f32 %v1389, %v1390
  %v1392 = vrot.slane %v1391, 1
  %v1393 = vadd.f32 %v1391, %v1392
  %v1394 = vrot.slane %v1319, 4
  %v1395 = vadd.f32 %v1319, %v1394
  %v1396 = vrot.slane %v1395, 2
  %v1397 = vadd.f32 %v1395, %v1396
  %v1398 = vrot.slane %v1397, 1
  %v1399 = vadd.f32 %v1397, %v1398
  %v1400 = vrot.slane %v1321, 4
  %v1401 = vadd.f32 %v1321, %v1400
  %v1402 = vrot.slane %v1401, 2
  %v1403 = vadd.f32 %v1401, %v1402
  %v1404 = vrot.slane %v1403, 1
  %v1405 = vadd.f32 %v1403, %v1404
  %v1406 = vrot.slane %v1323, 4
  %v1407 = vadd.f32 %v1323, %v1406
  %v1408 = vrot.slane %v1407, 2
  %v1409 = vadd.f32 %v1407, %v1408
  %v1410 = vrot.slane %v1409, 1
  %v1411 = vadd.f32 %v1409, %v1410
  %v1412 = vrot.slane %v1325, 4
  %v1413 = vadd.f32 %v1325, %v1412
  %v1414 = vrot.slane %v1413, 2
  %v1415 = vadd.f32 %v1413, %v1414
  %v1416 = vrot.slane %v1415, 1
  %v1417 = vadd.f32 %v1415, %v1416
  %v1418 = vrot.slane %v1327, 4
  %v1419 = vadd.f32 %v1327, %v1418
  %v1420 = vrot.slane %v1419, 2
  %v1421 = vadd.f32 %v1419, %v1420
  %v1422 = vrot.slane %v1421, 1
  %v1423 = vadd.f32 %v1421, %v1422
  %v1424 = vrot.slane %v1329, 4
  %v1425 = vadd.f32 %v1329, %v1424
  %v1426 = vrot.slane %v1425, 2
  %v1427 = vadd.f32 %v1425, %v1426
  %v1428 = vrot.slane %v1427, 1
  %v1429 = vadd.f32 %v1427, %v1428
  %v1430 = vrot.slane %v1331, 4
  %v1431 = vadd.f32 %v1331, %v1430
  %v1432 = vrot.slane %v1431, 2
  %v1433 = vadd.f32 %v1431, %v1432
  %v1434 = vrot.slane %v1433, 1
  %v1435 = vadd.f32 %v1433, %v1434
  %v1436 = vrot.slane %v1333, 4
  %v1437 = vadd.f32 %v1333, %v1436
  %v1438 = vrot.slane %v1437, 2
  %v1439 = vadd.f32 %v1437, %v1438
  %v1440 = vrot.slane %v1439, 1
  %v1441 = vadd.f32 %v1439, %v1440
  %v1442 = vrot.slane %v1335, 4
  %v1443 = vadd.f32 %v1335, %v1442
  %v1444 = vrot.slane %v1443, 2
  %v1445 = vadd.f32 %v1443, %v1444
  %v1446 = vrot.slane %v1445, 1
  %v1447 = vadd.f32 %v1445, %v1446
  %v1448 = vrot.slane %v1337, 4
  %v1449 = vadd.f32 %v1337, %v1448
  %v1450 = vrot.slane %v1449, 2
  %v1451 = vadd.f32 %v1449, %v1450
  %v1452 = vrot.slane %v1451, 1
  %v1453 = vadd.f32 %v1451, %v1452
  %v1454 = vrot.slane %v1339, 4
  %v1455 = vadd.f32 %v1339, %v1454
  %v1456 = vrot.slane %v1455, 2
  %v1457 = vadd.f32 %v1455, %v1456
  %v1458 = vrot.slane %v1457, 1
  %v1459 = vadd.f32 %v1457, %v1458
  %v1460 = vrot.slane %v1341, 4
  %v1461 = vadd.f32 %v1341, %v1460
  %v1462 = vrot.slane %v1461, 2
  %v1463 = vadd.f32 %v1461, %v1462
  %v1464 = vrot.slane %v1463, 1
  %v1465 = vadd.f32 %v1463, %v1464
  %v1466 = vrot.slane %v1343, 4
  %v1467 = vadd.f32 %v1343, %v1466
  %v1468 = vrot.slane %v1467, 2
  %v1469 = vadd.f32 %v1467, %v1468
  %v1470 = vrot.slane %v1469, 1
  %v1471 = vadd.f32 %v1469, %v1470
  %v1472 = vrot.slane %v1345, 4
  %v1473 = vadd.f32 %v1345, %v1472
  %v1474 = vrot.slane %v1473, 2
  %v1475 = vadd.f32 %v1473, %v1474
  %v1476 = vrot.slane %v1475, 1
  %v1477 = vadd.f32 %v1475, %v1476
  %v1478 = vrot.slane %v1347, 4
  %v1479 = vadd.f32 %v1347, %v1478
  %v1480 = vrot.slane %v1479, 2
  %v1481 = vadd.f32 %v1479, %v1480
  %v1482 = vrot.slane %v1481, 1
  %v1483 = vadd.f32 %v1481, %v1482
  %v1484 = vrot.slane %v1349, 4
  %v1485 = vadd.f32 %v1349, %v1484
  %v1486 = vrot.slane %v1485, 2
  %v1487 = vadd.f32 %v1485, %v1486
  %v1488 = vrot.slane %v1487, 1
  %v1489 = vadd.f32 %v1487, %v1488
  %v1490 = vrot.slane %v1351, 4
  %v1491 = vadd.f32 %v1351, %v1490
  %v1492 = vrot.slane %v1491, 2
  %v1493 = vadd.f32 %v1491, %v1492
  %v1494 = vrot.slane %v1493, 1
  %v1495 = vadd.f32 %v1493, %v1494
  %v1496 = vrot.slane %v1353, 4
  %v1497 = vadd.f32 %v1353, %v1496
  %v1498 = vrot.slane %v1497, 2
  %v1499 = vadd.f32 %v1497, %v1498
  %v1500 = vrot.slane %v1499, 1
  %v1501 = vadd.f32 %v1499, %v1500
  %v1502 = vrot.slane %v1355, 4
  %v1503 = vadd.f32 %v1355, %v1502
  %v1504 = vrot.slane %v1503, 2
  %v1505 = vadd.f32 %v1503, %v1504
  %v1506 = vrot.slane %v1505, 1
  %v1507 = vadd.f32 %v1505, %v1506
  %v1508 = vrot.slane %v1357, 4
  %v1509 = vadd.f32 %v1357, %v1508
  %v1510 = vrot.slane %v1509, 2
  %v1511 = vadd.f32 %v1509, %v1510
  %v1512 = vrot.slane %v1511, 1
  %v1513 = vadd.f32 %v1511, %v1512
  %v1514 = vrot.slane %v1359, 4
  %v1515 = vadd.f32 %v1359, %v1514
  %v1516 = vrot.slane %v1515, 2
  %v1517 = vadd.f32 %v1515, %v1516
  %v1518 = vrot.slane %v1517, 1
  %v1519 = vadd.f32 %v1517, %v1518
  %v1520 = vrot.slane %v1361, 4
  %v1521 = vadd.f32 %v1361, %v1520
  %v1522 = vrot.slane %v1521, 2
  %v1523 = vadd.f32 %v1521, %v1522
  %v1524 = vrot.slane %v1523, 1
  %v1525 = vadd.f32 %v1523, %v1524
  %v1526 = vrot.slane %v1363, 4
  %v1527 = vadd.f32 %v1363, %v1526
  %v1528 = vrot.slane %v1527, 2
  %v1529 = vadd.f32 %v1527, %v1528
  %v1530 = vrot.slane %v1529, 1
  %v1531 = vadd.f32 %v1529, %v1530
  %v1532 = vrot.slane %v1365, 4
  %v1533 = vadd.f32 %v1365, %v1532
  %v1534 = vrot.slane %v1533, 2
  %v1535 = vadd.f32 %v1533, %v1534
  %v1536 = vrot.slane %v1535, 1
  %v1537 = vadd.f32 %v1535, %v1536
  %v1538 = vrot.slane %v1367, 4
  %v1539 = vadd.f32 %v1367, %v1538
  %v1540 = vrot.slane %v1539, 2
  %v1541 = vadd.f32 %v1539, %v1540
  %v1542 = vrot.slane %v1541, 1
  %v1543 = vadd.f32 %v1541, %v1542
  %v1544 = vrot.slane %v1369, 4
  %v1545 = vadd.f32 %v1369, %v1544
  %v1546 = vrot.slane %v1545, 2
  %v1547 = vadd.f32 %v1545, %v1546
  %v1548 = vrot.slane %v1547, 1
  %v1549 = vadd.f32 %v1547, %v1548
  %v1550 = vrot.slane %v1371, 4
  %v1551 = vadd.f32 %v1371, %v1550
  %v1552 = vrot.slane %v1551, 2
  %v1553 = vadd.f32 %v1551, %v1552
  %v1554 = vrot.slane %v1553, 1
  %v1555 = vadd.f32 %v1553, %v1554
  %v1556 = vrot.slane %v1373, 4
  %v1557 = vadd.f32 %v1373, %v1556
  %v1558 = vrot.slane %v1557, 2
  %v1559 = vadd.f32 %v1557, %v1558
  %v1560 = vrot.slane %v1559, 1
  %v1561 = vadd.f32 %v1559, %v1560
  %v1562 = vrot.slane %v1375, 4
  %v1563 = vadd.f32 %v1375, %v1562
  %v1564 = vrot.slane %v1563, 2
  %v1565 = vadd.f32 %v1563, %v1564
  %v1566 = vrot.slane %v1565, 1
  %v1567 = vadd.f32 %v1565, %v1566
  %v1568 = vrcp.pop %v1381
  %v1569 = vmul.f32 %v1313, %v1568
  %v1570 = vrcp.pop %v1387
  %v1571 = vmul.f32 %v1315, %v1570
  %v1572 = vrcp.pop %v1393
  %v1573 = vmul.f32 %v1317, %v1572
  %v1574 = vrcp.pop %v1399
  %v1575 = vmul.f32 %v1319, %v1574
  %v1576 = vrcp.pop %v1405
  %v1577 = vmul.f32 %v1321, %v1576
  %v1578 = vrcp.pop %v1411
  %v1579 = vmul.f32 %v1323, %v1578
  %v1580 = vrcp.pop %v1417
  %v1581 = vmul.f32 %v1325, %v1580
  %v1582 = vrcp.pop %v1423
  %v1583 = vmul.f32 %v1327, %v1582
  %v1584 = vrcp.pop %v1429
  %v1585 = vmul.f32 %v1329, %v1584
  %v1586 = vrcp.pop %v1435
  %v1587 = vmul.f32 %v1331, %v1586
  %v1588 = vrcp.pop %v1441
  %v1589 = vmul.f32 %v1333, %v1588
  %v1590 = vrcp.pop %v1447
  %v1591 = vmul.f32 %v1335, %v1590
  %v1592 = vrcp.pop %v1453
  %v1593 = vmul.f32 %v1337, %v1592
  %v1594 = vrcp.pop %v1459
  %v1595 = vmul.f32 %v1339, %v1594
  %v1596 = vrcp.pop %v1465
  %v1597 = vmul.f32 %v1341, %v1596
  %v1598 = vrcp.pop %v1471
  %v1599 = vmul.f32 %v1343, %v1598
  %v1600 = vrcp.pop %v1477
  %v1601 = vmul.f32 %v1345, %v1600
  %v1602 = vrcp.pop %v1483
  %v1603 = vmul.f32 %v1347, %v1602
  %v1604 = vrcp.pop %v1489
  %v1605 = vmul.f32 %v1349, %v1604
  %v1606 = vrcp.pop %v1495
  %v1607 = vmul.f32 %v1351, %v1606
  %v1608 = vrcp.pop %v1501
  %v1609 = vmul.f32 %v1353, %v1608
  %v1610 = vrcp.pop %v1507
  %v1611 = vmul.f32 %v1355, %v1610
  %v1612 = vrcp.pop %v1513
  %v1613 = vmul.f32 %v1357, %v1612
  %v1614 = vrcp.pop %v1519
  %v1615 = vmul.f32 %v1359, %v1614
  %v1616 = vrcp.pop %v1525
  %v1617 = vmul.f32 %v1361, %v1616
  %v1618 = vrcp.pop %v1531
  %v1619 = vmul.f32 %v1363, %v1618
  %v1620 = vrcp.pop %v1537
  %v1621 = vmul.f32 %v1365, %v1620
  %v1622 = vrcp.pop %v1543
  %v1623 = vmul.f32 %v1367, %v1622
  %v1624 = vrcp.pop %v1549
  %v1625 = vmul.f32 %v1369, %v1624
  %v1626 = vrcp.pop %v1555
  %v1627 = vmul.f32 %v1371, %v1626
  %v1628 = vrcp.pop %v1561
  %v1629 = vmul.f32 %v1373, %v1628
  %v1630 = vrcp.pop %v1567
  %v1631 = vmul.f32 %v1375, %v1630
  %1632 = vst [vmem:[%s3] sm:$0xff] %v1569
  %1633 = vst [vmem:[%s3 + $0x8] sm:$0xff] %v1571
  %1634 = vst [vmem:[%s3 + $0x10] sm:$0xff] %v1573
  %1635 = vst [vmem:[%s3 + $0x18] sm:$0xff] %v1575
  %1636 = vst [vmem:[%s3 + $0x20] sm:$0xff] %v1577
  %1637 = vst [vmem:[%s3 + $0x28] sm:$0xff] %v1579
  %1638 = vst [vmem:[%s3 + $0x30] sm:$0xff] %v1581
  %1639 = vst [vmem:[%s3 + $0x38] sm:$0xff] %v1583
  %1640 = vst [vmem:[%s3 + $0x40] sm:$0xff] %v1585
  %1641 = vst [vmem:[%s3 + $0x48] sm:$0xff] %v1587
  %1642 = vst [vmem:[%s3 + $0x50] sm:$0xff] %v1589
  %1643 = vst [vmem:[%s3 + $0x58] sm:$0xff] %v1591
  %1644 = vst [vmem:[%s3 + $0x60] sm:$0xff] %v1593
  %1645 = vst [vmem:[%s3 + $0x68] sm:$0xff] %v1595
  %1646 = vst [vmem:[%s3 + $0x70] sm:$0xff] %v1597
  %1647 = vst [vmem:[%s3 + $0x78] sm:$0xff] %v1599
  %1648 = vst [vmem:[%s3 + $0x80] sm:$0xff] %v1601
  %1649 = vst [vmem:[%s3 + $0x88] sm:$0xff] %v1603
  %1650 = vst [vmem:[%s3 + $0x90] sm:$0xff] %v1605
  %1651 = vst [vmem:[%s3 + $0x98] sm:$0xff] %v1607
  %1652 = vst [vmem:[%s3 + $0xa0] sm:$0xff] %v1609
  %1653 = vst [vmem:[%s3 + $0xa8] sm:$0xff] %v1611
  %1654 = vst [vmem:[%s3 + $0xb0] sm:$0xff] %v1613
  %1655 = vst [vmem:[%s3 + $0xb8] sm:$0xff] %v1615
  %1656 = vst [vmem:[%s3 + $0xc0] sm:$0xff] %v1617
  %1657 = vst [vmem:[%s3 + $0xc8] sm:$0xff] %v1619
  %1658 = vst [vmem:[%s3 + $0xd0] sm:$0xff] %v1621
  %1659 = vst [vmem:[%s3 + $0xd8] sm:$0xff] %v1623
  %1660 = vst [vmem:[%s3 + $0xe0] sm:$0xff] %v1625
  %1661 = vst [vmem:[%s3 + $0xe8] sm:$0xff] %v1627
  %1662 = vst [vmem:[%s3 + $0xf0] sm:$0xff] %v1629
  %1663 = vst [vmem:[%s3 + $0xf8] sm:$0xff] %v1631
  // Predicated region
  $region14: #{rnn_forward.5} parent=0 // pred_check
    _
  $region15: #{rnn_forward.5} parent=0 // pred_check_branch
    %1665 = sbr.rel (0) target = $region17
  $region16: #{rnn_forward.5} parent=0 // pred_region
    _
  $region17: #{rnn_forward.5} parent=0 // pred_fallthru
    _
  // Predicated region
  $region18: #{rnn_forward.5} parent=0 // pred_check
    _
  $region19: #{rnn_forward.5} parent=0 // pred_check_branch
    %1667 = sbr.rel (0) target = $region21
  $region20: #{rnn_forward.5} parent=0 // pred_region
    _
  $region21: #{rnn_forward.5} parent=0 // pred_fallthru
    _

</llo_original>
